<compile_context>
chip_gen: v5e
topology: v5e:2x2
jax: 0.10.0
libtpu: 0.0.40
codegen_flags: <defaults>
</compile_context>

<pallas_src>
import jax
import jax.numpy as jnp
import numpy as np
from jax.experimental import pallas as pl
from jax.experimental.pallas import tpu as pltpu

# ---- shapes implied by the module --------------------------------------------------
B, H, W, CIN = 2, 16, 16, 3          # small input: (batch=2, 3, 16, 16)
KH, KW = 3, 3                        # conv stem kernel
HW = H * W                           # spatial positions per image
KP = 32                              # im2col contraction dim: KH*KW*CIN = 27 padded to 32
FEATS = 2048                         # resnet50 num_features
HID1, HID2 = 512, 256                # shared MLP widths
HEAD_PAD = 128                       # age(1)+gender(2) fused, zero-padded lane-dense
TF = 1024                            # FEATS tile streamed through the grid (was 512)
NF = FEATS // TF                     # = 2 grid steps


# ---- single fused kernel: conv-stem matmul + GAP + shared MLP + heads ---------------
def fused_kernel(x_ref, wc_ref, bc_ref, w1_ref, b1_ref,
                 w2_hbm, b2_hbm, wh_hbm, bh_hbm,
                 out_ref,
                 h1_acc, w2_v, b2_v, wh_v, bh_v, sem):
    # x_ref : (B*HW, KP)    bf16  im2col patches (resident, index fixed across grid)
    # wc_ref: (KP, TF)      bf16  conv-weight slice for this FEATS tile
    # bc_ref: (1, TF)       f32   conv bias slice
    # w1_ref: (TF, HID1)    bf16  first Linear slice (streamed / pipelined)
    # w2/b2/wh/bh           HBM refs (memory_space=pl.ANY), DMA'd behind the streamed steps
    # out   : (B, HEAD_PAD) f32   [age | gender0 | gender1 | 0...]
    f = pl.program_id(0)

    @pl.when(f == 0)
    def _init():
        h1_acc[...] = jnp.zeros_like(h1_acc)
        # Kick off finalize-only weight DMAs now so they overlap the streamed grid steps
        # instead of sitting in the (un-overlapped) pipeline prologue.
        pltpu.make_async_copy(w2_hbm, w2_v, sem.at[0]).start()
        pltpu.make_async_copy(b2_hbm, b2_v, sem.at[1]).start()
        pltpu.make_async_copy(wh_hbm, wh_v, sem.at[2]).start()
        pltpu.make_async_copy(bh_hbm, bh_v, sem.at[3]).start()

    # conv stem as one MXU matmul over the im2col patch matrix.
    z = jnp.dot(x_ref[...], wc_ref[...], preferred_element_type=jnp.float32)  # (B*HW, TF)
    z = jnp.maximum(z + bc_ref[...], 0.0)                                     # bias + ReLU
    # global average pool over spatial positions, per batch row (VPU — free under MXU slot).
    pooled = jnp.sum(z.reshape(B, HW, TF), axis=1) * (1.0 / HW)               # (B, TF) f32

    # first shared Linear, accumulated over FEATS tiles so w1 is pipelined behind compute.
    h1_acc[...] += jnp.dot(pooled.astype(w1_ref.dtype), w1_ref[...],
                           preferred_element_type=jnp.float32)                # (B, HID1)

    @pl.when(f == pl.num_programs(0) - 1)
    def _finalize():
        # The head weights have been in flight since step 0 — wait, then run the tiny MLP.
        pltpu.make_async_copy(w2_hbm, w2_v, sem.at[0]).wait()
        pltpu.make_async_copy(b2_hbm, b2_v, sem.at[1]).wait()
        pltpu.make_async_copy(wh_hbm, wh_v, sem.at[2]).wait()
        pltpu.make_async_copy(bh_hbm, bh_v, sem.at[3]).wait()
        h1 = jnp.maximum(h1_acc[...] + b1_ref[...], 0.0)      # ReLU; Dropout(0.5)=identity
        h2 = jnp.maximum(
            jnp.dot(h1.astype(w2_v.dtype), w2_v[...],
                    preferred_element_type=jnp.float32) + b2_v[...], 0.0)     # Dropout(0.3)=identity
        out_ref[...] = (jnp.dot(h2.astype(wh_v.dtype), wh_v[...],
                                preferred_element_type=jnp.float32) + bh_v[...])


# ---- wrapper ------------------------------------------------------------------------
def _im2col(x_nchw):
    """NCHW -> zero-padded im2col patch matrix (B*HW, KP), bf16, (kh,kw,ci) ci-fastest."""
    x = jnp.transpose(x_nchw, (0, 2, 3, 1)).astype(jnp.float32)        # NHWC
    xp = jnp.pad(x, ((0, 0), (1, 1), (1, 1), (0, 0)))                  # SAME padding
    cols = [xp[:, kh:kh + H, kw:kw + W, :] for kh in range(KH) for kw in range(KW)]
    patches = jnp.concatenate(cols, axis=-1).reshape(B * HW, KH * KW * CIN)
    patches = jnp.pad(patches, ((0, 0), (0, KP - KH * KW * CIN)))
    return patches.astype(jnp.bfloat16)


@jax.jit
def forward(x_nchw, p):
    patches = _im2col(x_nchw)
    out = pl.pallas_call(
        fused_kernel,
        out_shape=jax.ShapeDtypeStruct((B, HEAD_PAD), jnp.float32),
        grid_spec=pltpu.PrefetchScalarGridSpec(
            num_scalar_prefetch=0,
            grid=(NF,),
            in_specs=[
                pl.BlockSpec((B * HW, KP), lambda f: (0, 0)),      # patches (resident)
                pl.BlockSpec((KP, TF), lambda f: (0, f)),          # conv weight slice
                pl.BlockSpec((1, TF), lambda f: (0, f)),           # conv bias slice
                pl.BlockSpec((TF, HID1), lambda f: (f, 0)),        # w1 slice (pipelined)
                pl.BlockSpec((1, HID1), lambda f: (0, 0)),         # b1 (tiny, resident)
                pl.BlockSpec(memory_space=pl.ANY),                 # w2 (manual DMA)
                pl.BlockSpec(memory_space=pl.ANY),                 # b2 (manual DMA)
                pl.BlockSpec(memory_space=pl.ANY),                 # fused head weights (manual DMA)
                pl.BlockSpec(memory_space=pl.ANY),                 # fused head bias (manual DMA)
            ],
            out_specs=pl.BlockSpec((B, HEAD_PAD), lambda f: (0, 0)),
            scratch_shapes=[
                pltpu.VMEM((B, HID1), jnp.float32),                # h1 accumulator
                pltpu.VMEM((HID1, HID2), jnp.bfloat16),            # w2 landing buffer
                pltpu.VMEM((1, HID2), jnp.float32),                # b2 landing buffer
                pltpu.VMEM((HID2, HEAD_PAD), jnp.bfloat16),        # wh landing buffer
                pltpu.VMEM((1, HEAD_PAD), jnp.float32),            # bh landing buffer
                pltpu.SemaphoreType.DMA((4,)),
            ],
        ),
        compiler_params=pltpu.CompilerParams(dimension_semantics=("arbitrary",)),
    )(patches, p["wconv_mat"], p["bconv"], p["w1"], p["b1"],
      p["w2"], p["b2"], p["wh"], p["bh"])
    age = out[:, 0:1]       # (B, 1)
    gender = out[:, 1:3]    # (B, 2)
    return age, gender


# ---- deterministic parameter init ---------------------------------------------------
def init_params(key):
    ks = jax.random.split(key, 10)
    f32, bf16 = jnp.float32, jnp.bfloat16
    wconv = jax.random.normal(ks[0], (KH, KW, CIN, FEATS), f32) * (1.0 / np.sqrt(KH * KW * CIN))
    wconv_mat = jnp.pad(wconv.reshape(KH * KW * CIN, FEATS),
                        ((0, KP - KH * KW * CIN), (0, 0))).astype(bf16)      # (KP, FEATS)
    bconv = jax.random.normal(ks[1], (1, FEATS), f32) * 0.01
    w1 = (jax.random.normal(ks[2], (FEATS, HID1), f32) * (1.0 / np.sqrt(FEATS))).astype(bf16)
    b1 = jax.random.normal(ks[3], (1, HID1), f32) * 0.01
    w2 = (jax.random.normal(ks[4], (HID1, HID2), f32) * (1.0 / np.sqrt(HID1))).astype(bf16)
    b2 = jax.random.normal(ks[5], (1, HID2), f32) * 0.01
    wa = jax.random.normal(ks[6], (HID2, 1), f32) * (1.0 / np.sqrt(HID2))    # age head
    ba = jax.random.normal(ks[7], (1, 1), f32) * 0.01
    wg = jax.random.normal(ks[8], (HID2, 2), f32) * (1.0 / np.sqrt(HID2))    # gender head
    bg = jax.random.normal(ks[9], (1, 2), f32) * 0.01
    # fuse heads into one lane-dense (HID2, 128) matmul; cols: [age, gender0, gender1, 0...]
    wh = jnp.zeros((HID2, HEAD_PAD), f32).at[:, 0:1].set(wa).at[:, 1:3].set(wg).astype(bf16)
    bh = jnp.zeros((1, HEAD_PAD), f32).at[:, 0:1].set(ba).at[:, 1:3].set(bg)
    return dict(wconv_mat=wconv_mat, bconv=bconv, w1=w1, b1=b1, w2=w2, b2=b2, wh=wh, bh=bh)


# ---- pure-JAX reference (same bf16-input / f32-accumulate numerics) ------------------
def ref_forward(x_nchw, p):
    patches = _im2col(x_nchw)                                                 # (B*HW, KP) bf16
    z = jnp.dot(patches, p["wconv_mat"], preferred_element_type=jnp.float32)  # (B*HW, FEATS)
    z = jax.nn.relu(z + p["bconv"])
    feats = jnp.mean(z.reshape(B, HW, FEATS), axis=1)                         # (B, FEATS) f32
    h1 = jax.nn.relu(jnp.dot(feats.astype(jnp.bfloat16), p["w1"],
                             preferred_element_type=jnp.float32) + p["b1"])
    h2 = jax.nn.relu(jnp.dot(h1.astype(jnp.bfloat16), p["w2"],
                             preferred_element_type=jnp.float32) + p["b2"])
    out = jnp.dot(h2.astype(jnp.bfloat16), p["wh"],
                  preferred_element_type=jnp.float32) + p["bh"]
    return out[:, 0:1], out[:, 1:3]


if __name__ == "__main__":
    key = jax.random.PRNGKey(0)
    k_in, k_par = jax.random.split(key)
    x = jax.random.normal(k_in, (B, CIN, H, W), jnp.float32)   # PyTorch-style NCHW input
    params = init_params(k_par)

    age, gender = forward(x, params)
    jax.block_until_ready((age, gender))

    age_ref, gender_ref = ref_forward(x, params)
    assert age.shape == (B, 1) and gender.shape == (B, 2)
    np.testing.assert_allclose(np.asarray(age), np.asarray(age_ref), rtol=1e-2, atol=1e-2)
    np.testing.assert_allclose(np.asarray(gender), np.asarray(gender_ref), rtol=1e-2, atol=1e-2)
    print("KERNEL_OK")
</pallas_src>

<mosaic_0001>
module attributes {stable_mosaic.version = 11 : i64} {
  func.func @fused_kernel(%arg0: i32, %arg1: memref<512x32xbf16, #tpu.memory_space<vmem>>, %arg2: memref<32x1024xbf16, #tpu.memory_space<vmem>>, %arg3: memref<1x1024xf32, #tpu.memory_space<vmem>>, %arg4: memref<1024x512xbf16, #tpu.memory_space<vmem>>, %arg5: memref<1x512xf32, #tpu.memory_space<vmem>>, %arg6: memref<512x256xbf16, #tpu.memory_space<any>>, %arg7: memref<1x256xf32, #tpu.memory_space<any>>, %arg8: memref<256x128xbf16, #tpu.memory_space<any>>, %arg9: memref<1x128xf32, #tpu.memory_space<any>>, %arg10: memref<2x128xf32, #tpu.memory_space<vmem>>, %arg11: memref<2x512xf32, #tpu.memory_space<vmem>>, %arg12: memref<512x256xbf16, #tpu.memory_space<vmem>>, %arg13: memref<1x256xf32, #tpu.memory_space<vmem>>, %arg14: memref<256x128xbf16, #tpu.memory_space<vmem>>, %arg15: memref<1x128xf32, #tpu.memory_space<vmem>>, %arg16: memref<4x!tpu.dma_semaphore, #tpu.memory_space<semaphore_mem>>) attributes {dimension_semantics = [#tpu.dimension_semantics<arbitrary>], iteration_bounds = array<i64: 2>, scalar_prefetch = 0 : i64, scratch_operands = 6 : i64, tpu.core_type = #tpu.core_type<tc>, window_params = [{pipeline_mode = #tpu.pipeline_mode<synchronous>, transform_indices = @transform_0, window_bounds = array<i64: 512, 32>}, {transform_indices = @transform_1, window_bounds = array<i64: 32, 1024>}, {transform_indices = @transform_2, window_bounds = array<i64: 1, 1024>}, {transform_indices = @transform_3, window_bounds = array<i64: 1024, 512>}, {pipeline_mode = #tpu.pipeline_mode<synchronous>, transform_indices = @transform_4, window_bounds = array<i64: 1, 512>}, {}, {}, {}, {}, {pipeline_mode = #tpu.pipeline_mode<synchronous>, transform_indices = @transform_9, window_bounds = array<i64: 2, 128>}]} {
    %c0_i32 = arith.constant 0 : i32
    %0 = arith.cmpi eq, %arg0, %c0_i32 : i32
    %1 = arith.extui %0 : i1 to i32
    %c0_i32_0 = arith.constant 0 : i32
    %2 = arith.cmpi ne, %1, %c0_i32_0 : i32
    scf.if %2 {
      %cst_17 = arith.constant 0.000000e+00 : f32
      %24 = vector.broadcast %cst_17 : f32 to vector<2x512xf32>
      %c0_18 = arith.constant 0 : index
      %c0_19 = arith.constant 0 : index
      %25 = vector.load %arg11[%c0_18, %c0_19] : memref<2x512xf32, #tpu.memory_space<vmem>>, vector<2x512xf32>
      tpu.vector_store %arg11[%c0_18, %c0_19], %24 {strides = array<i32>} : memref<2x512xf32, #tpu.memory_space<vmem>>, vector<2x512xf32>,
      %c0_i32_20 = arith.constant 0 : i32
      %26 = tpu.memref_slice %arg16[%c0_i32_20] : memref<4x!tpu.dma_semaphore, #tpu.memory_space<semaphore_mem>> -> memref<1x!tpu.dma_semaphore, #tpu.memory_space<semaphore_mem>>
      %27 = tpu.memref_squeeze %26 : memref<1x!tpu.dma_semaphore, #tpu.memory_space<semaphore_mem>> -> memref<!tpu.dma_semaphore, #tpu.memory_space<semaphore_mem>>
      tpu.enqueue_dma source(%arg6 : memref<512x256xbf16, #tpu.memory_space<any>>) target(%arg12 : memref<512x256xbf16, #tpu.memory_space<vmem>>) target_semaphore(%27 : memref<!tpu.dma_semaphore, #tpu.memory_space<semaphore_mem>>)
      %c1_i32_21 = arith.constant 1 : i32
      %28 = tpu.memref_slice %arg16[%c1_i32_21] : memref<4x!tpu.dma_semaphore, #tpu.memory_space<semaphore_mem>> -> memref<1x!tpu.dma_semaphore, #tpu.memory_space<semaphore_mem>>
      %29 = tpu.memref_squeeze %28 : memref<1x!tpu.dma_semaphore, #tpu.memory_space<semaphore_mem>> -> memref<!tpu.dma_semaphore, #tpu.memory_space<semaphore_mem>>
      tpu.enqueue_dma source(%arg7 : memref<1x256xf32, #tpu.memory_space<any>>) target(%arg13 : memref<1x256xf32, #tpu.memory_space<vmem>>) target_semaphore(%29 : memref<!tpu.dma_semaphore, #tpu.memory_space<semaphore_mem>>)
      %c2_i32 = arith.constant 2 : i32
      %30 = tpu.memref_slice %arg16[%c2_i32] : memref<4x!tpu.dma_semaphore, #tpu.memory_space<semaphore_mem>> -> memref<1x!tpu.dma_semaphore, #tpu.memory_space<semaphore_mem>>
      %31 = tpu.memref_squeeze %30 : memref<1x!tpu.dma_semaphore, #tpu.memory_space<semaphore_mem>> -> memref<!tpu.dma_semaphore, #tpu.memory_space<semaphore_mem>>
      tpu.enqueue_dma source(%arg8 : memref<256x128xbf16, #tpu.memory_space<any>>) target(%arg14 : memref<256x128xbf16, #tpu.memory_space<vmem>>) target_semaphore(%31 : memref<!tpu.dma_semaphore, #tpu.memory_space<semaphore_mem>>)
      %c3_i32 = arith.constant 3 : i32
      %32 = tpu.memref_slice %arg16[%c3_i32] : memref<4x!tpu.dma_semaphore, #tpu.memory_space<semaphore_mem>> -> memref<1x!tpu.dma_semaphore, #tpu.memory_space<semaphore_mem>>
      %33 = tpu.memref_squeeze %32 : memref<1x!tpu.dma_semaphore, #tpu.memory_space<semaphore_mem>> -> memref<!tpu.dma_semaphore, #tpu.memory_space<semaphore_mem>>
      tpu.enqueue_dma source(%arg9 : memref<1x128xf32, #tpu.memory_space<any>>) target(%arg15 : memref<1x128xf32, #tpu.memory_space<vmem>>) target_semaphore(%33 : memref<!tpu.dma_semaphore, #tpu.memory_space<semaphore_mem>>)
    } else {
    }
    %c0 = arith.constant 0 : index
    %c0_1 = arith.constant 0 : index
    %3 = vector.load %arg1[%c0, %c0_1] : memref<512x32xbf16, #tpu.memory_space<vmem>>, vector<512x32xbf16>
    %c0_2 = arith.constant 0 : index
    %c0_3 = arith.constant 0 : index
    %4 = vector.load %arg2[%c0_2, %c0_3] : memref<32x1024xbf16, #tpu.memory_space<vmem>>, vector<32x1024xbf16>
    %cst = arith.constant dense<0.000000e+00> : vector<512x1024xf32>
    %5 = tpu.matmul %3, %4, %cst {dimension_numbers = #tpu.dot_dimension_numbers<[1], [0], [0], [1], [0, 0, 1, 1], [], []>} : vector<512x32xbf16>, vector<32x1024xbf16>, vector<512x1024xf32> -> vector<512x1024xf32>
    %c0_4 = arith.constant 0 : index
    %c0_5 = arith.constant 0 : index
    %6 = vector.load %arg3[%c0_4, %c0_5] : memref<1x1024xf32, #tpu.memory_space<vmem>>, vector<1x1024xf32>
    %7 = vector.broadcast %6 : vector<1x1024xf32> to vector<512x1024xf32>
    %8 = arith.addf %5, %7 : vector<512x1024xf32>
    %cst_6 = arith.constant 0.000000e+00 : f32
    %9 = vector.broadcast %cst_6 : f32 to vector<512x1024xf32>
    %10 = arith.maximumf %8, %9 : vector<512x1024xf32>
    %11 = vector.shape_cast %10 : vector<512x1024xf32> to vector<2x256x1024xf32>
    %cst_7 = arith.constant dense<0.000000e+00> : vector<2x1024xf32>
    %12 = vector.multi_reduction <add>, %11, %cst_7 [1] : vector<2x256x1024xf32> to vector<2x1024xf32>
    %cst_8 = arith.constant 3.906250e-03 : f32
    %13 = vector.broadcast %cst_8 : f32 to vector<2x1024xf32>
    %14 = arith.mulf %12, %13 : vector<2x1024xf32>
    %c0_9 = arith.constant 0 : index
    %c0_10 = arith.constant 0 : index
    %15 = vector.load %arg11[%c0_9, %c0_10] : memref<2x512xf32, #tpu.memory_space<vmem>>, vector<2x512xf32>
    %16 = arith.truncf %14 : vector<2x1024xf32> to vector<2x1024xbf16>
    %c0_11 = arith.constant 0 : index
    %c0_12 = arith.constant 0 : index
    %17 = vector.load %arg4[%c0_11, %c0_12] : memref<1024x512xbf16, #tpu.memory_space<vmem>>, vector<1024x512xbf16>
    %cst_13 = arith.constant dense<0.000000e+00> : vector<2x512xf32>
    %18 = tpu.matmul %16, %17, %cst_13 {dimension_numbers = #tpu.dot_dimension_numbers<[1], [0], [0], [1], [0, 0, 1, 1], [], []>} : vector<2x1024xbf16>, vector<1024x512xbf16>, vector<2x512xf32> -> vector<2x512xf32>
    %19 = arith.addf %15, %18 : vector<2x512xf32>
    %c0_14 = arith.constant 0 : index
    %c0_15 = arith.constant 0 : index
    %20 = vector.load %arg11[%c0_14, %c0_15] : memref<2x512xf32, #tpu.memory_space<vmem>>, vector<2x512xf32>
    tpu.vector_store %arg11[%c0_14, %c0_15], %19 {strides = array<i32>} : memref<2x512xf32, #tpu.memory_space<vmem>>, vector<2x512xf32>,
    %c1_i32 = arith.constant 1 : i32
    %21 = arith.cmpi eq, %arg0, %c1_i32 : i32
    %22 = arith.extui %21 : i1 to i32
    %c0_i32_16 = arith.constant 0 : i32
    %23 = arith.cmpi ne, %22, %c0_i32_16 : i32
    scf.if %23 {
      %c0_i32_17 = arith.constant 0 : i32
      %24 = tpu.memref_slice %arg16[%c0_i32_17] : memref<4x!tpu.dma_semaphore, #tpu.memory_space<semaphore_mem>> -> memref<1x!tpu.dma_semaphore, #tpu.memory_space<semaphore_mem>>
      %25 = tpu.memref_squeeze %24 : memref<1x!tpu.dma_semaphore, #tpu.memory_space<semaphore_mem>> -> memref<!tpu.dma_semaphore, #tpu.memory_space<semaphore_mem>>
      tpu.wait_dma2 semaphore(%25 : memref<!tpu.dma_semaphore, #tpu.memory_space<semaphore_mem>>) src(%arg6 : memref<512x256xbf16, #tpu.memory_space<any>>) dst(%arg12 : memref<512x256xbf16, #tpu.memory_space<vmem>>)
      %c1_i32_18 = arith.constant 1 : i32
      %26 = tpu.memref_slice %arg16[%c1_i32_18] : memref<4x!tpu.dma_semaphore, #tpu.memory_space<semaphore_mem>> -> memref<1x!tpu.dma_semaphore, #tpu.memory_space<semaphore_mem>>
      %27 = tpu.memref_squeeze %26 : memref<1x!tpu.dma_semaphore, #tpu.memory_space<semaphore_mem>> -> memref<!tpu.dma_semaphore, #tpu.memory_space<semaphore_mem>>
      tpu.wait_dma2 semaphore(%27 : memref<!tpu.dma_semaphore, #tpu.memory_space<semaphore_mem>>) src(%arg7 : memref<1x256xf32, #tpu.memory_space<any>>) dst(%arg13 : memref<1x256xf32, #tpu.memory_space<vmem>>)
      %c2_i32 = arith.constant 2 : i32
      %28 = tpu.memref_slice %arg16[%c2_i32] : memref<4x!tpu.dma_semaphore, #tpu.memory_space<semaphore_mem>> -> memref<1x!tpu.dma_semaphore, #tpu.memory_space<semaphore_mem>>
      %29 = tpu.memref_squeeze %28 : memref<1x!tpu.dma_semaphore, #tpu.memory_space<semaphore_mem>> -> memref<!tpu.dma_semaphore, #tpu.memory_space<semaphore_mem>>
      tpu.wait_dma2 semaphore(%29 : memref<!tpu.dma_semaphore, #tpu.memory_space<semaphore_mem>>) src(%arg8 : memref<256x128xbf16, #tpu.memory_space<any>>) dst(%arg14 : memref<256x128xbf16, #tpu.memory_space<vmem>>)
      %c3_i32 = arith.constant 3 : i32
      %30 = tpu.memref_slice %arg16[%c3_i32] : memref<4x!tpu.dma_semaphore, #tpu.memory_space<semaphore_mem>> -> memref<1x!tpu.dma_semaphore, #tpu.memory_space<semaphore_mem>>
      %31 = tpu.memref_squeeze %30 : memref<1x!tpu.dma_semaphore, #tpu.memory_space<semaphore_mem>> -> memref<!tpu.dma_semaphore, #tpu.memory_space<semaphore_mem>>
      tpu.wait_dma2 semaphore(%31 : memref<!tpu.dma_semaphore, #tpu.memory_space<semaphore_mem>>) src(%arg9 : memref<1x128xf32, #tpu.memory_space<any>>) dst(%arg15 : memref<1x128xf32, #tpu.memory_space<vmem>>)
      %c0_19 = arith.constant 0 : index
      %c0_20 = arith.constant 0 : index
      %32 = vector.load %arg11[%c0_19, %c0_20] : memref<2x512xf32, #tpu.memory_space<vmem>>, vector<2x512xf32>
      %c0_21 = arith.constant 0 : index
      %c0_22 = arith.constant 0 : index
      %33 = vector.load %arg5[%c0_21, %c0_22] : memref<1x512xf32, #tpu.memory_space<vmem>>, vector<1x512xf32>
      %34 = vector.broadcast %33 : vector<1x512xf32> to vector<2x512xf32>
      %35 = arith.addf %32, %34 : vector<2x512xf32>
      %cst_23 = arith.constant 0.000000e+00 : f32
      %36 = vector.broadcast %cst_23 : f32 to vector<2x512xf32>
      %37 = arith.maximumf %35, %36 : vector<2x512xf32>
      %38 = arith.truncf %37 : vector<2x512xf32> to vector<2x512xbf16>
      %c0_24 = arith.constant 0 : index
      %c0_25 = arith.constant 0 : index
      %39 = vector.load %arg12[%c0_24, %c0_25] : memref<512x256xbf16, #tpu.memory_space<vmem>>, vector<512x256xbf16>
      %cst_26 = arith.constant dense<0.000000e+00> : vector<2x256xf32>
      %40 = tpu.matmul %38, %39, %cst_26 {dimension_numbers = #tpu.dot_dimension_numbers<[1], [0], [0], [1], [0, 0, 1, 1], [], []>} : vector<2x512xbf16>, vector<512x256xbf16>, vector<2x256xf32> -> vector<2x256xf32>
      %c0_27 = arith.constant 0 : index
      %c0_28 = arith.constant 0 : index
      %41 = vector.load %arg13[%c0_27, %c0_28] : memref<1x256xf32, #tpu.memory_space<vmem>>, vector<1x256xf32>
      %42 = vector.broadcast %41 : vector<1x256xf32> to vector<2x256xf32>
      %43 = arith.addf %40, %42 : vector<2x256xf32>
      %cst_29 = arith.constant 0.000000e+00 : f32
      %44 = vector.broadcast %cst_29 : f32 to vector<2x256xf32>
      %45 = arith.maximumf %43, %44 : vector<2x256xf32>
      %46 = arith.truncf %45 : vector<2x256xf32> to vector<2x256xbf16>
      %c0_30 = arith.constant 0 : index
      %c0_31 = arith.constant 0 : index
      %47 = vector.load %arg14[%c0_30, %c0_31] : memref<256x128xbf16, #tpu.memory_space<vmem>>, vector<256x128xbf16>
      %cst_32 = arith.constant dense<0.000000e+00> : vector<2x128xf32>
      %48 = tpu.matmul %46, %47, %cst_32 {dimension_numbers = #tpu.dot_dimension_numbers<[1], [0], [0], [1], [0, 0, 1, 1], [], []>} : vector<2x256xbf16>, vector<256x128xbf16>, vector<2x128xf32> -> vector<2x128xf32>
      %c0_33 = arith.constant 0 : index
      %c0_34 = arith.constant 0 : index
      %49 = vector.load %arg15[%c0_33, %c0_34] : memref<1x128xf32, #tpu.memory_space<vmem>>, vector<1x128xf32>
      %50 = vector.broadcast %49 : vector<1x128xf32> to vector<2x128xf32>
      %51 = arith.addf %48, %50 : vector<2x128xf32>
      %c0_35 = arith.constant 0 : index
      %c0_36 = arith.constant 0 : index
      %52 = vector.load %arg10[%c0_35, %c0_36] : memref<2x128xf32, #tpu.memory_space<vmem>>, vector<2x128xf32>
      tpu.vector_store %arg10[%c0_35, %c0_36], %51 {strides = array<i32>} : memref<2x128xf32, #tpu.memory_space<vmem>>, vector<2x128xf32>,
    } else {
    }
    return
  }
  func.func @transform_0(%arg0: i32) -> (i32, i32) {
    %c0_i32 = arith.constant 0 : i32
    %c0_i32_0 = arith.constant 0 : i32
    %c0_i32_1 = arith.constant 0 : i32
    return %c0_i32, %c0_i32_0 : i32, i32
  }
  func.func @transform_1(%arg0: i32) -> (i32, i32) {
    %c0_i32 = arith.constant 0 : i32
    %c0_i32_0 = arith.constant 0 : i32
    return %c0_i32, %arg0 : i32, i32
  }
  func.func @transform_2(%arg0: i32) -> (i32, i32) {
    %c0_i32 = arith.constant 0 : i32
    %c0_i32_0 = arith.constant 0 : i32
    return %c0_i32, %arg0 : i32, i32
  }
  func.func @transform_3(%arg0: i32) -> (i32, i32) {
    %c0_i32 = arith.constant 0 : i32
    %c0_i32_0 = arith.constant 0 : i32
    return %arg0, %c0_i32 : i32, i32
  }
  func.func @transform_4(%arg0: i32) -> (i32, i32) {
    %c0_i32 = arith.constant 0 : i32
    %c0_i32_0 = arith.constant 0 : i32
    %c0_i32_1 = arith.constant 0 : i32
    return %c0_i32, %c0_i32_0 : i32, i32
  }
  func.func @transform_9(%arg0: i32) -> (i32, i32) {
    %c0_i32 = arith.constant 0 : i32
    %c0_i32_0 = arith.constant 0 : i32
    %c0_i32_1 = arith.constant 0 : i32
    return %c0_i32, %c0_i32_0 : i32, i32
  }
}

</mosaic_0001>

<llo_original>
// kernel: forward.1
$region0: #{forward.1}
  #allocation0 [shape = 'u32[]', space=smem, size = 0x4, offset = 0x4, fixed_abs, tag = 'smem constant byte address 0x4 - core index']
  #allocation1 [shape = 'u32[72,128]{1,0:T(1,128)}', space=vmem, size = 0x9000, scoped, tag = 'internal scratch']
  #allocation2 [shape = 'f32[2,512]{1,0:T(2,128)}', space=vmem, size = 0x1000, scoped, tag = 'scratch operand']
  #allocation3 [shape = 'bf16[512,256]{1,0:T(8,128)(2,1)}', space=vmem, size = 0x40000, scoped, tag = 'scratch operand']
  #allocation4 [shape = 'f32[1,256]{1,0:T(1,128)}', space=vmem, size = 0x400, scoped, tag = 'scratch operand']
  #allocation5 [shape = 'bf16[256,128]{1,0:T(8,128)(2,1)}', space=vmem, size = 0x10000, scoped, tag = 'scratch operand']
  #allocation6 [shape = 'f32[1,128]{1,0:T(1,128)}', space=vmem, size = 0x200, scoped, tag = 'scratch operand']
  #allocation7 [shape = 's32[4]{0}', space=sflag, size = 0x10, scoped, tag = 'scratch operand']
  #allocation15 [shape = 's32[]', space=sflag, size = 0x4, offset = 0, fixed_abs, tag = 'sflag constant byte address 0x0 - dummy sync flag']
  #allocation16 [shape = 's32[]', space=sflag, size = 0x4, offset = 0, fixed_abs, tag = 'sflag constant byte address 0x0 - dummy sync flag']
  #allocation17 [shape = 'u32[]', space=smem, size = 0x4, offset = 0x44, fixed_abs, tag = 'smem constant byte address 0x44 - assertion arg 0']
  #allocation18 [shape = 'u32[]', space=smem, size = 0x4, offset = 0x48, fixed_abs, tag = 'smem constant byte address 0x48 - assertion arg 1']
  #allocation19 [shape = 's32[]', space=sflag, size = 0x4, offset = 0, fixed_abs, tag = 'sflag constant byte address 0x0 - dummy sync flag']
  #allocation20 [shape = 's32[]', space=sflag, size = 0x4, offset = 0, fixed_abs, tag = 'sflag constant byte address 0x0 - dummy sync flag']
  #allocation21 [shape = 's32[]', space=sflag, size = 0x4, offset = 0, fixed_abs, tag = 'sflag constant byte address 0x0 - dummy sync flag']
  #allocation22 [shape = 's32[]', space=sflag, size = 0x4, offset = 0, fixed_abs, tag = 'sflag constant byte address 0x0 - dummy sync flag']
  #allocation23 [shape = 's32[]', space=sflag, size = 0x4, offset = 0, fixed_abs, tag = 'sflag constant byte address 0x0 - dummy sync flag']
  #allocation24 [shape = 's32[]', space=sflag, size = 0x4, offset = 0, fixed_abs, tag = 'sflag constant byte address 0x0 - dummy sync flag']
  %s0 = inlined_call_operand.vmem [shape: bf16[512,32], index: 0, kind: input, shape index: {}]
  %s1 = inlined_call_operand.hbm [shape: bf16[32,2048], index: 1, kind: input, shape index: {}]
  %s2 = inlined_call_operand.hbm [shape: f32[1,2048], index: 2, kind: input, shape index: {}]
  %s3 = inlined_call_operand.hbm [shape: bf16[2048,512], index: 3, kind: input, shape index: {}]
  %s4 = inlined_call_operand.hbm [shape: f32[1,512], index: 4, kind: input, shape index: {}]
  %s5 = inlined_call_operand.hbm [shape: bf16[512,256], index: 5, kind: input, shape index: {}]
  %s6 = inlined_call_operand.hbm [shape: f32[1,256], index: 6, kind: input, shape index: {}]
  %s7 = inlined_call_operand.hbm [shape: bf16[256,128], index: 7, kind: input, shape index: {}]
  %s8 = inlined_call_operand.hbm [shape: f32[1,128], index: 8, kind: input, shape index: {}]
  %s9 = inlined_call_operand.vmem [shape: f32[2,128], index: 9, kind: output, shape index: {}]
  %s10 = sld [smem:[#allocation0]]
  $region93: #{forward.1} parent=0
    _
  %s12 = ssub.s32 1, %s10
  %s13 = scalar_select 0, %s12, %s10
  $region1: #{forward.1} parent=0
    #allocation8 [shape = 'u8[131072]{0}', space=vmem, size = 0x20000, scoped, tag = 'input window, operand 1']
    #allocation9 [shape = 's32[2]{0}', space=sflag, size = 0x8, scoped, tag = 'scoped memory for forward.1']
    #allocation10 [shape = 'u8[8192]{0}', space=vmem, size = 0x2000, scoped, tag = 'input window, operand 2']
    #allocation11 [shape = 's32[2]{0}', space=sflag, size = 0x8, scoped, tag = 'scoped memory for forward.1']
    #allocation12 [shape = 'u8[2097152]{0}', space=vmem, size = 0x200000, scoped, tag = 'input window, operand 3']
    #allocation13 [shape = 'u8[2048]{0}', space=vmem, size = 0x800, scoped, tag = 'input window, operand 4, single buffered']
    #allocation14 [shape = 's32[1]{0}', space=sflag, size = 0x4, scoped, tag = 'scoped memory for forward.1']
    %14 = vsyncpa [#allocation9], 0
    %s15 = scalar_lea.sflag [#allocation9], 1
    %16 = vsyncpa %s15, 0
    %17 = vsyncpa [#allocation11], 0
    %s18 = scalar_lea.sflag [#allocation11], 1
    %19 = vsyncpa %s18, 0
    %20 = vsyncpa [#allocation14], 0
    loop: start=0, step=1, limit=4
    $region2: #{forward.1} parent=1 // loop_pre_header
      _
    $region3: #{forward.1} parent=1 // loop_header
      %s22 = sphi 0, %s26
      %p23 = scmp.ge.s32.totalorder %s22, 4
      %s30 = sphi 0, %s30
      %s32 = sphi 0, %s30
      %s33 = sphi 0, %s32
      %s47 = sphi 0, %s33
      %s53 = sphi 0, %s55
      %s56 = sphi 0, %s53
      %s57 = sphi 0, %s56
      %s73 = sphi 0, %s57
      %s79 = sphi 0, %s81
      %s82 = sphi 0, %s79
      %s83 = sphi 0, %s82
      %s99 = sphi 0, %s83
      %s105 = sphi 0, %s107
      %s108 = sphi 0, %s105
      %s109 = sphi 0, %s108
      %s125 = sphi 0, %s109
      %s129 = sphi 0, %s129
      %s131 = sphi 0, %s129
      %s132 = sphi 0, %s131
      %s146 = sphi 0, %s132
      %s150 = sphi 0, %s150
      %s152 = sphi 0, %s150
      %s153 = sphi 0, %s152
      %s167 = sphi 0, %s153
    $region4: #{forward.1} parent=1 // loop_header_branch
      %25 = sbr.rel (%p23) target = $region8
    $region5: #{forward.1} parent=1 // loop_body
      %s27 = ssub.s32 %s22, 1
      %s28 = ssub.s32 %s22, 2
      %s29 = sadd.s32 %s22, 1
      %s31 = sadd.s32 %s30, 1
      %p34 = scmp.eq.s32.totalorder %s22, 1
      %p35 = scmp.ne.s32.totalorder %s30, %s32
      %p36 = scmp.eq.s32.totalorder %s22, 0
      %p37 = por %p35, %p36
      %p38 = scmp.ne.s32.totalorder %s30, %s32
      %p39 = scmp.eq.s32.totalorder %s27, 1
      %p40 = por %p38, %p39
      %p41 = scmp.ne.s32.totalorder %s32, %s33
      %p42 = scmp.eq.s32.totalorder %s27, 0
      %p43 = por %p41, %p42
      %p44 = scmp.ne.s32.totalorder %s32, %s33
      %p45 = scmp.eq.s32.totalorder %s28, 1
      %p46 = por %p44, %p45
      %p48 = scmp.ne.s32.totalorder %s33, %s47
      %p49 = scmp.eq.s32.totalorder %s28, 0
      %p50 = por %p48, %p49
      %s51 = ssub.s32 %s22, %s29
      %p52 = scmp.eq.s32.totalorder %s51, 0
      %s54 = sadd.s32 %s53, 1
      %s55 = scalar_select %p52, %s53, %s54
      %p58 = pneg %p52
      %p59 = scmp.eq.s32.totalorder %s22, 1
      %p60 = por %p58, %p59
      %p61 = scmp.ne.s32.totalorder %s53, %s56
      %p62 = scmp.eq.s32.totalorder %s22, 0
      %p63 = por %p61, %p62
      %p64 = scmp.ne.s32.totalorder %s53, %s56
      %p65 = scmp.eq.s32.totalorder %s27, 1
      %p66 = por %p64, %p65
      %p67 = scmp.ne.s32.totalorder %s56, %s57
      %p68 = scmp.eq.s32.totalorder %s27, 0
      %p69 = por %p67, %p68
      %p70 = scmp.ne.s32.totalorder %s56, %s57
      %p71 = scmp.eq.s32.totalorder %s28, 1
      %p72 = por %p70, %p71
      %p74 = scmp.ne.s32.totalorder %s57, %s73
      %p75 = scmp.eq.s32.totalorder %s28, 0
      %p76 = por %p74, %p75
      %s77 = ssub.s32 %s22, %s29
      %p78 = scmp.eq.s32.totalorder %s77, 0
      %s80 = sadd.s32 %s79, 1
      %s81 = scalar_select %p78, %s79, %s80
      %p84 = pneg %p78
      %p85 = scmp.eq.s32.totalorder %s22, 1
      %p86 = por %p84, %p85
      %p87 = scmp.ne.s32.totalorder %s79, %s82
      %p88 = scmp.eq.s32.totalorder %s22, 0
      %p89 = por %p87, %p88
      %p90 = scmp.ne.s32.totalorder %s79, %s82
      %p91 = scmp.eq.s32.totalorder %s27, 1
      %p92 = por %p90, %p91
      %p93 = scmp.ne.s32.totalorder %s82, %s83
      %p94 = scmp.eq.s32.totalorder %s27, 0
      %p95 = por %p93, %p94
      %p96 = scmp.ne.s32.totalorder %s82, %s83
      %p97 = scmp.eq.s32.totalorder %s28, 1
      %p98 = por %p96, %p97
      %p100 = scmp.ne.s32.totalorder %s83, %s99
      %p101 = scmp.eq.s32.totalorder %s28, 0
      %p102 = por %p100, %p101
      %s103 = ssub.s32 %s22, %s29
      %p104 = scmp.eq.s32.totalorder %s103, 0
      %s106 = sadd.s32 %s105, 1
      %s107 = scalar_select %p104, %s105, %s106
      %p110 = pneg %p104
      %p111 = scmp.eq.s32.totalorder %s22, 1
      %p112 = por %p110, %p111
      %p113 = scmp.ne.s32.totalorder %s105, %s108
      %p114 = scmp.eq.s32.totalorder %s22, 0
      %p115 = por %p113, %p114
      %p116 = scmp.ne.s32.totalorder %s105, %s108
      %p117 = scmp.eq.s32.totalorder %s27, 1
      %p118 = por %p116, %p117
      %p119 = scmp.ne.s32.totalorder %s108, %s109
      %p120 = scmp.eq.s32.totalorder %s27, 0
      %p121 = por %p119, %p120
      %p122 = scmp.ne.s32.totalorder %s108, %s109
      %p123 = scmp.eq.s32.totalorder %s28, 1
      %p124 = por %p122, %p123
      %p126 = scmp.ne.s32.totalorder %s109, %s125
      %p127 = scmp.eq.s32.totalorder %s28, 0
      %p128 = por %p126, %p127
      %s130 = sadd.s32 %s129, 1
      %p133 = scmp.eq.s32.totalorder %s22, 1
      %p134 = scmp.ne.s32.totalorder %s129, %s131
      %p135 = scmp.eq.s32.totalorder %s22, 0
      %p136 = por %p134, %p135
      %p137 = scmp.ne.s32.totalorder %s129, %s131
      %p138 = scmp.eq.s32.totalorder %s27, 1
      %p139 = por %p137, %p138
      %p140 = scmp.ne.s32.totalorder %s131, %s132
      %p141 = scmp.eq.s32.totalorder %s27, 0
      %p142 = por %p140, %p141
      %p143 = scmp.ne.s32.totalorder %s131, %s132
      %p144 = scmp.eq.s32.totalorder %s28, 1
      %p145 = por %p143, %p144
      %p147 = scmp.ne.s32.totalorder %s132, %s146
      %p148 = scmp.eq.s32.totalorder %s28, 0
      %p149 = por %p147, %p148
      %s151 = sadd.s32 %s150, 1
      %p154 = scmp.eq.s32.totalorder %s22, 1
      %p155 = scmp.ne.s32.totalorder %s150, %s152
      %p156 = scmp.eq.s32.totalorder %s22, 0
      %p157 = por %p155, %p156
      %p158 = scmp.ne.s32.totalorder %s150, %s152
      %p159 = scmp.eq.s32.totalorder %s27, 1
      %p160 = por %p158, %p159
      %p161 = scmp.ne.s32.totalorder %s152, %s153
      %p162 = scmp.eq.s32.totalorder %s27, 0
      %p163 = por %p161, %p162
      %p164 = scmp.ne.s32.totalorder %s152, %s153
      %p165 = scmp.eq.s32.totalorder %s28, 1
      %p166 = por %p164, %p165
      %p168 = scmp.ne.s32.totalorder %s153, %s167
      %p169 = scmp.eq.s32.totalorder %s28, 0
      %p170 = por %p168, %p169
      %p171 = scmp.le.s32.totalorder 1, %s22
      %p172 = scmp.lt.s32.totalorder %s22, 3
      %p173 = pnand %p171, %p172
      %p174 = pneg %p173
      // Predicated region
      $region9: #{forward.1} parent=5 // pred_check
        _
      $region10: #{forward.1} parent=5 // pred_check_branch
        %176 = sbr.rel (%p173) target = $region12
      $region11: #{forward.1} parent=5 // pred_region
        %s177 = ssub.s32 %s22, 1
        // Predicated region
        $region13: #{forward.1} parent=11 // pred_check
          %p178 = pneg %p43
        $region14: #{forward.1} parent=11 // pred_check_branch
          %180 = sbr.rel (%p178) target = $region16
        $region15: #{forward.1} parent=11 // pred_region
          _
        $region16: #{forward.1} parent=11 // pred_fallthru
          _
        // Predicated region
        $region17: #{forward.1} parent=11 // pred_check
          %p181 = pneg %p142
        $region18: #{forward.1} parent=11 // pred_check_branch
          %183 = sbr.rel (%p181) target = $region20
        $region19: #{forward.1} parent=11 // pred_region
          %185 = vsyncadd [#allocation14], 0
          %s187 = sshll.u32 %s4, 4
          %s188 = int_to_ptr.hbm [resolvable:$true] %s187
          %s189 = sshll.u32 [#allocation13], 4
          %s190 = int_to_ptr.vmem [resolvable:$true] %s189
          %192 = dma.hbm_to_vmem [thread:$0]  %s188, 64, %s190, [#allocation14]
        $region20: #{forward.1} parent=11 // pred_fallthru
          _
      $region12: #{forward.1} parent=5 // pred_fallthru
        _
      %p193 = scmp.lt.s32.totalorder %s22, 2
      // Predicated region
      $region21: #{forward.1} parent=5 // pred_check
        %p194 = pneg %p193
      $region22: #{forward.1} parent=5 // pred_check_branch
        %196 = sbr.rel (%p194) target = $region24
      $region23: #{forward.1} parent=5 // pred_region
        // Predicated region
        $region25: #{forward.1} parent=23 // pred_check
          %p197 = pneg %p63
        $region26: #{forward.1} parent=23 // pred_check_branch
          %199 = sbr.rel (%p197) target = $region28
        $region27: #{forward.1} parent=23 // pred_region
          %s200 = sand.u32 %s53, 1
          %s201 = scalar_lea.sflag [#allocation9], %s200
          %s202 = sand.u32 %s53, 1
          %s203 = smul.addr %s202, 128
          %s204 = scalar_lea.vmem [#allocation8], %s203
          %s205 = smul.u32 8, %s22
          %207 = vsyncadd %s201, 0
          %s208 = smul.addr %s205, 4
          %s209 = scalar_lea.hbm %s1, %s208
          %s210 = sshll.u32 %s209, 4
          %s211 = int_to_ptr.hbm [resolvable:$true] %s210
          %s212 = sshll.u32 %s204, 4
          %s213 = int_to_ptr.vmem [resolvable:$true] %s212
          %218 = dma.hbm_to_vmem [thread:$0]  %s211, 2048, %s213, %s201, 1024, 512, 32
        $region28: #{forward.1} parent=23 // pred_fallthru
          _
        // Predicated region
        $region29: #{forward.1} parent=23 // pred_check
          %p219 = pneg %p89
        $region30: #{forward.1} parent=23 // pred_check_branch
          %221 = sbr.rel (%p219) target = $region32
        $region31: #{forward.1} parent=23 // pred_region
          %s222 = sand.u32 %s22, 1
          %s223 = scalar_lea.sflag [#allocation11], %s222
          %s224 = sand.u32 %s79, 1
          %s225 = smul.addr %s224, 8
          %s226 = scalar_lea.vmem [#allocation10], %s225
          %s227 = smul.u32 8, %s22
          %229 = vsyncadd %s223, 0
          %s230 = scalar_lea.hbm %s2, %s227
          %s232 = sshll.u32 %s230, 4
          %s233 = int_to_ptr.hbm [resolvable:$true] %s232
          %s234 = sshll.u32 %s226, 4
          %s235 = int_to_ptr.vmem [resolvable:$true] %s234
          %237 = dma.hbm_to_vmem [thread:$0]  %s233, 128, %s235, %s223
        $region32: #{forward.1} parent=23 // pred_fallthru
          _
        // Predicated region
        $region33: #{forward.1} parent=23 // pred_check
          %p238 = pneg %p115
        $region34: #{forward.1} parent=23 // pred_check_branch
          %240 = sbr.rel (%p238) target = $region36
        $region35: #{forward.1} parent=23 // pred_region
          %s241 = sand.u32 %s22, 1
          %s242 = scalar_lea.sflag [#allocation11], %s241
          %s243 = sand.u32 %s105, 1
          %s244 = smul.addr %s243, 2048
          %s245 = scalar_lea.vmem [#allocation12], %s244
          %s246 = smul.u32 128, %s22
          %248 = vsyncadd %s242, 0
          %s249 = smul.addr %s246, 4
          %s250 = smul.addr %s249, 4
          %s251 = scalar_lea.hbm %s3, %s250
          %s252 = sshll.u32 %s251, 4
          %s253 = int_to_ptr.hbm [resolvable:$true] %s252
          %s254 = sshll.u32 %s245, 4
          %s255 = int_to_ptr.vmem [resolvable:$true] %s254
          %260 = dma.hbm_to_vmem [thread:$0]  %s253, 32768, %s255, %s242, 256, 256, 16
        $region36: #{forward.1} parent=23 // pred_fallthru
          _
      $region24: #{forward.1} parent=5 // pred_fallthru
        _
      %p261 = scmp.le.s32.totalorder 1, %s22
      %p262 = scmp.lt.s32.totalorder %s22, 3
      %p263 = pnand %p261, %p262
      %p264 = pneg %p263
      // Predicated region
      $region37: #{forward.1} parent=5 // pred_check
        _
      $region38: #{forward.1} parent=5 // pred_check_branch
        %266 = sbr.rel (%p263) target = $region40
      $region39: #{forward.1} parent=5 // pred_region
        %s267 = ssub.s32 %s22, 1
        %s268 = sand.u32 %s56, 1
        %s269 = scalar_lea.sflag [#allocation9], %s268
        %s270 = sand.u32 %s56, 1
        %s271 = smul.addr %s270, 128
        %s272 = scalar_lea.vmem [#allocation8], %s271
        // Predicated region
        $region41: #{forward.1} parent=39 // pred_check
          %p273 = pneg %p69
        $region42: #{forward.1} parent=39 // pred_check_branch
          %275 = sbr.rel (%p273) target = $region44
        $region43: #{forward.1} parent=39 // pred_region
          %277 = dma.done %s269, 2048
        $region44: #{forward.1} parent=39 // pred_fallthru
          _
        %s278 = sand.u32 %s27, 1
        %s279 = scalar_lea.sflag [#allocation11], %s278
        %s280 = sand.u32 %s82, 1
        %s281 = smul.addr %s280, 8
        %s282 = scalar_lea.vmem [#allocation10], %s281
        // Predicated region
        $region45: #{forward.1} parent=39 // pred_check
          %p283 = pneg %p95
        $region46: #{forward.1} parent=39 // pred_check_branch
          %285 = sbr.rel (%p283) target = $region48
        $region47: #{forward.1} parent=39 // pred_region
          %287 = dma.done %s279, 128
        $region48: #{forward.1} parent=39 // pred_fallthru
          _
        %s288 = sand.u32 %s27, 1
        %s289 = scalar_lea.sflag [#allocation11], %s288
        %s290 = sand.u32 %s108, 1
        %s291 = smul.addr %s290, 2048
        %s292 = scalar_lea.vmem [#allocation12], %s291
        // Predicated region
        $region49: #{forward.1} parent=39 // pred_check
          %p293 = pneg %p121
        $region50: #{forward.1} parent=39 // pred_check_branch
          %295 = sbr.rel (%p293) target = $region52
        $region51: #{forward.1} parent=39 // pred_region
          %297 = dma.done %s289, 32768
        $region52: #{forward.1} parent=39 // pred_fallthru
          _
        // Predicated region
        $region53: #{forward.1} parent=39 // pred_check
          %p298 = pneg %p142
        $region54: #{forward.1} parent=39 // pred_check_branch
          %300 = sbr.rel (%p298) target = $region56
        $region55: #{forward.1} parent=39 // pred_region
          %302 = dma.done [#allocation14], 64
        $region56: #{forward.1} parent=39 // pred_fallthru
          _
        %p303 = pneg %p43
        %p304 = pneg %p40
        %s305 = sand.u32 %s56, 1
        %s306 = scalar_lea.sflag [#allocation9], %s305
        %s307 = sand.u32 %s56, 1
        %s308 = smul.addr %s307, 128
        %s309 = scalar_lea.vmem [#allocation8], %s308
        %p310 = pneg %p69
        %p311 = pneg %p66
        %s312 = sand.u32 %s27, 1
        %s313 = scalar_lea.sflag [#allocation11], %s312
        %s314 = sand.u32 %s82, 1
        %s315 = smul.addr %s314, 8
        %s316 = scalar_lea.vmem [#allocation10], %s315
        %p317 = pneg %p95
        %p318 = pneg %p92
        %s319 = sand.u32 %s27, 1
        %s320 = scalar_lea.sflag [#allocation11], %s319
        %s321 = sand.u32 %s108, 1
        %s322 = smul.addr %s321, 2048
        %s323 = scalar_lea.vmem [#allocation12], %s322
        %p324 = pneg %p121
        %p325 = pneg %p118
        %p326 = pneg %p142
        %p327 = pneg %p139
        %p328 = pneg %p163
        %p329 = pneg %p160
        %s330 = smul.u32 8, %s27
        %s331 = smul.u32 8, %s27
        %s332 = smul.u32 128, %s27
        %p334 = scmp.eq.s32.totalorder %s27, 0
        // Predicated region
        $region57: #{forward.1} parent=39 // pred_check
          %p335 = pneg %p334
        $region58: #{forward.1} parent=39 // pred_check_branch
          %337 = sbr.rel (%p335) target = $region60
        $region59: #{forward.1} parent=39 // pred_region
          %338 = vst [vmem:[#allocation2] sm:$0xff] 0.0
          // Predicated region
          $region61: #{forward.1} parent=59 // pred_check
            _
          $region62: #{forward.1} parent=59 // pred_check_branch
            %340 = sbr.rel target = $region64
          $region63: #{forward.1} parent=59 // pred_region
            %341 = sst [smem:[#allocation17]] [#allocation16]
            %342 = sst [smem:[#allocation18]] [#allocation15]
          $region64: #{forward.1} parent=59 // pred_fallthru
            _
          %344 = shalt.err (0)
          %s346 = sshll.u32 %s5, 4
          %s347 = int_to_ptr.hbm [resolvable:$true] %s346
          %s348 = sshll.u32 [#allocation3], 4
          %s349 = int_to_ptr.vmem [resolvable:$true] %s348
          %351 = dma.hbm_to_vmem [thread:$0]  %s347, 8192, %s349, [#allocation7]
          %s352 = scalar_lea.sflag [#allocation7], 1
          // Predicated region
          $region65: #{forward.1} parent=59 // pred_check
            _
          $region66: #{forward.1} parent=59 // pred_check_branch
            %354 = sbr.rel target = $region68
          $region67: #{forward.1} parent=59 // pred_region
            %355 = sst [smem:[#allocation17]] [#allocation20]
            %356 = sst [smem:[#allocation18]] [#allocation19]
          $region68: #{forward.1} parent=59 // pred_fallthru
            _
          %358 = shalt.err (0)
          %s360 = sshll.u32 %s6, 4
          %s361 = int_to_ptr.hbm [resolvable:$true] %s360
          %s362 = sshll.u32 [#allocation4], 4
          %s363 = int_to_ptr.vmem [resolvable:$true] %s362
          %365 = dma.hbm_to_vmem [thread:$0]  %s361, 32, %s363, %s352
          %s366 = scalar_lea.sflag [#allocation7], 2
          // Predicated region
          $region69: #{forward.1} parent=59 // pred_check
            _
          $region70: #{forward.1} parent=59 // pred_check_branch
            %368 = sbr.rel target = $region72
          $region71: #{forward.1} parent=59 // pred_region
            %369 = sst [smem:[#allocation17]] [#allocation22]
            %370 = sst [smem:[#allocation18]] [#allocation21]
          $region72: #{forward.1} parent=59 // pred_fallthru
            _
          %372 = shalt.err (0)
          %s374 = sshll.u32 %s7, 4
          %s375 = int_to_ptr.hbm [resolvable:$true] %s374
          %s376 = sshll.u32 [#allocation5], 4
          %s377 = int_to_ptr.vmem [resolvable:$true] %s376
          %379 = dma.hbm_to_vmem [thread:$0]  %s375, 2048, %s377, %s366
          %s380 = scalar_lea.sflag [#allocation7], 3
          // Predicated region
          $region73: #{forward.1} parent=59 // pred_check
            _
          $region74: #{forward.1} parent=59 // pred_check_branch
            %382 = sbr.rel target = $region76
          $region75: #{forward.1} parent=59 // pred_region
            %383 = sst [smem:[#allocation17]] [#allocation24]
            %384 = sst [smem:[#allocation18]] [#allocation23]
          $region76: #{forward.1} parent=59 // pred_fallthru
            _
          %386 = shalt.err (0)
          %s388 = sshll.u32 %s8, 4
          %s389 = int_to_ptr.hbm [resolvable:$true] %s388
          %s390 = sshll.u32 [#allocation6], 4
          %s391 = int_to_ptr.vmem [resolvable:$true] %s390
          %393 = dma.hbm_to_vmem [thread:$0]  %s389, 16, %s391, %s380
        $region60: #{forward.1} parent=39 // pred_fallthru
          _
        %v394 = vld [vmem:[%s0] sm:$0xf]
        %v395 = vld [vmem:[%s0 + $0x4] sm:$0xf]
        %v396 = vld [vmem:[%s0 + $0x8] sm:$0xf]
        %v397 = vld [vmem:[%s0 + $0xc] sm:$0xf]
        %v398 = vld [vmem:[%s0 + $0x10] sm:$0xf]
        %v399 = vld [vmem:[%s0 + $0x14] sm:$0xf]
        %v400 = vld [vmem:[%s0 + $0x18] sm:$0xf]
        %v401 = vld [vmem:[%s0 + $0x1c] sm:$0xf]
        %v402 = vld [vmem:[%s0 + $0x20] sm:$0xf]
        %v403 = vld [vmem:[%s0 + $0x24] sm:$0xf]
        %v404 = vld [vmem:[%s0 + $0x28] sm:$0xf]
        %v405 = vld [vmem:[%s0 + $0x2c] sm:$0xf]
        %v406 = vld [vmem:[%s0 + $0x30] sm:$0xf]
        %v407 = vld [vmem:[%s0 + $0x34] sm:$0xf]
        %v408 = vld [vmem:[%s0 + $0x38] sm:$0xf]
        %v409 = vld [vmem:[%s0 + $0x3c] sm:$0xf]
        %v410 = vld [vmem:[%s0 + $0x40] sm:$0xf]
        %v411 = vld [vmem:[%s0 + $0x44] sm:$0xf]
        %v412 = vld [vmem:[%s0 + $0x48] sm:$0xf]
        %v413 = vld [vmem:[%s0 + $0x4c] sm:$0xf]
        %v414 = vld [vmem:[%s0 + $0x50] sm:$0xf]
        %v415 = vld [vmem:[%s0 + $0x54] sm:$0xf]
        %v416 = vld [vmem:[%s0 + $0x58] sm:$0xf]
        %v417 = vld [vmem:[%s0 + $0x5c] sm:$0xf]
        %v418 = vld [vmem:[%s0 + $0x60] sm:$0xf]
        %v419 = vld [vmem:[%s0 + $0x64] sm:$0xf]
        %v420 = vld [vmem:[%s0 + $0x68] sm:$0xf]
        %v421 = vld [vmem:[%s0 + $0x6c] sm:$0xf]
        %v422 = vld [vmem:[%s0 + $0x70] sm:$0xf]
        %v423 = vld [vmem:[%s0 + $0x74] sm:$0xf]
        %v424 = vld [vmem:[%s0 + $0x78] sm:$0xf]
        %v425 = vld [vmem:[%s0 + $0x7c] sm:$0xf]
        %v426 = vld [vmem:[%s0 + $0x80] sm:$0xf]
        %v427 = vld [vmem:[%s0 + $0x84] sm:$0xf]
        %v428 = vld [vmem:[%s0 + $0x88] sm:$0xf]
        %v429 = vld [vmem:[%s0 + $0x8c] sm:$0xf]
        %v430 = vld [vmem:[%s0 + $0x90] sm:$0xf]
        %v431 = vld [vmem:[%s0 + $0x94] sm:$0xf]
        %v432 = vld [vmem:[%s0 + $0x98] sm:$0xf]
        %v433 = vld [vmem:[%s0 + $0x9c] sm:$0xf]
        %v434 = vld [vmem:[%s0 + $0xa0] sm:$0xf]
        %v435 = vld [vmem:[%s0 + $0xa4] sm:$0xf]
        %v436 = vld [vmem:[%s0 + $0xa8] sm:$0xf]
        %v437 = vld [vmem:[%s0 + $0xac] sm:$0xf]
        %v438 = vld [vmem:[%s0 + $0xb0] sm:$0xf]
        %v439 = vld [vmem:[%s0 + $0xb4] sm:$0xf]
        %v440 = vld [vmem:[%s0 + $0xb8] sm:$0xf]
        %v441 = vld [vmem:[%s0 + $0xbc] sm:$0xf]
        %v442 = vld [vmem:[%s0 + $0xc0] sm:$0xf]
        %v443 = vld [vmem:[%s0 + $0xc4] sm:$0xf]
        %v444 = vld [vmem:[%s0 + $0xc8] sm:$0xf]
        %v445 = vld [vmem:[%s0 + $0xcc] sm:$0xf]
        %v446 = vld [vmem:[%s0 + $0xd0] sm:$0xf]
        %v447 = vld [vmem:[%s0 + $0xd4] sm:$0xf]
        %v448 = vld [vmem:[%s0 + $0xd8] sm:$0xf]
        %v449 = vld [vmem:[%s0 + $0xdc] sm:$0xf]
        %v450 = vld [vmem:[%s0 + $0xe0] sm:$0xf]
        %v451 = vld [vmem:[%s0 + $0xe4] sm:$0xf]
        %v452 = vld [vmem:[%s0 + $0xe8] sm:$0xf]
        %v453 = vld [vmem:[%s0 + $0xec] sm:$0xf]
        %v454 = vld [vmem:[%s0 + $0xf0] sm:$0xf]
        %v455 = vld [vmem:[%s0 + $0xf4] sm:$0xf]
        %v456 = vld [vmem:[%s0 + $0xf8] sm:$0xf]
        %v457 = vld [vmem:[%s0 + $0xfc] sm:$0xf]
        %v458 = vld [vmem:[%s272] sm:$0xff]
        %v459 = vld [vmem:[%s272 + $0x8] sm:$0xff]
        %v460 = vld [vmem:[%s272 + $0x10] sm:$0xff]
        %v461 = vld [vmem:[%s272 + $0x18] sm:$0xff]
        %v462 = vld [vmem:[%s272 + $0x20] sm:$0xff]
        %v463 = vld [vmem:[%s272 + $0x28] sm:$0xff]
        %v464 = vld [vmem:[%s272 + $0x30] sm:$0xff]
        %v465 = vld [vmem:[%s272 + $0x38] sm:$0xff]
        %v466 = vld [vmem:[%s272 + $0x40] sm:$0xff]
        %v467 = vld [vmem:[%s272 + $0x48] sm:$0xff]
        %v468 = vld [vmem:[%s272 + $0x50] sm:$0xff]
        %v469 = vld [vmem:[%s272 + $0x58] sm:$0xff]
        %v470 = vld [vmem:[%s272 + $0x60] sm:$0xff]
        %v471 = vld [vmem:[%s272 + $0x68] sm:$0xff]
        %v472 = vld [vmem:[%s272 + $0x70] sm:$0xff]
        %v473 = vld [vmem:[%s272 + $0x78] sm:$0xff]
        %v474 = vld [vmem:[%s282] sm:$0xff]
        %v476 = vperm.slane %v474, 0
        %v477 = vperm.slane %v474, 1
        %v478 = vperm.slane %v474, 2
        %v479 = vperm.slane %v474, 3
        %v480 = vperm.slane %v474, 4
        %v481 = vperm.slane %v474, 5
        %v482 = vperm.slane %v474, 6
        %v483 = vperm.slane %v474, 7
        %v556 = vunpack.c.l.b16 %v394
        %v557 = vunpack.c.l.b16 %v395
        %v558 = vunpack.c.l.b16 %v396
        %v559 = vunpack.c.l.b16 %v397
        %v560 = vunpack.c.l.b16 %v398
        %v561 = vunpack.c.l.b16 %v399
        %v562 = vunpack.c.l.b16 %v400
        %v563 = vunpack.c.l.b16 %v401
        %v564 = vunpack.c.l.b16 %v402
        %v565 = vunpack.c.l.b16 %v403
        %v566 = vunpack.c.l.b16 %v404
        %v567 = vunpack.c.l.b16 %v405
        %v568 = vunpack.c.l.b16 %v406
        %v569 = vunpack.c.l.b16 %v407
        %v570 = vunpack.c.l.b16 %v408
        %v571 = vunpack.c.l.b16 %v409
        %v572 = vunpack.c.l.b16 %v410
        %v573 = vunpack.c.l.b16 %v411
        %v574 = vunpack.c.l.b16 %v412
        %v575 = vunpack.c.l.b16 %v413
        %v576 = vunpack.c.l.b16 %v414
        %v577 = vunpack.c.l.b16 %v415
        %v578 = vunpack.c.l.b16 %v416
        %v579 = vunpack.c.l.b16 %v417
        %v580 = vunpack.c.l.b16 %v418
        %v581 = vunpack.c.l.b16 %v419
        %v582 = vunpack.c.l.b16 %v420
        %v583 = vunpack.c.l.b16 %v421
        %v584 = vunpack.c.l.b16 %v422
        %v585 = vunpack.c.l.b16 %v423
        %v586 = vunpack.c.l.b16 %v424
        %v587 = vunpack.c.l.b16 %v425
        %v588 = vunpack.c.l.b16 %v426
        %v589 = vunpack.c.l.b16 %v427
        %v590 = vunpack.c.l.b16 %v428
        %v591 = vunpack.c.l.b16 %v429
        %v592 = vunpack.c.l.b16 %v430
        %v593 = vunpack.c.l.b16 %v431
        %v594 = vunpack.c.l.b16 %v432
        %v595 = vunpack.c.l.b16 %v433
        %v596 = vunpack.c.l.b16 %v434
        %v597 = vunpack.c.l.b16 %v435
        %v598 = vunpack.c.l.b16 %v436
        %v599 = vunpack.c.l.b16 %v437
        %v600 = vunpack.c.l.b16 %v438
        %v601 = vunpack.c.l.b16 %v439
        %v602 = vunpack.c.l.b16 %v440
        %v603 = vunpack.c.l.b16 %v441
        %v604 = vunpack.c.l.b16 %v442
        %v605 = vunpack.c.l.b16 %v443
        %v606 = vunpack.c.l.b16 %v444
        %v607 = vunpack.c.l.b16 %v445
        %v608 = vunpack.c.l.b16 %v446
        %v609 = vunpack.c.l.b16 %v447
        %v610 = vunpack.c.l.b16 %v448
        %v611 = vunpack.c.l.b16 %v449
        %v612 = vunpack.c.l.b16 %v450
        %v613 = vunpack.c.l.b16 %v451
        %v614 = vunpack.c.l.b16 %v452
        %v615 = vunpack.c.l.b16 %v453
        %v616 = vunpack.c.l.b16 %v454
        %v617 = vunpack.c.l.b16 %v455
        %v618 = vunpack.c.l.b16 %v456
        %v619 = vunpack.c.l.b16 %v457
        %v620 = vpack.c.b16 %v557, %v556
        %v621 = vpack.c.b16 %v559, %v558
        %v622 = vpack.c.b16 %v561, %v560
        %v623 = vpack.c.b16 %v563, %v562
        %v624 = vpack.c.b16 %v565, %v564
        %v625 = vpack.c.b16 %v567, %v566
        %v626 = vpack.c.b16 %v569, %v568
        %v627 = vpack.c.b16 %v571, %v570
        %v628 = vpack.c.b16 %v573, %v572
        %v629 = vpack.c.b16 %v575, %v574
        %v630 = vpack.c.b16 %v577, %v576
        %v631 = vpack.c.b16 %v579, %v578
        %v632 = vpack.c.b16 %v581, %v580
        %v633 = vpack.c.b16 %v583, %v582
        %v634 = vpack.c.b16 %v585, %v584
        %v635 = vpack.c.b16 %v587, %v586
        %v636 = vpack.c.b16 %v589, %v588
        %v637 = vpack.c.b16 %v591, %v590
        %v638 = vpack.c.b16 %v593, %v592
        %v639 = vpack.c.b16 %v595, %v594
        %v640 = vpack.c.b16 %v597, %v596
        %v641 = vpack.c.b16 %v599, %v598
        %v642 = vpack.c.b16 %v601, %v600
        %v643 = vpack.c.b16 %v603, %v602
        %v644 = vpack.c.b16 %v605, %v604
        %v645 = vpack.c.b16 %v607, %v606
        %v646 = vpack.c.b16 %v609, %v608
        %v647 = vpack.c.b16 %v611, %v610
        %v648 = vpack.c.b16 %v613, %v612
        %v649 = vpack.c.b16 %v615, %v614
        %v650 = vpack.c.b16 %v617, %v616
        %v651 = vpack.c.b16 %v619, %v618
        %v668 = vunpack.c.l.b16 %v458
        %v669 = vunpack.c.h.b16 %v458
        %v670 = vunpack.c.l.b16 %v459
        %v671 = vunpack.c.h.b16 %v459
        %v672 = vunpack.c.l.b16 %v460
        %v673 = vunpack.c.h.b16 %v460
        %v674 = vunpack.c.l.b16 %v461
        %v675 = vunpack.c.h.b16 %v461
        %v676 = vunpack.c.l.b16 %v462
        %v677 = vunpack.c.h.b16 %v462
        %v678 = vunpack.c.l.b16 %v463
        %v679 = vunpack.c.h.b16 %v463
        %v680 = vunpack.c.l.b16 %v464
        %v681 = vunpack.c.h.b16 %v464
        %v682 = vunpack.c.l.b16 %v465
        %v683 = vunpack.c.h.b16 %v465
        %v684 = vunpack.c.l.b16 %v466
        %v685 = vunpack.c.h.b16 %v466
        %v686 = vunpack.c.l.b16 %v467
        %v687 = vunpack.c.h.b16 %v467
        %v688 = vunpack.c.l.b16 %v468
        %v689 = vunpack.c.h.b16 %v468
        %v690 = vunpack.c.l.b16 %v469
        %v691 = vunpack.c.h.b16 %v469
        %v692 = vunpack.c.l.b16 %v470
        %v693 = vunpack.c.h.b16 %v470
        %v694 = vunpack.c.l.b16 %v471
        %v695 = vunpack.c.h.b16 %v471
        %v696 = vunpack.c.l.b16 %v472
        %v697 = vunpack.c.h.b16 %v472
        %v698 = vunpack.c.l.b16 %v473
        %v699 = vunpack.c.h.b16 %v473
        %v700 = vpack.c.b16 %v676, %v668
        %v701 = vpack.c.b16 %v677, %v669
        %v702 = vpack.c.b16 %v678, %v670
        %v703 = vpack.c.b16 %v679, %v671
        %v704 = vpack.c.b16 %v680, %v672
        %v705 = vpack.c.b16 %v681, %v673
        %v706 = vpack.c.b16 %v682, %v674
        %v707 = vpack.c.b16 %v683, %v675
        %v708 = vpack.c.b16 %v692, %v684
        %v709 = vpack.c.b16 %v693, %v685
        %v710 = vpack.c.b16 %v694, %v686
        %v711 = vpack.c.b16 %v695, %v687
        %v712 = vpack.c.b16 %v696, %v688
        %v713 = vpack.c.b16 %v697, %v689
        %v714 = vpack.c.b16 %v698, %v690
        %v715 = vpack.c.b16 %v699, %v691
        %vm732 = vcmask 261120
        %v734 = vsel %vm732, %v620, 0
        %v737 = vsel %vm732, %v621, 0
        %v740 = vsel %vm732, %v622, 0
        %v743 = vsel %vm732, %v623, 0
        %v746 = vsel %vm732, %v624, 0
        %v749 = vsel %vm732, %v625, 0
        %v752 = vsel %vm732, %v626, 0
        %v755 = vsel %vm732, %v627, 0
        %v758 = vsel %vm732, %v628, 0
        %v761 = vsel %vm732, %v629, 0
        %v764 = vsel %vm732, %v630, 0
        %v767 = vsel %vm732, %v631, 0
        %v770 = vsel %vm732, %v632, 0
        %v773 = vsel %vm732, %v633, 0
        %v776 = vsel %vm732, %v634, 0
        %v779 = vsel %vm732, %v635, 0
        %v782 = vsel %vm732, %v636, 0
        %v785 = vsel %vm732, %v637, 0
        %v788 = vsel %vm732, %v638, 0
        %v791 = vsel %vm732, %v639, 0
        %v794 = vsel %vm732, %v640, 0
        %v797 = vsel %vm732, %v641, 0
        %v800 = vsel %vm732, %v642, 0
        %v803 = vsel %vm732, %v643, 0
        %v806 = vsel %vm732, %v644, 0
        %v809 = vsel %vm732, %v645, 0
        %v812 = vsel %vm732, %v646, 0
        %v815 = vsel %vm732, %v647, 0
        %v818 = vsel %vm732, %v648, 0
        %v821 = vsel %vm732, %v649, 0
        %v824 = vsel %vm732, %v650, 0
        %v827 = vsel %vm732, %v651, 0
        %829 = vmatpush.bf16.msra.mxu0 0
        %830 = vmatpush.bf16.msra.mxu0 0
        %831 = vmatpush.bf16.msra.mxu0 0
        %832 = vmatpush.bf16.msra.mxu0 0
        %833 = vmatpush.bf16.msra.mxu0 0
        %834 = vmatpush.bf16.msra.mxu0 0
        %835 = vmatpush.bf16.msra.mxu0 %v708
        %836 = vmatpush.bf16.msra.mxu0 %v700
        %837 = vmatmul.bf16.gmra.mxu0 %v734
        %v838 = vpop.f32.mrf.mxu0
        %v839 = vadd.f32 %v476, %v838
        %v840 = vpop.f32.mrf.mxu0
        %v841 = vadd.f32 %v476, %v840
        %842 = vmatmul.bf16.gmra.mxu0 %v737
        %v843 = vpop.f32.mrf.mxu0
        %v844 = vadd.f32 %v476, %v843
        %v845 = vpop.f32.mrf.mxu0
        %v846 = vadd.f32 %v476, %v845
        %847 = vmatmul.bf16.gmra.mxu0 %v740
        %v848 = vpop.f32.mrf.mxu0
        %v849 = vadd.f32 %v476, %v848
        %v850 = vpop.f32.mrf.mxu0
        %v851 = vadd.f32 %v476, %v850
        %852 = vmatmul.bf16.gmra.mxu0 %v743
        %v853 = vpop.f32.mrf.mxu0
        %v854 = vadd.f32 %v476, %v853
        %v855 = vpop.f32.mrf.mxu0
        %v856 = vadd.f32 %v476, %v855
        %857 = vmatmul.bf16.gmra.mxu0 %v746
        %v858 = vpop.f32.mrf.mxu0
        %v859 = vadd.f32 %v476, %v858
        %v860 = vpop.f32.mrf.mxu0
        %v861 = vadd.f32 %v476, %v860
        %862 = vmatmul.bf16.gmra.mxu0 %v749
        %v863 = vpop.f32.mrf.mxu0
        %v864 = vadd.f32 %v476, %v863
        %v865 = vpop.f32.mrf.mxu0
        %v866 = vadd.f32 %v476, %v865
        %867 = vmatmul.bf16.gmra.mxu0 %v752
        %v868 = vpop.f32.mrf.mxu0
        %v869 = vadd.f32 %v476, %v868
        %v870 = vpop.f32.mrf.mxu0
        %v871 = vadd.f32 %v476, %v870
        %872 = vmatmul.bf16.gmra.mxu0 %v755
        %v873 = vpop.f32.mrf.mxu0
        %v874 = vadd.f32 %v476, %v873
        %v875 = vpop.f32.mrf.mxu0
        %v876 = vadd.f32 %v476, %v875
        %877 = vmatmul.bf16.gmra.mxu0 %v758
        %v878 = vpop.f32.mrf.mxu0
        %v879 = vadd.f32 %v476, %v878
        %v880 = vpop.f32.mrf.mxu0
        %v881 = vadd.f32 %v476, %v880
        %882 = vmatmul.bf16.gmra.mxu0 %v761
        %v883 = vpop.f32.mrf.mxu0
        %v884 = vadd.f32 %v476, %v883
        %v885 = vpop.f32.mrf.mxu0
        %v886 = vadd.f32 %v476, %v885
        %887 = vmatmul.bf16.gmra.mxu0 %v764
        %v888 = vpop.f32.mrf.mxu0
        %v889 = vadd.f32 %v476, %v888
        %v890 = vpop.f32.mrf.mxu0
        %v891 = vadd.f32 %v476, %v890
        %892 = vmatmul.bf16.gmra.mxu0 %v767
        %v893 = vpop.f32.mrf.mxu0
        %v894 = vadd.f32 %v476, %v893
        %v895 = vpop.f32.mrf.mxu0
        %v896 = vadd.f32 %v476, %v895
        %897 = vmatmul.bf16.gmra.mxu0 %v770
        %v898 = vpop.f32.mrf.mxu0
        %v899 = vadd.f32 %v476, %v898
        %v900 = vpop.f32.mrf.mxu0
        %v901 = vadd.f32 %v476, %v900
        %902 = vmatmul.bf16.gmra.mxu0 %v773
        %v903 = vpop.f32.mrf.mxu0
        %v904 = vadd.f32 %v476, %v903
        %v905 = vpop.f32.mrf.mxu0
        %v906 = vadd.f32 %v476, %v905
        %907 = vmatmul.bf16.gmra.mxu0 %v776
        %v908 = vpop.f32.mrf.mxu0
        %v909 = vadd.f32 %v476, %v908
        %v910 = vpop.f32.mrf.mxu0
        %v911 = vadd.f32 %v476, %v910
        %912 = vmatmul.bf16.gmra.mxu0 %v779
        %v913 = vpop.f32.mrf.mxu0
        %v914 = vadd.f32 %v476, %v913
        %v915 = vpop.f32.mrf.mxu0
        %v916 = vadd.f32 %v476, %v915
        %917 = vmatmul.bf16.gmra.mxu0 %v782
        %v918 = vpop.f32.mrf.mxu0
        %v919 = vadd.f32 %v476, %v918
        %v920 = vpop.f32.mrf.mxu0
        %v921 = vadd.f32 %v476, %v920
        %922 = vmatmul.bf16.gmra.mxu0 %v785
        %v923 = vpop.f32.mrf.mxu0
        %v924 = vadd.f32 %v476, %v923
        %v925 = vpop.f32.mrf.mxu0
        %v926 = vadd.f32 %v476, %v925
        %927 = vmatmul.bf16.gmra.mxu0 %v788
        %v928 = vpop.f32.mrf.mxu0
        %v929 = vadd.f32 %v476, %v928
        %v930 = vpop.f32.mrf.mxu0
        %v931 = vadd.f32 %v476, %v930
        %932 = vmatmul.bf16.gmra.mxu0 %v791
        %v933 = vpop.f32.mrf.mxu0
        %v934 = vadd.f32 %v476, %v933
        %v935 = vpop.f32.mrf.mxu0
        %v936 = vadd.f32 %v476, %v935
        %937 = vmatmul.bf16.gmra.mxu0 %v794
        %v938 = vpop.f32.mrf.mxu0
        %v939 = vadd.f32 %v476, %v938
        %v940 = vpop.f32.mrf.mxu0
        %v941 = vadd.f32 %v476, %v940
        %942 = vmatmul.bf16.gmra.mxu0 %v797
        %v943 = vpop.f32.mrf.mxu0
        %v944 = vadd.f32 %v476, %v943
        %v945 = vpop.f32.mrf.mxu0
        %v946 = vadd.f32 %v476, %v945
        %947 = vmatmul.bf16.gmra.mxu0 %v800
        %v948 = vpop.f32.mrf.mxu0
        %v949 = vadd.f32 %v476, %v948
        %v950 = vpop.f32.mrf.mxu0
        %v951 = vadd.f32 %v476, %v950
        %952 = vmatmul.bf16.gmra.mxu0 %v803
        %v953 = vpop.f32.mrf.mxu0
        %v954 = vadd.f32 %v476, %v953
        %v955 = vpop.f32.mrf.mxu0
        %v956 = vadd.f32 %v476, %v955
        %957 = vmatmul.bf16.gmra.mxu0 %v806
        %v958 = vpop.f32.mrf.mxu0
        %v959 = vadd.f32 %v476, %v958
        %v960 = vpop.f32.mrf.mxu0
        %v961 = vadd.f32 %v476, %v960
        %962 = vmatmul.bf16.gmra.mxu0 %v809
        %v963 = vpop.f32.mrf.mxu0
        %v964 = vadd.f32 %v476, %v963
        %v965 = vpop.f32.mrf.mxu0
        %v966 = vadd.f32 %v476, %v965
        %967 = vmatmul.bf16.gmra.mxu0 %v812
        %v968 = vpop.f32.mrf.mxu0
        %v969 = vadd.f32 %v476, %v968
        %v970 = vpop.f32.mrf.mxu0
        %v971 = vadd.f32 %v476, %v970
        %972 = vmatmul.bf16.gmra.mxu0 %v815
        %v973 = vpop.f32.mrf.mxu0
        %v974 = vadd.f32 %v476, %v973
        %v975 = vpop.f32.mrf.mxu0
        %v976 = vadd.f32 %v476, %v975
        %977 = vmatmul.bf16.gmra.mxu0 %v818
        %v978 = vpop.f32.mrf.mxu0
        %v979 = vadd.f32 %v476, %v978
        %v980 = vpop.f32.mrf.mxu0
        %v981 = vadd.f32 %v476, %v980
        %982 = vmatmul.bf16.gmra.mxu0 %v821
        %v983 = vpop.f32.mrf.mxu0
        %v984 = vadd.f32 %v476, %v983
        %v985 = vpop.f32.mrf.mxu0
        %v986 = vadd.f32 %v476, %v985
        %987 = vmatmul.bf16.gmra.mxu0 %v824
        %v988 = vpop.f32.mrf.mxu0
        %v989 = vadd.f32 %v476, %v988
        %v990 = vpop.f32.mrf.mxu0
        %v991 = vadd.f32 %v476, %v990
        %992 = vmatmul.bf16.gmra.mxu0 %v827
        %v993 = vpop.f32.mrf.mxu0
        %v994 = vadd.f32 %v476, %v993
        %v995 = vpop.f32.mrf.mxu0
        %v996 = vadd.f32 %v476, %v995
        %997 = vdwg.mxu0
        %998 = vmatpush.bf16.msra.mxu0 0
        %999 = vmatpush.bf16.msra.mxu0 0
        %1000 = vmatpush.bf16.msra.mxu0 0
        %1001 = vmatpush.bf16.msra.mxu0 0
        %1002 = vmatpush.bf16.msra.mxu0 0
        %1003 = vmatpush.bf16.msra.mxu0 0
        %1004 = vmatpush.bf16.msra.mxu0 %v709
        %1005 = vmatpush.bf16.msra.mxu0 %v701
        %1006 = vmatmul.bf16.gmra.mxu0 %v734
        %v1007 = vpop.f32.mrf.mxu0
        %v1008 = vadd.f32 %v477, %v1007
        %v1009 = vpop.f32.mrf.mxu0
        %v1010 = vadd.f32 %v477, %v1009
        %1011 = vmatmul.bf16.gmra.mxu0 %v737
        %v1012 = vpop.f32.mrf.mxu0
        %v1013 = vadd.f32 %v477, %v1012
        %v1014 = vpop.f32.mrf.mxu0
        %v1015 = vadd.f32 %v477, %v1014
        %1016 = vmatmul.bf16.gmra.mxu0 %v740
        %v1017 = vpop.f32.mrf.mxu0
        %v1018 = vadd.f32 %v477, %v1017
        %v1019 = vpop.f32.mrf.mxu0
        %v1020 = vadd.f32 %v477, %v1019
        %1021 = vmatmul.bf16.gmra.mxu0 %v743
        %v1022 = vpop.f32.mrf.mxu0
        %v1023 = vadd.f32 %v477, %v1022
        %v1024 = vpop.f32.mrf.mxu0
        %v1025 = vadd.f32 %v477, %v1024
        %1026 = vmatmul.bf16.gmra.mxu0 %v746
        %v1027 = vpop.f32.mrf.mxu0
        %v1028 = vadd.f32 %v477, %v1027
        %v1029 = vpop.f32.mrf.mxu0
        %v1030 = vadd.f32 %v477, %v1029
        %1031 = vmatmul.bf16.gmra.mxu0 %v749
        %v1032 = vpop.f32.mrf.mxu0
        %v1033 = vadd.f32 %v477, %v1032
        %v1034 = vpop.f32.mrf.mxu0
        %v1035 = vadd.f32 %v477, %v1034
        %1036 = vmatmul.bf16.gmra.mxu0 %v752
        %v1037 = vpop.f32.mrf.mxu0
        %v1038 = vadd.f32 %v477, %v1037
        %v1039 = vpop.f32.mrf.mxu0
        %v1040 = vadd.f32 %v477, %v1039
        %1041 = vmatmul.bf16.gmra.mxu0 %v755
        %v1042 = vpop.f32.mrf.mxu0
        %v1043 = vadd.f32 %v477, %v1042
        %v1044 = vpop.f32.mrf.mxu0
        %v1045 = vadd.f32 %v477, %v1044
        %1046 = vmatmul.bf16.gmra.mxu0 %v758
        %v1047 = vpop.f32.mrf.mxu0
        %v1048 = vadd.f32 %v477, %v1047
        %v1049 = vpop.f32.mrf.mxu0
        %v1050 = vadd.f32 %v477, %v1049
        %1051 = vmatmul.bf16.gmra.mxu0 %v761
        %v1052 = vpop.f32.mrf.mxu0
        %v1053 = vadd.f32 %v477, %v1052
        %v1054 = vpop.f32.mrf.mxu0
        %v1055 = vadd.f32 %v477, %v1054
        %1056 = vmatmul.bf16.gmra.mxu0 %v764
        %v1057 = vpop.f32.mrf.mxu0
        %v1058 = vadd.f32 %v477, %v1057
        %v1059 = vpop.f32.mrf.mxu0
        %v1060 = vadd.f32 %v477, %v1059
        %1061 = vmatmul.bf16.gmra.mxu0 %v767
        %v1062 = vpop.f32.mrf.mxu0
        %v1063 = vadd.f32 %v477, %v1062
        %v1064 = vpop.f32.mrf.mxu0
        %v1065 = vadd.f32 %v477, %v1064
        %1066 = vmatmul.bf16.gmra.mxu0 %v770
        %v1067 = vpop.f32.mrf.mxu0
        %v1068 = vadd.f32 %v477, %v1067
        %v1069 = vpop.f32.mrf.mxu0
        %v1070 = vadd.f32 %v477, %v1069
        %1071 = vmatmul.bf16.gmra.mxu0 %v773
        %v1072 = vpop.f32.mrf.mxu0
        %v1073 = vadd.f32 %v477, %v1072
        %v1074 = vpop.f32.mrf.mxu0
        %v1075 = vadd.f32 %v477, %v1074
        %1076 = vmatmul.bf16.gmra.mxu0 %v776
        %v1077 = vpop.f32.mrf.mxu0
        %v1078 = vadd.f32 %v477, %v1077
        %v1079 = vpop.f32.mrf.mxu0
        %v1080 = vadd.f32 %v477, %v1079
        %1081 = vmatmul.bf16.gmra.mxu0 %v779
        %v1082 = vpop.f32.mrf.mxu0
        %v1083 = vadd.f32 %v477, %v1082
        %v1084 = vpop.f32.mrf.mxu0
        %v1085 = vadd.f32 %v477, %v1084
        %1086 = vmatmul.bf16.gmra.mxu0 %v782
        %v1087 = vpop.f32.mrf.mxu0
        %v1088 = vadd.f32 %v477, %v1087
        %v1089 = vpop.f32.mrf.mxu0
        %v1090 = vadd.f32 %v477, %v1089
        %1091 = vmatmul.bf16.gmra.mxu0 %v785
        %v1092 = vpop.f32.mrf.mxu0
        %v1093 = vadd.f32 %v477, %v1092
        %v1094 = vpop.f32.mrf.mxu0
        %v1095 = vadd.f32 %v477, %v1094
        %1096 = vmatmul.bf16.gmra.mxu0 %v788
        %v1097 = vpop.f32.mrf.mxu0
        %v1098 = vadd.f32 %v477, %v1097
        %v1099 = vpop.f32.mrf.mxu0
        %v1100 = vadd.f32 %v477, %v1099
        %1101 = vmatmul.bf16.gmra.mxu0 %v791
        %v1102 = vpop.f32.mrf.mxu0
        %v1103 = vadd.f32 %v477, %v1102
        %v1104 = vpop.f32.mrf.mxu0
        %v1105 = vadd.f32 %v477, %v1104
        %1106 = vmatmul.bf16.gmra.mxu0 %v794
        %v1107 = vpop.f32.mrf.mxu0
        %v1108 = vadd.f32 %v477, %v1107
        %v1109 = vpop.f32.mrf.mxu0
        %v1110 = vadd.f32 %v477, %v1109
        %1111 = vmatmul.bf16.gmra.mxu0 %v797
        %v1112 = vpop.f32.mrf.mxu0
        %v1113 = vadd.f32 %v477, %v1112
        %v1114 = vpop.f32.mrf.mxu0
        %v1115 = vadd.f32 %v477, %v1114
        %1116 = vmatmul.bf16.gmra.mxu0 %v800
        %v1117 = vpop.f32.mrf.mxu0
        %v1118 = vadd.f32 %v477, %v1117
        %v1119 = vpop.f32.mrf.mxu0
        %v1120 = vadd.f32 %v477, %v1119
        %1121 = vmatmul.bf16.gmra.mxu0 %v803
        %v1122 = vpop.f32.mrf.mxu0
        %v1123 = vadd.f32 %v477, %v1122
        %v1124 = vpop.f32.mrf.mxu0
        %v1125 = vadd.f32 %v477, %v1124
        %1126 = vmatmul.bf16.gmra.mxu0 %v806
        %v1127 = vpop.f32.mrf.mxu0
        %v1128 = vadd.f32 %v477, %v1127
        %v1129 = vpop.f32.mrf.mxu0
        %v1130 = vadd.f32 %v477, %v1129
        %1131 = vmatmul.bf16.gmra.mxu0 %v809
        %v1132 = vpop.f32.mrf.mxu0
        %v1133 = vadd.f32 %v477, %v1132
        %v1134 = vpop.f32.mrf.mxu0
        %v1135 = vadd.f32 %v477, %v1134
        %1136 = vmatmul.bf16.gmra.mxu0 %v812
        %v1137 = vpop.f32.mrf.mxu0
        %v1138 = vadd.f32 %v477, %v1137
        %v1139 = vpop.f32.mrf.mxu0
        %v1140 = vadd.f32 %v477, %v1139
        %1141 = vmatmul.bf16.gmra.mxu0 %v815
        %v1142 = vpop.f32.mrf.mxu0
        %v1143 = vadd.f32 %v477, %v1142
        %v1144 = vpop.f32.mrf.mxu0
        %v1145 = vadd.f32 %v477, %v1144
        %1146 = vmatmul.bf16.gmra.mxu0 %v818
        %v1147 = vpop.f32.mrf.mxu0
        %v1148 = vadd.f32 %v477, %v1147
        %v1149 = vpop.f32.mrf.mxu0
        %v1150 = vadd.f32 %v477, %v1149
        %1151 = vmatmul.bf16.gmra.mxu0 %v821
        %v1152 = vpop.f32.mrf.mxu0
        %v1153 = vadd.f32 %v477, %v1152
        %v1154 = vpop.f32.mrf.mxu0
        %v1155 = vadd.f32 %v477, %v1154
        %1156 = vmatmul.bf16.gmra.mxu0 %v824
        %v1157 = vpop.f32.mrf.mxu0
        %v1158 = vadd.f32 %v477, %v1157
        %v1159 = vpop.f32.mrf.mxu0
        %v1160 = vadd.f32 %v477, %v1159
        %1161 = vmatmul.bf16.gmra.mxu0 %v827
        %v1162 = vpop.f32.mrf.mxu0
        %v1163 = vadd.f32 %v477, %v1162
        %v1164 = vpop.f32.mrf.mxu0
        %v1165 = vadd.f32 %v477, %v1164
        %1166 = vdwg.mxu0
        %1167 = vmatpush.bf16.msra.mxu0 0
        %1168 = vmatpush.bf16.msra.mxu0 0
        %1169 = vmatpush.bf16.msra.mxu0 0
        %1170 = vmatpush.bf16.msra.mxu0 0
        %1171 = vmatpush.bf16.msra.mxu0 0
        %1172 = vmatpush.bf16.msra.mxu0 0
        %1173 = vmatpush.bf16.msra.mxu0 %v710
        %1174 = vmatpush.bf16.msra.mxu0 %v702
        %1175 = vmatmul.bf16.gmra.mxu0 %v734
        %v1176 = vpop.f32.mrf.mxu0
        %v1177 = vadd.f32 %v478, %v1176
        %v1178 = vpop.f32.mrf.mxu0
        %v1179 = vadd.f32 %v478, %v1178
        %1180 = vmatmul.bf16.gmra.mxu0 %v737
        %v1181 = vpop.f32.mrf.mxu0
        %v1182 = vadd.f32 %v478, %v1181
        %v1183 = vpop.f32.mrf.mxu0
        %v1184 = vadd.f32 %v478, %v1183
        %1185 = vmatmul.bf16.gmra.mxu0 %v740
        %v1186 = vpop.f32.mrf.mxu0
        %v1187 = vadd.f32 %v478, %v1186
        %v1188 = vpop.f32.mrf.mxu0
        %v1189 = vadd.f32 %v478, %v1188
        %1190 = vmatmul.bf16.gmra.mxu0 %v743
        %v1191 = vpop.f32.mrf.mxu0
        %v1192 = vadd.f32 %v478, %v1191
        %v1193 = vpop.f32.mrf.mxu0
        %v1194 = vadd.f32 %v478, %v1193
        %1195 = vmatmul.bf16.gmra.mxu0 %v746
        %v1196 = vpop.f32.mrf.mxu0
        %v1197 = vadd.f32 %v478, %v1196
        %v1198 = vpop.f32.mrf.mxu0
        %v1199 = vadd.f32 %v478, %v1198
        %1200 = vmatmul.bf16.gmra.mxu0 %v749
        %v1201 = vpop.f32.mrf.mxu0
        %v1202 = vadd.f32 %v478, %v1201
        %v1203 = vpop.f32.mrf.mxu0
        %v1204 = vadd.f32 %v478, %v1203
        %1205 = vmatmul.bf16.gmra.mxu0 %v752
        %v1206 = vpop.f32.mrf.mxu0
        %v1207 = vadd.f32 %v478, %v1206
        %v1208 = vpop.f32.mrf.mxu0
        %v1209 = vadd.f32 %v478, %v1208
        %1210 = vmatmul.bf16.gmra.mxu0 %v755
        %v1211 = vpop.f32.mrf.mxu0
        %v1212 = vadd.f32 %v478, %v1211
        %v1213 = vpop.f32.mrf.mxu0
        %v1214 = vadd.f32 %v478, %v1213
        %1215 = vmatmul.bf16.gmra.mxu0 %v758
        %v1216 = vpop.f32.mrf.mxu0
        %v1217 = vadd.f32 %v478, %v1216
        %v1218 = vpop.f32.mrf.mxu0
        %v1219 = vadd.f32 %v478, %v1218
        %1220 = vmatmul.bf16.gmra.mxu0 %v761
        %v1221 = vpop.f32.mrf.mxu0
        %v1222 = vadd.f32 %v478, %v1221
        %v1223 = vpop.f32.mrf.mxu0
        %v1224 = vadd.f32 %v478, %v1223
        %1225 = vmatmul.bf16.gmra.mxu0 %v764
        %v1226 = vpop.f32.mrf.mxu0
        %v1227 = vadd.f32 %v478, %v1226
        %v1228 = vpop.f32.mrf.mxu0
        %v1229 = vadd.f32 %v478, %v1228
        %1230 = vmatmul.bf16.gmra.mxu0 %v767
        %v1231 = vpop.f32.mrf.mxu0
        %v1232 = vadd.f32 %v478, %v1231
        %v1233 = vpop.f32.mrf.mxu0
        %v1234 = vadd.f32 %v478, %v1233
        %1235 = vmatmul.bf16.gmra.mxu0 %v770
        %v1236 = vpop.f32.mrf.mxu0
        %v1237 = vadd.f32 %v478, %v1236
        %v1238 = vpop.f32.mrf.mxu0
        %v1239 = vadd.f32 %v478, %v1238
        %1240 = vmatmul.bf16.gmra.mxu0 %v773
        %v1241 = vpop.f32.mrf.mxu0
        %v1242 = vadd.f32 %v478, %v1241
        %v1243 = vpop.f32.mrf.mxu0
        %v1244 = vadd.f32 %v478, %v1243
        %1245 = vmatmul.bf16.gmra.mxu0 %v776
        %v1246 = vpop.f32.mrf.mxu0
        %v1247 = vadd.f32 %v478, %v1246
        %v1248 = vpop.f32.mrf.mxu0
        %v1249 = vadd.f32 %v478, %v1248
        %1250 = vmatmul.bf16.gmra.mxu0 %v779
        %v1251 = vpop.f32.mrf.mxu0
        %v1252 = vadd.f32 %v478, %v1251
        %v1253 = vpop.f32.mrf.mxu0
        %v1254 = vadd.f32 %v478, %v1253
        %1255 = vmatmul.bf16.gmra.mxu0 %v782
        %v1256 = vpop.f32.mrf.mxu0
        %v1257 = vadd.f32 %v478, %v1256
        %v1258 = vpop.f32.mrf.mxu0
        %v1259 = vadd.f32 %v478, %v1258
        %1260 = vmatmul.bf16.gmra.mxu0 %v785
        %v1261 = vpop.f32.mrf.mxu0
        %v1262 = vadd.f32 %v478, %v1261
        %v1263 = vpop.f32.mrf.mxu0
        %v1264 = vadd.f32 %v478, %v1263
        %1265 = vmatmul.bf16.gmra.mxu0 %v788
        %v1266 = vpop.f32.mrf.mxu0
        %v1267 = vadd.f32 %v478, %v1266
        %v1268 = vpop.f32.mrf.mxu0
        %v1269 = vadd.f32 %v478, %v1268
        %1270 = vmatmul.bf16.gmra.mxu0 %v791
        %v1271 = vpop.f32.mrf.mxu0
        %v1272 = vadd.f32 %v478, %v1271
        %v1273 = vpop.f32.mrf.mxu0
        %v1274 = vadd.f32 %v478, %v1273
        %1275 = vmatmul.bf16.gmra.mxu0 %v794
        %v1276 = vpop.f32.mrf.mxu0
        %v1277 = vadd.f32 %v478, %v1276
        %v1278 = vpop.f32.mrf.mxu0
        %v1279 = vadd.f32 %v478, %v1278
        %1280 = vmatmul.bf16.gmra.mxu0 %v797
        %v1281 = vpop.f32.mrf.mxu0
        %v1282 = vadd.f32 %v478, %v1281
        %v1283 = vpop.f32.mrf.mxu0
        %v1284 = vadd.f32 %v478, %v1283
        %1285 = vmatmul.bf16.gmra.mxu0 %v800
        %v1286 = vpop.f32.mrf.mxu0
        %v1287 = vadd.f32 %v478, %v1286
        %v1288 = vpop.f32.mrf.mxu0
        %v1289 = vadd.f32 %v478, %v1288
        %1290 = vmatmul.bf16.gmra.mxu0 %v803
        %v1291 = vpop.f32.mrf.mxu0
        %v1292 = vadd.f32 %v478, %v1291
        %v1293 = vpop.f32.mrf.mxu0
        %v1294 = vadd.f32 %v478, %v1293
        %1295 = vmatmul.bf16.gmra.mxu0 %v806
        %v1296 = vpop.f32.mrf.mxu0
        %v1297 = vadd.f32 %v478, %v1296
        %v1298 = vpop.f32.mrf.mxu0
        %v1299 = vadd.f32 %v478, %v1298
        %1300 = vmatmul.bf16.gmra.mxu0 %v809
        %v1301 = vpop.f32.mrf.mxu0
        %v1302 = vadd.f32 %v478, %v1301
        %v1303 = vpop.f32.mrf.mxu0
        %v1304 = vadd.f32 %v478, %v1303
        %1305 = vmatmul.bf16.gmra.mxu0 %v812
        %v1306 = vpop.f32.mrf.mxu0
        %v1307 = vadd.f32 %v478, %v1306
        %v1308 = vpop.f32.mrf.mxu0
        %v1309 = vadd.f32 %v478, %v1308
        %1310 = vmatmul.bf16.gmra.mxu0 %v815
        %v1311 = vpop.f32.mrf.mxu0
        %v1312 = vadd.f32 %v478, %v1311
        %v1313 = vpop.f32.mrf.mxu0
        %v1314 = vadd.f32 %v478, %v1313
        %1315 = vmatmul.bf16.gmra.mxu0 %v818
        %v1316 = vpop.f32.mrf.mxu0
        %v1317 = vadd.f32 %v478, %v1316
        %v1318 = vpop.f32.mrf.mxu0
        %v1319 = vadd.f32 %v478, %v1318
        %1320 = vmatmul.bf16.gmra.mxu0 %v821
        %v1321 = vpop.f32.mrf.mxu0
        %v1322 = vadd.f32 %v478, %v1321
        %v1323 = vpop.f32.mrf.mxu0
        %v1324 = vadd.f32 %v478, %v1323
        %1325 = vmatmul.bf16.gmra.mxu0 %v824
        %v1326 = vpop.f32.mrf.mxu0
        %v1327 = vadd.f32 %v478, %v1326
        %v1328 = vpop.f32.mrf.mxu0
        %v1329 = vadd.f32 %v478, %v1328
        %1330 = vmatmul.bf16.gmra.mxu0 %v827
        %v1331 = vpop.f32.mrf.mxu0
        %v1332 = vadd.f32 %v478, %v1331
        %v1333 = vpop.f32.mrf.mxu0
        %v1334 = vadd.f32 %v478, %v1333
        %1335 = vdwg.mxu0
        %1336 = vmatpush.bf16.msra.mxu0 0
        %1337 = vmatpush.bf16.msra.mxu0 0
        %1338 = vmatpush.bf16.msra.mxu0 0
        %1339 = vmatpush.bf16.msra.mxu0 0
        %1340 = vmatpush.bf16.msra.mxu0 0
        %1341 = vmatpush.bf16.msra.mxu0 0
        %1342 = vmatpush.bf16.msra.mxu0 %v711
        %1343 = vmatpush.bf16.msra.mxu0 %v703
        %1344 = vmatmul.bf16.gmra.mxu0 %v734
        %v1345 = vpop.f32.mrf.mxu0
        %v1346 = vadd.f32 %v479, %v1345
        %v1347 = vpop.f32.mrf.mxu0
        %v1348 = vadd.f32 %v479, %v1347
        %1349 = vmatmul.bf16.gmra.mxu0 %v737
        %v1350 = vpop.f32.mrf.mxu0
        %v1351 = vadd.f32 %v479, %v1350
        %v1352 = vpop.f32.mrf.mxu0
        %v1353 = vadd.f32 %v479, %v1352
        %1354 = vmatmul.bf16.gmra.mxu0 %v740
        %v1355 = vpop.f32.mrf.mxu0
        %v1356 = vadd.f32 %v479, %v1355
        %v1357 = vpop.f32.mrf.mxu0
        %v1358 = vadd.f32 %v479, %v1357
        %1359 = vmatmul.bf16.gmra.mxu0 %v743
        %v1360 = vpop.f32.mrf.mxu0
        %v1361 = vadd.f32 %v479, %v1360
        %v1362 = vpop.f32.mrf.mxu0
        %v1363 = vadd.f32 %v479, %v1362
        %1364 = vmatmul.bf16.gmra.mxu0 %v746
        %v1365 = vpop.f32.mrf.mxu0
        %v1366 = vadd.f32 %v479, %v1365
        %v1367 = vpop.f32.mrf.mxu0
        %v1368 = vadd.f32 %v479, %v1367
        %1369 = vmatmul.bf16.gmra.mxu0 %v749
        %v1370 = vpop.f32.mrf.mxu0
        %v1371 = vadd.f32 %v479, %v1370
        %v1372 = vpop.f32.mrf.mxu0
        %v1373 = vadd.f32 %v479, %v1372
        %1374 = vmatmul.bf16.gmra.mxu0 %v752
        %v1375 = vpop.f32.mrf.mxu0
        %v1376 = vadd.f32 %v479, %v1375
        %v1377 = vpop.f32.mrf.mxu0
        %v1378 = vadd.f32 %v479, %v1377
        %1379 = vmatmul.bf16.gmra.mxu0 %v755
        %v1380 = vpop.f32.mrf.mxu0
        %v1381 = vadd.f32 %v479, %v1380
        %v1382 = vpop.f32.mrf.mxu0
        %v1383 = vadd.f32 %v479, %v1382
        %1384 = vmatmul.bf16.gmra.mxu0 %v758
        %v1385 = vpop.f32.mrf.mxu0
        %v1386 = vadd.f32 %v479, %v1385
        %v1387 = vpop.f32.mrf.mxu0
        %v1388 = vadd.f32 %v479, %v1387
        %1389 = vmatmul.bf16.gmra.mxu0 %v761
        %v1390 = vpop.f32.mrf.mxu0
        %v1391 = vadd.f32 %v479, %v1390
        %v1392 = vpop.f32.mrf.mxu0
        %v1393 = vadd.f32 %v479, %v1392
        %1394 = vmatmul.bf16.gmra.mxu0 %v764
        %v1395 = vpop.f32.mrf.mxu0
        %v1396 = vadd.f32 %v479, %v1395
        %v1397 = vpop.f32.mrf.mxu0
        %v1398 = vadd.f32 %v479, %v1397
        %1399 = vmatmul.bf16.gmra.mxu0 %v767
        %v1400 = vpop.f32.mrf.mxu0
        %v1401 = vadd.f32 %v479, %v1400
        %v1402 = vpop.f32.mrf.mxu0
        %v1403 = vadd.f32 %v479, %v1402
        %1404 = vmatmul.bf16.gmra.mxu0 %v770
        %v1405 = vpop.f32.mrf.mxu0
        %v1406 = vadd.f32 %v479, %v1405
        %v1407 = vpop.f32.mrf.mxu0
        %v1408 = vadd.f32 %v479, %v1407
        %1409 = vmatmul.bf16.gmra.mxu0 %v773
        %v1410 = vpop.f32.mrf.mxu0
        %v1411 = vadd.f32 %v479, %v1410
        %v1412 = vpop.f32.mrf.mxu0
        %v1413 = vadd.f32 %v479, %v1412
        %1414 = vmatmul.bf16.gmra.mxu0 %v776
        %v1415 = vpop.f32.mrf.mxu0
        %v1416 = vadd.f32 %v479, %v1415
        %v1417 = vpop.f32.mrf.mxu0
        %v1418 = vadd.f32 %v479, %v1417
        %1419 = vmatmul.bf16.gmra.mxu0 %v779
        %v1420 = vpop.f32.mrf.mxu0
        %v1421 = vadd.f32 %v479, %v1420
        %v1422 = vpop.f32.mrf.mxu0
        %v1423 = vadd.f32 %v479, %v1422
        %1424 = vmatmul.bf16.gmra.mxu0 %v782
        %v1425 = vpop.f32.mrf.mxu0
        %v1426 = vadd.f32 %v479, %v1425
        %v1427 = vpop.f32.mrf.mxu0
        %v1428 = vadd.f32 %v479, %v1427
        %1429 = vmatmul.bf16.gmra.mxu0 %v785
        %v1430 = vpop.f32.mrf.mxu0
        %v1431 = vadd.f32 %v479, %v1430
        %v1432 = vpop.f32.mrf.mxu0
        %v1433 = vadd.f32 %v479, %v1432
        %1434 = vmatmul.bf16.gmra.mxu0 %v788
        %v1435 = vpop.f32.mrf.mxu0
        %v1436 = vadd.f32 %v479, %v1435
        %v1437 = vpop.f32.mrf.mxu0
        %v1438 = vadd.f32 %v479, %v1437
        %1439 = vmatmul.bf16.gmra.mxu0 %v791
        %v1440 = vpop.f32.mrf.mxu0
        %v1441 = vadd.f32 %v479, %v1440
        %v1442 = vpop.f32.mrf.mxu0
        %v1443 = vadd.f32 %v479, %v1442
        %1444 = vmatmul.bf16.gmra.mxu0 %v794
        %v1445 = vpop.f32.mrf.mxu0
        %v1446 = vadd.f32 %v479, %v1445
        %v1447 = vpop.f32.mrf.mxu0
        %v1448 = vadd.f32 %v479, %v1447
        %1449 = vmatmul.bf16.gmra.mxu0 %v797
        %v1450 = vpop.f32.mrf.mxu0
        %v1451 = vadd.f32 %v479, %v1450
        %v1452 = vpop.f32.mrf.mxu0
        %v1453 = vadd.f32 %v479, %v1452
        %1454 = vmatmul.bf16.gmra.mxu0 %v800
        %v1455 = vpop.f32.mrf.mxu0
        %v1456 = vadd.f32 %v479, %v1455
        %v1457 = vpop.f32.mrf.mxu0
        %v1458 = vadd.f32 %v479, %v1457
        %1459 = vmatmul.bf16.gmra.mxu0 %v803
        %v1460 = vpop.f32.mrf.mxu0
        %v1461 = vadd.f32 %v479, %v1460
        %v1462 = vpop.f32.mrf.mxu0
        %v1463 = vadd.f32 %v479, %v1462
        %1464 = vmatmul.bf16.gmra.mxu0 %v806
        %v1465 = vpop.f32.mrf.mxu0
        %v1466 = vadd.f32 %v479, %v1465
        %v1467 = vpop.f32.mrf.mxu0
        %v1468 = vadd.f32 %v479, %v1467
        %1469 = vmatmul.bf16.gmra.mxu0 %v809
        %v1470 = vpop.f32.mrf.mxu0
        %v1471 = vadd.f32 %v479, %v1470
        %v1472 = vpop.f32.mrf.mxu0
        %v1473 = vadd.f32 %v479, %v1472
        %1474 = vmatmul.bf16.gmra.mxu0 %v812
        %v1475 = vpop.f32.mrf.mxu0
        %v1476 = vadd.f32 %v479, %v1475
        %v1477 = vpop.f32.mrf.mxu0
        %v1478 = vadd.f32 %v479, %v1477
        %1479 = vmatmul.bf16.gmra.mxu0 %v815
        %v1480 = vpop.f32.mrf.mxu0
        %v1481 = vadd.f32 %v479, %v1480
        %v1482 = vpop.f32.mrf.mxu0
        %v1483 = vadd.f32 %v479, %v1482
        %1484 = vmatmul.bf16.gmra.mxu0 %v818
        %v1485 = vpop.f32.mrf.mxu0
        %v1486 = vadd.f32 %v479, %v1485
        %v1487 = vpop.f32.mrf.mxu0
        %v1488 = vadd.f32 %v479, %v1487
        %1489 = vmatmul.bf16.gmra.mxu0 %v821
        %v1490 = vpop.f32.mrf.mxu0
        %v1491 = vadd.f32 %v479, %v1490
        %v1492 = vpop.f32.mrf.mxu0
        %v1493 = vadd.f32 %v479, %v1492
        %1494 = vmatmul.bf16.gmra.mxu0 %v824
        %v1495 = vpop.f32.mrf.mxu0
        %v1496 = vadd.f32 %v479, %v1495
        %v1497 = vpop.f32.mrf.mxu0
        %v1498 = vadd.f32 %v479, %v1497
        %1499 = vmatmul.bf16.gmra.mxu0 %v827
        %v1500 = vpop.f32.mrf.mxu0
        %v1501 = vadd.f32 %v479, %v1500
        %v1502 = vpop.f32.mrf.mxu0
        %v1503 = vadd.f32 %v479, %v1502
        %1504 = vdwg.mxu0
        %1505 = vmatpush.bf16.msra.mxu0 0
        %1506 = vmatpush.bf16.msra.mxu0 0
        %1507 = vmatpush.bf16.msra.mxu0 0
        %1508 = vmatpush.bf16.msra.mxu0 0
        %1509 = vmatpush.bf16.msra.mxu0 0
        %1510 = vmatpush.bf16.msra.mxu0 0
        %1511 = vmatpush.bf16.msra.mxu0 %v712
        %1512 = vmatpush.bf16.msra.mxu0 %v704
        %1513 = vmatmul.bf16.gmra.mxu0 %v734
        %v1514 = vpop.f32.mrf.mxu0
        %v1515 = vadd.f32 %v480, %v1514
        %v1516 = vpop.f32.mrf.mxu0
        %v1517 = vadd.f32 %v480, %v1516
        %1518 = vmatmul.bf16.gmra.mxu0 %v737
        %v1519 = vpop.f32.mrf.mxu0
        %v1520 = vadd.f32 %v480, %v1519
        %v1521 = vpop.f32.mrf.mxu0
        %v1522 = vadd.f32 %v480, %v1521
        %1523 = vmatmul.bf16.gmra.mxu0 %v740
        %v1524 = vpop.f32.mrf.mxu0
        %v1525 = vadd.f32 %v480, %v1524
        %v1526 = vpop.f32.mrf.mxu0
        %v1527 = vadd.f32 %v480, %v1526
        %1528 = vmatmul.bf16.gmra.mxu0 %v743
        %v1529 = vpop.f32.mrf.mxu0
        %v1530 = vadd.f32 %v480, %v1529
        %v1531 = vpop.f32.mrf.mxu0
        %v1532 = vadd.f32 %v480, %v1531
        %1533 = vmatmul.bf16.gmra.mxu0 %v746
        %v1534 = vpop.f32.mrf.mxu0
        %v1535 = vadd.f32 %v480, %v1534
        %v1536 = vpop.f32.mrf.mxu0
        %v1537 = vadd.f32 %v480, %v1536
        %1538 = vmatmul.bf16.gmra.mxu0 %v749
        %v1539 = vpop.f32.mrf.mxu0
        %v1540 = vadd.f32 %v480, %v1539
        %v1541 = vpop.f32.mrf.mxu0
        %v1542 = vadd.f32 %v480, %v1541
        %1543 = vmatmul.bf16.gmra.mxu0 %v752
        %v1544 = vpop.f32.mrf.mxu0
        %v1545 = vadd.f32 %v480, %v1544
        %v1546 = vpop.f32.mrf.mxu0
        %v1547 = vadd.f32 %v480, %v1546
        %1548 = vmatmul.bf16.gmra.mxu0 %v755
        %v1549 = vpop.f32.mrf.mxu0
        %v1550 = vadd.f32 %v480, %v1549
        %v1551 = vpop.f32.mrf.mxu0
        %v1552 = vadd.f32 %v480, %v1551
        %1553 = vmatmul.bf16.gmra.mxu0 %v758
        %v1554 = vpop.f32.mrf.mxu0
        %v1555 = vadd.f32 %v480, %v1554
        %v1556 = vpop.f32.mrf.mxu0
        %v1557 = vadd.f32 %v480, %v1556
        %1558 = vmatmul.bf16.gmra.mxu0 %v761
        %v1559 = vpop.f32.mrf.mxu0
        %v1560 = vadd.f32 %v480, %v1559
        %v1561 = vpop.f32.mrf.mxu0
        %v1562 = vadd.f32 %v480, %v1561
        %1563 = vmatmul.bf16.gmra.mxu0 %v764
        %v1564 = vpop.f32.mrf.mxu0
        %v1565 = vadd.f32 %v480, %v1564
        %v1566 = vpop.f32.mrf.mxu0
        %v1567 = vadd.f32 %v480, %v1566
        %1568 = vmatmul.bf16.gmra.mxu0 %v767
        %v1569 = vpop.f32.mrf.mxu0
        %v1570 = vadd.f32 %v480, %v1569
        %v1571 = vpop.f32.mrf.mxu0
        %v1572 = vadd.f32 %v480, %v1571
        %1573 = vmatmul.bf16.gmra.mxu0 %v770
        %v1574 = vpop.f32.mrf.mxu0
        %v1575 = vadd.f32 %v480, %v1574
        %v1576 = vpop.f32.mrf.mxu0
        %v1577 = vadd.f32 %v480, %v1576
        %1578 = vmatmul.bf16.gmra.mxu0 %v773
        %v1579 = vpop.f32.mrf.mxu0
        %v1580 = vadd.f32 %v480, %v1579
        %v1581 = vpop.f32.mrf.mxu0
        %v1582 = vadd.f32 %v480, %v1581
        %1583 = vmatmul.bf16.gmra.mxu0 %v776
        %v1584 = vpop.f32.mrf.mxu0
        %v1585 = vadd.f32 %v480, %v1584
        %v1586 = vpop.f32.mrf.mxu0
        %v1587 = vadd.f32 %v480, %v1586
        %1588 = vmatmul.bf16.gmra.mxu0 %v779
        %v1589 = vpop.f32.mrf.mxu0
        %v1590 = vadd.f32 %v480, %v1589
        %v1591 = vpop.f32.mrf.mxu0
        %v1592 = vadd.f32 %v480, %v1591
        %1593 = vmatmul.bf16.gmra.mxu0 %v782
        %v1594 = vpop.f32.mrf.mxu0
        %v1595 = vadd.f32 %v480, %v1594
        %v1596 = vpop.f32.mrf.mxu0
        %v1597 = vadd.f32 %v480, %v1596
        %1598 = vmatmul.bf16.gmra.mxu0 %v785
        %v1599 = vpop.f32.mrf.mxu0
        %v1600 = vadd.f32 %v480, %v1599
        %v1601 = vpop.f32.mrf.mxu0
        %v1602 = vadd.f32 %v480, %v1601
        %1603 = vmatmul.bf16.gmra.mxu0 %v788
        %v1604 = vpop.f32.mrf.mxu0
        %v1605 = vadd.f32 %v480, %v1604
        %v1606 = vpop.f32.mrf.mxu0
        %v1607 = vadd.f32 %v480, %v1606
        %1608 = vmatmul.bf16.gmra.mxu0 %v791
        %v1609 = vpop.f32.mrf.mxu0
        %v1610 = vadd.f32 %v480, %v1609
        %v1611 = vpop.f32.mrf.mxu0
        %v1612 = vadd.f32 %v480, %v1611
        %1613 = vmatmul.bf16.gmra.mxu0 %v794
        %v1614 = vpop.f32.mrf.mxu0
        %v1615 = vadd.f32 %v480, %v1614
        %v1616 = vpop.f32.mrf.mxu0
        %v1617 = vadd.f32 %v480, %v1616
        %1618 = vmatmul.bf16.gmra.mxu0 %v797
        %v1619 = vpop.f32.mrf.mxu0
        %v1620 = vadd.f32 %v480, %v1619
        %v1621 = vpop.f32.mrf.mxu0
        %v1622 = vadd.f32 %v480, %v1621
        %1623 = vmatmul.bf16.gmra.mxu0 %v800
        %v1624 = vpop.f32.mrf.mxu0
        %v1625 = vadd.f32 %v480, %v1624
        %v1626 = vpop.f32.mrf.mxu0
        %v1627 = vadd.f32 %v480, %v1626
        %1628 = vmatmul.bf16.gmra.mxu0 %v803
        %v1629 = vpop.f32.mrf.mxu0
        %v1630 = vadd.f32 %v480, %v1629
        %v1631 = vpop.f32.mrf.mxu0
        %v1632 = vadd.f32 %v480, %v1631
        %1633 = vmatmul.bf16.gmra.mxu0 %v806
        %v1634 = vpop.f32.mrf.mxu0
        %v1635 = vadd.f32 %v480, %v1634
        %v1636 = vpop.f32.mrf.mxu0
        %v1637 = vadd.f32 %v480, %v1636
        %1638 = vmatmul.bf16.gmra.mxu0 %v809
        %v1639 = vpop.f32.mrf.mxu0
        %v1640 = vadd.f32 %v480, %v1639
        %v1641 = vpop.f32.mrf.mxu0
        %v1642 = vadd.f32 %v480, %v1641
        %1643 = vmatmul.bf16.gmra.mxu0 %v812
        %v1644 = vpop.f32.mrf.mxu0
        %v1645 = vadd.f32 %v480, %v1644
        %v1646 = vpop.f32.mrf.mxu0
        %v1647 = vadd.f32 %v480, %v1646
        %1648 = vmatmul.bf16.gmra.mxu0 %v815
        %v1649 = vpop.f32.mrf.mxu0
        %v1650 = vadd.f32 %v480, %v1649
        %v1651 = vpop.f32.mrf.mxu0
        %v1652 = vadd.f32 %v480, %v1651
        %1653 = vmatmul.bf16.gmra.mxu0 %v818
        %v1654 = vpop.f32.mrf.mxu0
        %v1655 = vadd.f32 %v480, %v1654
        %v1656 = vpop.f32.mrf.mxu0
        %v1657 = vadd.f32 %v480, %v1656
        %1658 = vmatmul.bf16.gmra.mxu0 %v821
        %v1659 = vpop.f32.mrf.mxu0
        %v1660 = vadd.f32 %v480, %v1659
        %v1661 = vpop.f32.mrf.mxu0
        %v1662 = vadd.f32 %v480, %v1661
        %1663 = vmatmul.bf16.gmra.mxu0 %v824
        %v1664 = vpop.f32.mrf.mxu0
        %v1665 = vadd.f32 %v480, %v1664
        %v1666 = vpop.f32.mrf.mxu0
        %v1667 = vadd.f32 %v480, %v1666
        %1668 = vmatmul.bf16.gmra.mxu0 %v827
        %v1669 = vpop.f32.mrf.mxu0
        %v1670 = vadd.f32 %v480, %v1669
        %v1671 = vpop.f32.mrf.mxu0
        %v1672 = vadd.f32 %v480, %v1671
        %1673 = vdwg.mxu0
        %1674 = vmatpush.bf16.msra.mxu0 0
        %1675 = vmatpush.bf16.msra.mxu0 0
        %1676 = vmatpush.bf16.msra.mxu0 0
        %1677 = vmatpush.bf16.msra.mxu0 0
        %1678 = vmatpush.bf16.msra.mxu0 0
        %1679 = vmatpush.bf16.msra.mxu0 0
        %1680 = vmatpush.bf16.msra.mxu0 %v713
        %1681 = vmatpush.bf16.msra.mxu0 %v705
        %1682 = vmatmul.bf16.gmra.mxu0 %v734
        %v1683 = vpop.f32.mrf.mxu0
        %v1684 = vadd.f32 %v481, %v1683
        %v1685 = vpop.f32.mrf.mxu0
        %v1686 = vadd.f32 %v481, %v1685
        %1687 = vmatmul.bf16.gmra.mxu0 %v737
        %v1688 = vpop.f32.mrf.mxu0
        %v1689 = vadd.f32 %v481, %v1688
        %v1690 = vpop.f32.mrf.mxu0
        %v1691 = vadd.f32 %v481, %v1690
        %1692 = vmatmul.bf16.gmra.mxu0 %v740
        %v1693 = vpop.f32.mrf.mxu0
        %v1694 = vadd.f32 %v481, %v1693
        %v1695 = vpop.f32.mrf.mxu0
        %v1696 = vadd.f32 %v481, %v1695
        %1697 = vmatmul.bf16.gmra.mxu0 %v743
        %v1698 = vpop.f32.mrf.mxu0
        %v1699 = vadd.f32 %v481, %v1698
        %v1700 = vpop.f32.mrf.mxu0
        %v1701 = vadd.f32 %v481, %v1700
        %1702 = vmatmul.bf16.gmra.mxu0 %v746
        %v1703 = vpop.f32.mrf.mxu0
        %v1704 = vadd.f32 %v481, %v1703
        %v1705 = vpop.f32.mrf.mxu0
        %v1706 = vadd.f32 %v481, %v1705
        %1707 = vmatmul.bf16.gmra.mxu0 %v749
        %v1708 = vpop.f32.mrf.mxu0
        %v1709 = vadd.f32 %v481, %v1708
        %v1710 = vpop.f32.mrf.mxu0
        %v1711 = vadd.f32 %v481, %v1710
        %1712 = vmatmul.bf16.gmra.mxu0 %v752
        %v1713 = vpop.f32.mrf.mxu0
        %v1714 = vadd.f32 %v481, %v1713
        %v1715 = vpop.f32.mrf.mxu0
        %v1716 = vadd.f32 %v481, %v1715
        %1717 = vmatmul.bf16.gmra.mxu0 %v755
        %v1718 = vpop.f32.mrf.mxu0
        %v1719 = vadd.f32 %v481, %v1718
        %v1720 = vpop.f32.mrf.mxu0
        %v1721 = vadd.f32 %v481, %v1720
        %1722 = vmatmul.bf16.gmra.mxu0 %v758
        %v1723 = vpop.f32.mrf.mxu0
        %v1724 = vadd.f32 %v481, %v1723
        %v1725 = vpop.f32.mrf.mxu0
        %v1726 = vadd.f32 %v481, %v1725
        %1727 = vmatmul.bf16.gmra.mxu0 %v761
        %v1728 = vpop.f32.mrf.mxu0
        %v1729 = vadd.f32 %v481, %v1728
        %v1730 = vpop.f32.mrf.mxu0
        %v1731 = vadd.f32 %v481, %v1730
        %1732 = vmatmul.bf16.gmra.mxu0 %v764
        %v1733 = vpop.f32.mrf.mxu0
        %v1734 = vadd.f32 %v481, %v1733
        %v1735 = vpop.f32.mrf.mxu0
        %v1736 = vadd.f32 %v481, %v1735
        %1737 = vmatmul.bf16.gmra.mxu0 %v767
        %v1738 = vpop.f32.mrf.mxu0
        %v1739 = vadd.f32 %v481, %v1738
        %v1740 = vpop.f32.mrf.mxu0
        %v1741 = vadd.f32 %v481, %v1740
        %1742 = vmatmul.bf16.gmra.mxu0 %v770
        %v1743 = vpop.f32.mrf.mxu0
        %v1744 = vadd.f32 %v481, %v1743
        %v1745 = vpop.f32.mrf.mxu0
        %v1746 = vadd.f32 %v481, %v1745
        %1747 = vmatmul.bf16.gmra.mxu0 %v773
        %v1748 = vpop.f32.mrf.mxu0
        %v1749 = vadd.f32 %v481, %v1748
        %v1750 = vpop.f32.mrf.mxu0
        %v1751 = vadd.f32 %v481, %v1750
        %1752 = vmatmul.bf16.gmra.mxu0 %v776
        %v1753 = vpop.f32.mrf.mxu0
        %v1754 = vadd.f32 %v481, %v1753
        %v1755 = vpop.f32.mrf.mxu0
        %v1756 = vadd.f32 %v481, %v1755
        %1757 = vmatmul.bf16.gmra.mxu0 %v779
        %v1758 = vpop.f32.mrf.mxu0
        %v1759 = vadd.f32 %v481, %v1758
        %v1760 = vpop.f32.mrf.mxu0
        %v1761 = vadd.f32 %v481, %v1760
        %1762 = vmatmul.bf16.gmra.mxu0 %v782
        %v1763 = vpop.f32.mrf.mxu0
        %v1764 = vadd.f32 %v481, %v1763
        %v1765 = vpop.f32.mrf.mxu0
        %v1766 = vadd.f32 %v481, %v1765
        %1767 = vmatmul.bf16.gmra.mxu0 %v785
        %v1768 = vpop.f32.mrf.mxu0
        %v1769 = vadd.f32 %v481, %v1768
        %v1770 = vpop.f32.mrf.mxu0
        %v1771 = vadd.f32 %v481, %v1770
        %1772 = vmatmul.bf16.gmra.mxu0 %v788
        %v1773 = vpop.f32.mrf.mxu0
        %v1774 = vadd.f32 %v481, %v1773
        %v1775 = vpop.f32.mrf.mxu0
        %v1776 = vadd.f32 %v481, %v1775
        %1777 = vmatmul.bf16.gmra.mxu0 %v791
        %v1778 = vpop.f32.mrf.mxu0
        %v1779 = vadd.f32 %v481, %v1778
        %v1780 = vpop.f32.mrf.mxu0
        %v1781 = vadd.f32 %v481, %v1780
        %1782 = vmatmul.bf16.gmra.mxu0 %v794
        %v1783 = vpop.f32.mrf.mxu0
        %v1784 = vadd.f32 %v481, %v1783
        %v1785 = vpop.f32.mrf.mxu0
        %v1786 = vadd.f32 %v481, %v1785
        %1787 = vmatmul.bf16.gmra.mxu0 %v797
        %v1788 = vpop.f32.mrf.mxu0
        %v1789 = vadd.f32 %v481, %v1788
        %v1790 = vpop.f32.mrf.mxu0
        %v1791 = vadd.f32 %v481, %v1790
        %1792 = vmatmul.bf16.gmra.mxu0 %v800
        %v1793 = vpop.f32.mrf.mxu0
        %v1794 = vadd.f32 %v481, %v1793
        %v1795 = vpop.f32.mrf.mxu0
        %v1796 = vadd.f32 %v481, %v1795
        %1797 = vmatmul.bf16.gmra.mxu0 %v803
        %v1798 = vpop.f32.mrf.mxu0
        %v1799 = vadd.f32 %v481, %v1798
        %v1800 = vpop.f32.mrf.mxu0
        %v1801 = vadd.f32 %v481, %v1800
        %1802 = vmatmul.bf16.gmra.mxu0 %v806
        %v1803 = vpop.f32.mrf.mxu0
        %v1804 = vadd.f32 %v481, %v1803
        %v1805 = vpop.f32.mrf.mxu0
        %v1806 = vadd.f32 %v481, %v1805
        %1807 = vmatmul.bf16.gmra.mxu0 %v809
        %v1808 = vpop.f32.mrf.mxu0
        %v1809 = vadd.f32 %v481, %v1808
        %v1810 = vpop.f32.mrf.mxu0
        %v1811 = vadd.f32 %v481, %v1810
        %1812 = vmatmul.bf16.gmra.mxu0 %v812
        %v1813 = vpop.f32.mrf.mxu0
        %v1814 = vadd.f32 %v481, %v1813
        %v1815 = vpop.f32.mrf.mxu0
        %v1816 = vadd.f32 %v481, %v1815
        %1817 = vmatmul.bf16.gmra.mxu0 %v815
        %v1818 = vpop.f32.mrf.mxu0
        %v1819 = vadd.f32 %v481, %v1818
        %v1820 = vpop.f32.mrf.mxu0
        %v1821 = vadd.f32 %v481, %v1820
        %1822 = vmatmul.bf16.gmra.mxu0 %v818
        %v1823 = vpop.f32.mrf.mxu0
        %v1824 = vadd.f32 %v481, %v1823
        %v1825 = vpop.f32.mrf.mxu0
        %v1826 = vadd.f32 %v481, %v1825
        %1827 = vmatmul.bf16.gmra.mxu0 %v821
        %v1828 = vpop.f32.mrf.mxu0
        %v1829 = vadd.f32 %v481, %v1828
        %v1830 = vpop.f32.mrf.mxu0
        %v1831 = vadd.f32 %v481, %v1830
        %1832 = vmatmul.bf16.gmra.mxu0 %v824
        %v1833 = vpop.f32.mrf.mxu0
        %v1834 = vadd.f32 %v481, %v1833
        %v1835 = vpop.f32.mrf.mxu0
        %v1836 = vadd.f32 %v481, %v1835
        %1837 = vmatmul.bf16.gmra.mxu0 %v827
        %v1838 = vpop.f32.mrf.mxu0
        %v1839 = vadd.f32 %v481, %v1838
        %v1840 = vpop.f32.mrf.mxu0
        %v1841 = vadd.f32 %v481, %v1840
        %1842 = vdwg.mxu0
        %1843 = vmatpush.bf16.msra.mxu0 0
        %1844 = vmatpush.bf16.msra.mxu0 0
        %1845 = vmatpush.bf16.msra.mxu0 0
        %1846 = vmatpush.bf16.msra.mxu0 0
        %1847 = vmatpush.bf16.msra.mxu0 0
        %1848 = vmatpush.bf16.msra.mxu0 0
        %1849 = vmatpush.bf16.msra.mxu0 %v714
        %1850 = vmatpush.bf16.msra.mxu0 %v706
        %1851 = vmatmul.bf16.gmra.mxu0 %v734
        %v1852 = vpop.f32.mrf.mxu0
        %v1853 = vadd.f32 %v482, %v1852
        %v1854 = vpop.f32.mrf.mxu0
        %v1855 = vadd.f32 %v482, %v1854
        %1856 = vmatmul.bf16.gmra.mxu0 %v737
        %v1857 = vpop.f32.mrf.mxu0
        %v1858 = vadd.f32 %v482, %v1857
        %v1859 = vpop.f32.mrf.mxu0
        %v1860 = vadd.f32 %v482, %v1859
        %1861 = vmatmul.bf16.gmra.mxu0 %v740
        %v1862 = vpop.f32.mrf.mxu0
        %v1863 = vadd.f32 %v482, %v1862
        %v1864 = vpop.f32.mrf.mxu0
        %v1865 = vadd.f32 %v482, %v1864
        %1866 = vmatmul.bf16.gmra.mxu0 %v743
        %v1867 = vpop.f32.mrf.mxu0
        %v1868 = vadd.f32 %v482, %v1867
        %v1869 = vpop.f32.mrf.mxu0
        %v1870 = vadd.f32 %v482, %v1869
        %1871 = vmatmul.bf16.gmra.mxu0 %v746
        %v1872 = vpop.f32.mrf.mxu0
        %v1873 = vadd.f32 %v482, %v1872
        %v1874 = vpop.f32.mrf.mxu0
        %v1875 = vadd.f32 %v482, %v1874
        %1876 = vmatmul.bf16.gmra.mxu0 %v749
        %v1877 = vpop.f32.mrf.mxu0
        %v1878 = vadd.f32 %v482, %v1877
        %v1879 = vpop.f32.mrf.mxu0
        %v1880 = vadd.f32 %v482, %v1879
        %1881 = vmatmul.bf16.gmra.mxu0 %v752
        %v1882 = vpop.f32.mrf.mxu0
        %v1883 = vadd.f32 %v482, %v1882
        %v1884 = vpop.f32.mrf.mxu0
        %v1885 = vadd.f32 %v482, %v1884
        %1886 = vmatmul.bf16.gmra.mxu0 %v755
        %v1887 = vpop.f32.mrf.mxu0
        %v1888 = vadd.f32 %v482, %v1887
        %v1889 = vpop.f32.mrf.mxu0
        %v1890 = vadd.f32 %v482, %v1889
        %1891 = vmatmul.bf16.gmra.mxu0 %v758
        %v1892 = vpop.f32.mrf.mxu0
        %v1893 = vadd.f32 %v482, %v1892
        %v1894 = vpop.f32.mrf.mxu0
        %v1895 = vadd.f32 %v482, %v1894
        %1896 = vmatmul.bf16.gmra.mxu0 %v761
        %v1897 = vpop.f32.mrf.mxu0
        %v1898 = vadd.f32 %v482, %v1897
        %v1899 = vpop.f32.mrf.mxu0
        %v1900 = vadd.f32 %v482, %v1899
        %1901 = vmatmul.bf16.gmra.mxu0 %v764
        %v1902 = vpop.f32.mrf.mxu0
        %v1903 = vadd.f32 %v482, %v1902
        %v1904 = vpop.f32.mrf.mxu0
        %v1905 = vadd.f32 %v482, %v1904
        %1906 = vmatmul.bf16.gmra.mxu0 %v767
        %v1907 = vpop.f32.mrf.mxu0
        %v1908 = vadd.f32 %v482, %v1907
        %v1909 = vpop.f32.mrf.mxu0
        %v1910 = vadd.f32 %v482, %v1909
        %1911 = vmatmul.bf16.gmra.mxu0 %v770
        %v1912 = vpop.f32.mrf.mxu0
        %v1913 = vadd.f32 %v482, %v1912
        %v1914 = vpop.f32.mrf.mxu0
        %v1915 = vadd.f32 %v482, %v1914
        %1916 = vmatmul.bf16.gmra.mxu0 %v773
        %v1917 = vpop.f32.mrf.mxu0
        %v1918 = vadd.f32 %v482, %v1917
        %v1919 = vpop.f32.mrf.mxu0
        %v1920 = vadd.f32 %v482, %v1919
        %1921 = vmatmul.bf16.gmra.mxu0 %v776
        %v1922 = vpop.f32.mrf.mxu0
        %v1923 = vadd.f32 %v482, %v1922
        %v1924 = vpop.f32.mrf.mxu0
        %v1925 = vadd.f32 %v482, %v1924
        %1926 = vmatmul.bf16.gmra.mxu0 %v779
        %v1927 = vpop.f32.mrf.mxu0
        %v1928 = vadd.f32 %v482, %v1927
        %v1929 = vpop.f32.mrf.mxu0
        %v1930 = vadd.f32 %v482, %v1929
        %1931 = vmatmul.bf16.gmra.mxu0 %v782
        %v1932 = vpop.f32.mrf.mxu0
        %v1933 = vadd.f32 %v482, %v1932
        %v1934 = vpop.f32.mrf.mxu0
        %v1935 = vadd.f32 %v482, %v1934
        %1936 = vmatmul.bf16.gmra.mxu0 %v785
        %v1937 = vpop.f32.mrf.mxu0
        %v1938 = vadd.f32 %v482, %v1937
        %v1939 = vpop.f32.mrf.mxu0
        %v1940 = vadd.f32 %v482, %v1939
        %1941 = vmatmul.bf16.gmra.mxu0 %v788
        %v1942 = vpop.f32.mrf.mxu0
        %v1943 = vadd.f32 %v482, %v1942
        %v1944 = vpop.f32.mrf.mxu0
        %v1945 = vadd.f32 %v482, %v1944
        %1946 = vmatmul.bf16.gmra.mxu0 %v791
        %v1947 = vpop.f32.mrf.mxu0
        %v1948 = vadd.f32 %v482, %v1947
        %v1949 = vpop.f32.mrf.mxu0
        %v1950 = vadd.f32 %v482, %v1949
        %1951 = vmatmul.bf16.gmra.mxu0 %v794
        %v1952 = vpop.f32.mrf.mxu0
        %v1953 = vadd.f32 %v482, %v1952
        %v1954 = vpop.f32.mrf.mxu0
        %v1955 = vadd.f32 %v482, %v1954
        %1956 = vmatmul.bf16.gmra.mxu0 %v797
        %v1957 = vpop.f32.mrf.mxu0
        %v1958 = vadd.f32 %v482, %v1957
        %v1959 = vpop.f32.mrf.mxu0
        %v1960 = vadd.f32 %v482, %v1959
        %1961 = vmatmul.bf16.gmra.mxu0 %v800
        %v1962 = vpop.f32.mrf.mxu0
        %v1963 = vadd.f32 %v482, %v1962
        %v1964 = vpop.f32.mrf.mxu0
        %v1965 = vadd.f32 %v482, %v1964
        %1966 = vmatmul.bf16.gmra.mxu0 %v803
        %v1967 = vpop.f32.mrf.mxu0
        %v1968 = vadd.f32 %v482, %v1967
        %v1969 = vpop.f32.mrf.mxu0
        %v1970 = vadd.f32 %v482, %v1969
        %1971 = vmatmul.bf16.gmra.mxu0 %v806
        %v1972 = vpop.f32.mrf.mxu0
        %v1973 = vadd.f32 %v482, %v1972
        %v1974 = vpop.f32.mrf.mxu0
        %v1975 = vadd.f32 %v482, %v1974
        %1976 = vmatmul.bf16.gmra.mxu0 %v809
        %v1977 = vpop.f32.mrf.mxu0
        %v1978 = vadd.f32 %v482, %v1977
        %v1979 = vpop.f32.mrf.mxu0
        %v1980 = vadd.f32 %v482, %v1979
        %1981 = vmatmul.bf16.gmra.mxu0 %v812
        %v1982 = vpop.f32.mrf.mxu0
        %v1983 = vadd.f32 %v482, %v1982
        %v1984 = vpop.f32.mrf.mxu0
        %v1985 = vadd.f32 %v482, %v1984
        %1986 = vmatmul.bf16.gmra.mxu0 %v815
        %v1987 = vpop.f32.mrf.mxu0
        %v1988 = vadd.f32 %v482, %v1987
        %v1989 = vpop.f32.mrf.mxu0
        %v1990 = vadd.f32 %v482, %v1989
        %1991 = vmatmul.bf16.gmra.mxu0 %v818
        %v1992 = vpop.f32.mrf.mxu0
        %v1993 = vadd.f32 %v482, %v1992
        %v1994 = vpop.f32.mrf.mxu0
        %v1995 = vadd.f32 %v482, %v1994
        %1996 = vmatmul.bf16.gmra.mxu0 %v821
        %v1997 = vpop.f32.mrf.mxu0
        %v1998 = vadd.f32 %v482, %v1997
        %v1999 = vpop.f32.mrf.mxu0
        %v2000 = vadd.f32 %v482, %v1999
        %2001 = vmatmul.bf16.gmra.mxu0 %v824
        %v2002 = vpop.f32.mrf.mxu0
        %v2003 = vadd.f32 %v482, %v2002
        %v2004 = vpop.f32.mrf.mxu0
        %v2005 = vadd.f32 %v482, %v2004
        %2006 = vmatmul.bf16.gmra.mxu0 %v827
        %v2007 = vpop.f32.mrf.mxu0
        %v2008 = vadd.f32 %v482, %v2007
        %v2009 = vpop.f32.mrf.mxu0
        %v2010 = vadd.f32 %v482, %v2009
        %2011 = vdwg.mxu0
        %2012 = vmatpush.bf16.msra.mxu0 0
        %2013 = vmatpush.bf16.msra.mxu0 0
        %2014 = vmatpush.bf16.msra.mxu0 0
        %2015 = vmatpush.bf16.msra.mxu0 0
        %2016 = vmatpush.bf16.msra.mxu0 0
        %2017 = vmatpush.bf16.msra.mxu0 0
        %2018 = vmatpush.bf16.msra.mxu0 %v715
        %2019 = vmatpush.bf16.msra.mxu0 %v707
        %2020 = vmatmul.bf16.gmra.mxu0 %v734
        %v2021 = vpop.f32.mrf.mxu0
        %v2022 = vadd.f32 %v483, %v2021
        %v2023 = vpop.f32.mrf.mxu0
        %v2024 = vadd.f32 %v483, %v2023
        %2025 = vmatmul.bf16.gmra.mxu0 %v737
        %v2026 = vpop.f32.mrf.mxu0
        %v2027 = vadd.f32 %v483, %v2026
        %v2028 = vpop.f32.mrf.mxu0
        %v2029 = vadd.f32 %v483, %v2028
        %2030 = vmatmul.bf16.gmra.mxu0 %v740
        %v2031 = vpop.f32.mrf.mxu0
        %v2032 = vadd.f32 %v483, %v2031
        %v2033 = vpop.f32.mrf.mxu0
        %v2034 = vadd.f32 %v483, %v2033
        %2035 = vmatmul.bf16.gmra.mxu0 %v743
        %v2036 = vpop.f32.mrf.mxu0
        %v2037 = vadd.f32 %v483, %v2036
        %v2038 = vpop.f32.mrf.mxu0
        %v2039 = vadd.f32 %v483, %v2038
        %2040 = vmatmul.bf16.gmra.mxu0 %v746
        %v2041 = vpop.f32.mrf.mxu0
        %v2042 = vadd.f32 %v483, %v2041
        %v2043 = vpop.f32.mrf.mxu0
        %v2044 = vadd.f32 %v483, %v2043
        %2045 = vmatmul.bf16.gmra.mxu0 %v749
        %v2046 = vpop.f32.mrf.mxu0
        %v2047 = vadd.f32 %v483, %v2046
        %v2048 = vpop.f32.mrf.mxu0
        %v2049 = vadd.f32 %v483, %v2048
        %2050 = vmatmul.bf16.gmra.mxu0 %v752
        %v2051 = vpop.f32.mrf.mxu0
        %v2052 = vadd.f32 %v483, %v2051
        %v2053 = vpop.f32.mrf.mxu0
        %v2054 = vadd.f32 %v483, %v2053
        %2055 = vmatmul.bf16.gmra.mxu0 %v755
        %v2056 = vpop.f32.mrf.mxu0
        %v2057 = vadd.f32 %v483, %v2056
        %v2058 = vpop.f32.mrf.mxu0
        %v2059 = vadd.f32 %v483, %v2058
        %2060 = vmatmul.bf16.gmra.mxu0 %v758
        %v2061 = vpop.f32.mrf.mxu0
        %v2062 = vadd.f32 %v483, %v2061
        %v2063 = vpop.f32.mrf.mxu0
        %v2064 = vadd.f32 %v483, %v2063
        %2065 = vmatmul.bf16.gmra.mxu0 %v761
        %v2066 = vpop.f32.mrf.mxu0
        %v2067 = vadd.f32 %v483, %v2066
        %v2068 = vpop.f32.mrf.mxu0
        %v2069 = vadd.f32 %v483, %v2068
        %2070 = vmatmul.bf16.gmra.mxu0 %v764
        %v2071 = vpop.f32.mrf.mxu0
        %v2072 = vadd.f32 %v483, %v2071
        %v2073 = vpop.f32.mrf.mxu0
        %v2074 = vadd.f32 %v483, %v2073
        %2075 = vmatmul.bf16.gmra.mxu0 %v767
        %v2076 = vpop.f32.mrf.mxu0
        %v2077 = vadd.f32 %v483, %v2076
        %v2078 = vpop.f32.mrf.mxu0
        %v2079 = vadd.f32 %v483, %v2078
        %2080 = vmatmul.bf16.gmra.mxu0 %v770
        %v2081 = vpop.f32.mrf.mxu0
        %v2082 = vadd.f32 %v483, %v2081
        %v2083 = vpop.f32.mrf.mxu0
        %v2084 = vadd.f32 %v483, %v2083
        %2085 = vmatmul.bf16.gmra.mxu0 %v773
        %v2086 = vpop.f32.mrf.mxu0
        %v2087 = vadd.f32 %v483, %v2086
        %v2088 = vpop.f32.mrf.mxu0
        %v2089 = vadd.f32 %v483, %v2088
        %2090 = vmatmul.bf16.gmra.mxu0 %v776
        %v2091 = vpop.f32.mrf.mxu0
        %v2092 = vadd.f32 %v483, %v2091
        %v2093 = vpop.f32.mrf.mxu0
        %v2094 = vadd.f32 %v483, %v2093
        %2095 = vmatmul.bf16.gmra.mxu0 %v779
        %v2096 = vpop.f32.mrf.mxu0
        %v2097 = vadd.f32 %v483, %v2096
        %v2098 = vpop.f32.mrf.mxu0
        %v2099 = vadd.f32 %v483, %v2098
        %2100 = vmatmul.bf16.gmra.mxu0 %v782
        %v2101 = vpop.f32.mrf.mxu0
        %v2102 = vadd.f32 %v483, %v2101
        %v2103 = vpop.f32.mrf.mxu0
        %v2104 = vadd.f32 %v483, %v2103
        %2105 = vmatmul.bf16.gmra.mxu0 %v785
        %v2106 = vpop.f32.mrf.mxu0
        %v2107 = vadd.f32 %v483, %v2106
        %v2108 = vpop.f32.mrf.mxu0
        %v2109 = vadd.f32 %v483, %v2108
        %2110 = vmatmul.bf16.gmra.mxu0 %v788
        %v2111 = vpop.f32.mrf.mxu0
        %v2112 = vadd.f32 %v483, %v2111
        %v2113 = vpop.f32.mrf.mxu0
        %v2114 = vadd.f32 %v483, %v2113
        %2115 = vmatmul.bf16.gmra.mxu0 %v791
        %v2116 = vpop.f32.mrf.mxu0
        %v2117 = vadd.f32 %v483, %v2116
        %v2118 = vpop.f32.mrf.mxu0
        %v2119 = vadd.f32 %v483, %v2118
        %2120 = vmatmul.bf16.gmra.mxu0 %v794
        %v2121 = vpop.f32.mrf.mxu0
        %v2122 = vadd.f32 %v483, %v2121
        %v2123 = vpop.f32.mrf.mxu0
        %v2124 = vadd.f32 %v483, %v2123
        %2125 = vmatmul.bf16.gmra.mxu0 %v797
        %v2126 = vpop.f32.mrf.mxu0
        %v2127 = vadd.f32 %v483, %v2126
        %v2128 = vpop.f32.mrf.mxu0
        %v2129 = vadd.f32 %v483, %v2128
        %2130 = vmatmul.bf16.gmra.mxu0 %v800
        %v2131 = vpop.f32.mrf.mxu0
        %v2132 = vadd.f32 %v483, %v2131
        %v2133 = vpop.f32.mrf.mxu0
        %v2134 = vadd.f32 %v483, %v2133
        %2135 = vmatmul.bf16.gmra.mxu0 %v803
        %v2136 = vpop.f32.mrf.mxu0
        %v2137 = vadd.f32 %v483, %v2136
        %v2138 = vpop.f32.mrf.mxu0
        %v2139 = vadd.f32 %v483, %v2138
        %2140 = vmatmul.bf16.gmra.mxu0 %v806
        %v2141 = vpop.f32.mrf.mxu0
        %v2142 = vadd.f32 %v483, %v2141
        %v2143 = vpop.f32.mrf.mxu0
        %v2144 = vadd.f32 %v483, %v2143
        %2145 = vmatmul.bf16.gmra.mxu0 %v809
        %v2146 = vpop.f32.mrf.mxu0
        %v2147 = vadd.f32 %v483, %v2146
        %v2148 = vpop.f32.mrf.mxu0
        %v2149 = vadd.f32 %v483, %v2148
        %2150 = vmatmul.bf16.gmra.mxu0 %v812
        %v2151 = vpop.f32.mrf.mxu0
        %v2152 = vadd.f32 %v483, %v2151
        %v2153 = vpop.f32.mrf.mxu0
        %v2154 = vadd.f32 %v483, %v2153
        %2155 = vmatmul.bf16.gmra.mxu0 %v815
        %v2156 = vpop.f32.mrf.mxu0
        %v2157 = vadd.f32 %v483, %v2156
        %v2158 = vpop.f32.mrf.mxu0
        %v2159 = vadd.f32 %v483, %v2158
        %2160 = vmatmul.bf16.gmra.mxu0 %v818
        %v2161 = vpop.f32.mrf.mxu0
        %v2162 = vadd.f32 %v483, %v2161
        %v2163 = vpop.f32.mrf.mxu0
        %v2164 = vadd.f32 %v483, %v2163
        %2165 = vmatmul.bf16.gmra.mxu0 %v821
        %v2166 = vpop.f32.mrf.mxu0
        %v2167 = vadd.f32 %v483, %v2166
        %v2168 = vpop.f32.mrf.mxu0
        %v2169 = vadd.f32 %v483, %v2168
        %2170 = vmatmul.bf16.gmra.mxu0 %v824
        %v2171 = vpop.f32.mrf.mxu0
        %v2172 = vadd.f32 %v483, %v2171
        %v2173 = vpop.f32.mrf.mxu0
        %v2174 = vadd.f32 %v483, %v2173
        %2175 = vmatmul.bf16.gmra.mxu0 %v827
        %v2176 = vpop.f32.mrf.mxu0
        %v2177 = vadd.f32 %v483, %v2176
        %v2178 = vpop.f32.mrf.mxu0
        %v2179 = vadd.f32 %v483, %v2178
        %2180 = vdwg.mxu0
        %v2181 = vmax.f32 %v839, 0.0
        %v2182 = vmax.f32 %v1008, 0.0
        %v2183 = vmax.f32 %v1177, 0.0
        %v2184 = vmax.f32 %v1346, 0.0
        %v2185 = vmax.f32 %v1515, 0.0
        %v2186 = vmax.f32 %v1684, 0.0
        %v2187 = vmax.f32 %v1853, 0.0
        %v2188 = vmax.f32 %v2022, 0.0
        %v2189 = vmax.f32 %v841, 0.0
        %v2190 = vmax.f32 %v1010, 0.0
        %v2191 = vmax.f32 %v1179, 0.0
        %v2192 = vmax.f32 %v1348, 0.0
        %v2193 = vmax.f32 %v1517, 0.0
        %v2194 = vmax.f32 %v1686, 0.0
        %v2195 = vmax.f32 %v1855, 0.0
        %v2196 = vmax.f32 %v2024, 0.0
        %v2197 = vmax.f32 %v844, 0.0
        %v2198 = vmax.f32 %v1013, 0.0
        %v2199 = vmax.f32 %v1182, 0.0
        %v2200 = vmax.f32 %v1351, 0.0
        %v2201 = vmax.f32 %v1520, 0.0
        %v2202 = vmax.f32 %v1689, 0.0
        %v2203 = vmax.f32 %v1858, 0.0
        %v2204 = vmax.f32 %v2027, 0.0
        %v2205 = vmax.f32 %v846, 0.0
        %v2206 = vmax.f32 %v1015, 0.0
        %v2207 = vmax.f32 %v1184, 0.0
        %v2208 = vmax.f32 %v1353, 0.0
        %v2209 = vmax.f32 %v1522, 0.0
        %v2210 = vmax.f32 %v1691, 0.0
        %v2211 = vmax.f32 %v1860, 0.0
        %v2212 = vmax.f32 %v2029, 0.0
        %v2213 = vmax.f32 %v849, 0.0
        %v2214 = vmax.f32 %v1018, 0.0
        %v2215 = vmax.f32 %v1187, 0.0
        %v2216 = vmax.f32 %v1356, 0.0
        %v2217 = vmax.f32 %v1525, 0.0
        %v2218 = vmax.f32 %v1694, 0.0
        %v2219 = vmax.f32 %v1863, 0.0
        %v2220 = vmax.f32 %v2032, 0.0
        %v2221 = vmax.f32 %v851, 0.0
        %v2222 = vmax.f32 %v1020, 0.0
        %v2223 = vmax.f32 %v1189, 0.0
        %v2224 = vmax.f32 %v1358, 0.0
        %v2225 = vmax.f32 %v1527, 0.0
        %v2226 = vmax.f32 %v1696, 0.0
        %v2227 = vmax.f32 %v1865, 0.0
        %v2228 = vmax.f32 %v2034, 0.0
        %v2229 = vmax.f32 %v854, 0.0
        %v2230 = vmax.f32 %v1023, 0.0
        %v2231 = vmax.f32 %v1192, 0.0
        %v2232 = vmax.f32 %v1361, 0.0
        %v2233 = vmax.f32 %v1530, 0.0
        %v2234 = vmax.f32 %v1699, 0.0
        %v2235 = vmax.f32 %v1868, 0.0
        %v2236 = vmax.f32 %v2037, 0.0
        %v2237 = vmax.f32 %v856, 0.0
        %v2238 = vmax.f32 %v1025, 0.0
        %v2239 = vmax.f32 %v1194, 0.0
        %v2240 = vmax.f32 %v1363, 0.0
        %v2241 = vmax.f32 %v1532, 0.0
        %v2242 = vmax.f32 %v1701, 0.0
        %v2243 = vmax.f32 %v1870, 0.0
        %v2244 = vmax.f32 %v2039, 0.0
        %v2245 = vmax.f32 %v859, 0.0
        %v2246 = vmax.f32 %v1028, 0.0
        %v2247 = vmax.f32 %v1197, 0.0
        %v2248 = vmax.f32 %v1366, 0.0
        %v2249 = vmax.f32 %v1535, 0.0
        %v2250 = vmax.f32 %v1704, 0.0
        %v2251 = vmax.f32 %v1873, 0.0
        %v2252 = vmax.f32 %v2042, 0.0
        %v2253 = vmax.f32 %v861, 0.0
        %v2254 = vmax.f32 %v1030, 0.0
        %v2255 = vmax.f32 %v1199, 0.0
        %v2256 = vmax.f32 %v1368, 0.0
        %v2257 = vmax.f32 %v1537, 0.0
        %v2258 = vmax.f32 %v1706, 0.0
        %v2259 = vmax.f32 %v1875, 0.0
        %v2260 = vmax.f32 %v2044, 0.0
        %v2261 = vmax.f32 %v864, 0.0
        %v2262 = vmax.f32 %v1033, 0.0
        %v2263 = vmax.f32 %v1202, 0.0
        %v2264 = vmax.f32 %v1371, 0.0
        %v2265 = vmax.f32 %v1540, 0.0
        %v2266 = vmax.f32 %v1709, 0.0
        %v2267 = vmax.f32 %v1878, 0.0
        %v2268 = vmax.f32 %v2047, 0.0
        %v2269 = vmax.f32 %v866, 0.0
        %v2270 = vmax.f32 %v1035, 0.0
        %v2271 = vmax.f32 %v1204, 0.0
        %v2272 = vmax.f32 %v1373, 0.0
        %v2273 = vmax.f32 %v1542, 0.0
        %v2274 = vmax.f32 %v1711, 0.0
        %v2275 = vmax.f32 %v1880, 0.0
        %v2276 = vmax.f32 %v2049, 0.0
        %v2277 = vmax.f32 %v869, 0.0
        %v2278 = vmax.f32 %v1038, 0.0
        %v2279 = vmax.f32 %v1207, 0.0
        %v2280 = vmax.f32 %v1376, 0.0
        %v2281 = vmax.f32 %v1545, 0.0
        %v2282 = vmax.f32 %v1714, 0.0
        %v2283 = vmax.f32 %v1883, 0.0
        %v2284 = vmax.f32 %v2052, 0.0
        %v2285 = vmax.f32 %v871, 0.0
        %v2286 = vmax.f32 %v1040, 0.0
        %v2287 = vmax.f32 %v1209, 0.0
        %v2288 = vmax.f32 %v1378, 0.0
        %v2289 = vmax.f32 %v1547, 0.0
        %v2290 = vmax.f32 %v1716, 0.0
        %v2291 = vmax.f32 %v1885, 0.0
        %v2292 = vmax.f32 %v2054, 0.0
        %v2293 = vmax.f32 %v874, 0.0
        %v2294 = vmax.f32 %v1043, 0.0
        %v2295 = vmax.f32 %v1212, 0.0
        %v2296 = vmax.f32 %v1381, 0.0
        %v2297 = vmax.f32 %v1550, 0.0
        %v2298 = vmax.f32 %v1719, 0.0
        %v2299 = vmax.f32 %v1888, 0.0
        %v2300 = vmax.f32 %v2057, 0.0
        %v2301 = vmax.f32 %v876, 0.0
        %v2302 = vmax.f32 %v1045, 0.0
        %v2303 = vmax.f32 %v1214, 0.0
        %v2304 = vmax.f32 %v1383, 0.0
        %v2305 = vmax.f32 %v1552, 0.0
        %v2306 = vmax.f32 %v1721, 0.0
        %v2307 = vmax.f32 %v1890, 0.0
        %v2308 = vmax.f32 %v2059, 0.0
        %v2309 = vmax.f32 %v879, 0.0
        %v2310 = vmax.f32 %v1048, 0.0
        %v2311 = vmax.f32 %v1217, 0.0
        %v2312 = vmax.f32 %v1386, 0.0
        %v2313 = vmax.f32 %v1555, 0.0
        %v2314 = vmax.f32 %v1724, 0.0
        %v2315 = vmax.f32 %v1893, 0.0
        %v2316 = vmax.f32 %v2062, 0.0
        %v2317 = vmax.f32 %v881, 0.0
        %v2318 = vmax.f32 %v1050, 0.0
        %v2319 = vmax.f32 %v1219, 0.0
        %v2320 = vmax.f32 %v1388, 0.0
        %v2321 = vmax.f32 %v1557, 0.0
        %v2322 = vmax.f32 %v1726, 0.0
        %v2323 = vmax.f32 %v1895, 0.0
        %v2324 = vmax.f32 %v2064, 0.0
        %v2325 = vmax.f32 %v884, 0.0
        %v2326 = vmax.f32 %v1053, 0.0
        %v2327 = vmax.f32 %v1222, 0.0
        %v2328 = vmax.f32 %v1391, 0.0
        %v2329 = vmax.f32 %v1560, 0.0
        %v2330 = vmax.f32 %v1729, 0.0
        %v2331 = vmax.f32 %v1898, 0.0
        %v2332 = vmax.f32 %v2067, 0.0
        %v2333 = vmax.f32 %v886, 0.0
        %v2334 = vmax.f32 %v1055, 0.0
        %v2335 = vmax.f32 %v1224, 0.0
        %v2336 = vmax.f32 %v1393, 0.0
        %v2337 = vmax.f32 %v1562, 0.0
        %v2338 = vmax.f32 %v1731, 0.0
        %v2339 = vmax.f32 %v1900, 0.0
        %v2340 = vmax.f32 %v2069, 0.0
        %v2341 = vmax.f32 %v889, 0.0
        %v2342 = vmax.f32 %v1058, 0.0
        %v2343 = vmax.f32 %v1227, 0.0
        %v2344 = vmax.f32 %v1396, 0.0
        %v2345 = vmax.f32 %v1565, 0.0
        %v2346 = vmax.f32 %v1734, 0.0
        %v2347 = vmax.f32 %v1903, 0.0
        %v2348 = vmax.f32 %v2072, 0.0
        %v2349 = vmax.f32 %v891, 0.0
        %v2350 = vmax.f32 %v1060, 0.0
        %v2351 = vmax.f32 %v1229, 0.0
        %v2352 = vmax.f32 %v1398, 0.0
        %v2353 = vmax.f32 %v1567, 0.0
        %v2354 = vmax.f32 %v1736, 0.0
        %v2355 = vmax.f32 %v1905, 0.0
        %v2356 = vmax.f32 %v2074, 0.0
        %v2357 = vmax.f32 %v894, 0.0
        %v2358 = vmax.f32 %v1063, 0.0
        %v2359 = vmax.f32 %v1232, 0.0
        %v2360 = vmax.f32 %v1401, 0.0
        %v2361 = vmax.f32 %v1570, 0.0
        %v2362 = vmax.f32 %v1739, 0.0
        %v2363 = vmax.f32 %v1908, 0.0
        %v2364 = vmax.f32 %v2077, 0.0
        %v2365 = vmax.f32 %v896, 0.0
        %v2366 = vmax.f32 %v1065, 0.0
        %v2367 = vmax.f32 %v1234, 0.0
        %v2368 = vmax.f32 %v1403, 0.0
        %v2369 = vmax.f32 %v1572, 0.0
        %v2370 = vmax.f32 %v1741, 0.0
        %v2371 = vmax.f32 %v1910, 0.0
        %v2372 = vmax.f32 %v2079, 0.0
        %v2373 = vmax.f32 %v899, 0.0
        %v2374 = vmax.f32 %v1068, 0.0
        %v2375 = vmax.f32 %v1237, 0.0
        %v2376 = vmax.f32 %v1406, 0.0
        %v2377 = vmax.f32 %v1575, 0.0
        %v2378 = vmax.f32 %v1744, 0.0
        %v2379 = vmax.f32 %v1913, 0.0
        %v2380 = vmax.f32 %v2082, 0.0
        %v2381 = vmax.f32 %v901, 0.0
        %v2382 = vmax.f32 %v1070, 0.0
        %v2383 = vmax.f32 %v1239, 0.0
        %v2384 = vmax.f32 %v1408, 0.0
        %v2385 = vmax.f32 %v1577, 0.0
        %v2386 = vmax.f32 %v1746, 0.0
        %v2387 = vmax.f32 %v1915, 0.0
        %v2388 = vmax.f32 %v2084, 0.0
        %v2389 = vmax.f32 %v904, 0.0
        %v2390 = vmax.f32 %v1073, 0.0
        %v2391 = vmax.f32 %v1242, 0.0
        %v2392 = vmax.f32 %v1411, 0.0
        %v2393 = vmax.f32 %v1580, 0.0
        %v2394 = vmax.f32 %v1749, 0.0
        %v2395 = vmax.f32 %v1918, 0.0
        %v2396 = vmax.f32 %v2087, 0.0
        %v2397 = vmax.f32 %v906, 0.0
        %v2398 = vmax.f32 %v1075, 0.0
        %v2399 = vmax.f32 %v1244, 0.0
        %v2400 = vmax.f32 %v1413, 0.0
        %v2401 = vmax.f32 %v1582, 0.0
        %v2402 = vmax.f32 %v1751, 0.0
        %v2403 = vmax.f32 %v1920, 0.0
        %v2404 = vmax.f32 %v2089, 0.0
        %v2405 = vmax.f32 %v909, 0.0
        %v2406 = vmax.f32 %v1078, 0.0
        %v2407 = vmax.f32 %v1247, 0.0
        %v2408 = vmax.f32 %v1416, 0.0
        %v2409 = vmax.f32 %v1585, 0.0
        %v2410 = vmax.f32 %v1754, 0.0
        %v2411 = vmax.f32 %v1923, 0.0
        %v2412 = vmax.f32 %v2092, 0.0
        %v2413 = vmax.f32 %v911, 0.0
        %v2414 = vmax.f32 %v1080, 0.0
        %v2415 = vmax.f32 %v1249, 0.0
        %v2416 = vmax.f32 %v1418, 0.0
        %v2417 = vmax.f32 %v1587, 0.0
        %v2418 = vmax.f32 %v1756, 0.0
        %v2419 = vmax.f32 %v1925, 0.0
        %v2420 = vmax.f32 %v2094, 0.0
        %v2421 = vmax.f32 %v914, 0.0
        %v2422 = vmax.f32 %v1083, 0.0
        %v2423 = vmax.f32 %v1252, 0.0
        %v2424 = vmax.f32 %v1421, 0.0
        %v2425 = vmax.f32 %v1590, 0.0
        %v2426 = vmax.f32 %v1759, 0.0
        %v2427 = vmax.f32 %v1928, 0.0
        %v2428 = vmax.f32 %v2097, 0.0
        %v2429 = vmax.f32 %v916, 0.0
        %v2430 = vmax.f32 %v1085, 0.0
        %v2431 = vmax.f32 %v1254, 0.0
        %v2432 = vmax.f32 %v1423, 0.0
        %v2433 = vmax.f32 %v1592, 0.0
        %v2434 = vmax.f32 %v1761, 0.0
        %v2435 = vmax.f32 %v1930, 0.0
        %v2436 = vmax.f32 %v2099, 0.0
        %v2437 = vmax.f32 %v919, 0.0
        %v2438 = vmax.f32 %v1088, 0.0
        %v2439 = vmax.f32 %v1257, 0.0
        %v2440 = vmax.f32 %v1426, 0.0
        %v2441 = vmax.f32 %v1595, 0.0
        %v2442 = vmax.f32 %v1764, 0.0
        %v2443 = vmax.f32 %v1933, 0.0
        %v2444 = vmax.f32 %v2102, 0.0
        %v2445 = vmax.f32 %v921, 0.0
        %v2446 = vmax.f32 %v1090, 0.0
        %v2447 = vmax.f32 %v1259, 0.0
        %v2448 = vmax.f32 %v1428, 0.0
        %v2449 = vmax.f32 %v1597, 0.0
        %v2450 = vmax.f32 %v1766, 0.0
        %v2451 = vmax.f32 %v1935, 0.0
        %v2452 = vmax.f32 %v2104, 0.0
        %v2453 = vmax.f32 %v924, 0.0
        %v2454 = vmax.f32 %v1093, 0.0
        %v2455 = vmax.f32 %v1262, 0.0
        %v2456 = vmax.f32 %v1431, 0.0
        %v2457 = vmax.f32 %v1600, 0.0
        %v2458 = vmax.f32 %v1769, 0.0
        %v2459 = vmax.f32 %v1938, 0.0
        %v2460 = vmax.f32 %v2107, 0.0
        %v2461 = vmax.f32 %v926, 0.0
        %v2462 = vmax.f32 %v1095, 0.0
        %v2463 = vmax.f32 %v1264, 0.0
        %v2464 = vmax.f32 %v1433, 0.0
        %v2465 = vmax.f32 %v1602, 0.0
        %v2466 = vmax.f32 %v1771, 0.0
        %v2467 = vmax.f32 %v1940, 0.0
        %v2468 = vmax.f32 %v2109, 0.0
        %v2469 = vmax.f32 %v929, 0.0
        %v2470 = vmax.f32 %v1098, 0.0
        %v2471 = vmax.f32 %v1267, 0.0
        %v2472 = vmax.f32 %v1436, 0.0
        %v2473 = vmax.f32 %v1605, 0.0
        %v2474 = vmax.f32 %v1774, 0.0
        %v2475 = vmax.f32 %v1943, 0.0
        %v2476 = vmax.f32 %v2112, 0.0
        %v2477 = vmax.f32 %v931, 0.0
        %v2478 = vmax.f32 %v1100, 0.0
        %v2479 = vmax.f32 %v1269, 0.0
        %v2480 = vmax.f32 %v1438, 0.0
        %v2481 = vmax.f32 %v1607, 0.0
        %v2482 = vmax.f32 %v1776, 0.0
        %v2483 = vmax.f32 %v1945, 0.0
        %v2484 = vmax.f32 %v2114, 0.0
        %v2485 = vmax.f32 %v934, 0.0
        %v2486 = vmax.f32 %v1103, 0.0
        %v2487 = vmax.f32 %v1272, 0.0
        %v2488 = vmax.f32 %v1441, 0.0
        %v2489 = vmax.f32 %v1610, 0.0
        %v2490 = vmax.f32 %v1779, 0.0
        %v2491 = vmax.f32 %v1948, 0.0
        %v2492 = vmax.f32 %v2117, 0.0
        %v2493 = vmax.f32 %v936, 0.0
        %v2494 = vmax.f32 %v1105, 0.0
        %v2495 = vmax.f32 %v1274, 0.0
        %v2496 = vmax.f32 %v1443, 0.0
        %v2497 = vmax.f32 %v1612, 0.0
        %v2498 = vmax.f32 %v1781, 0.0
        %v2499 = vmax.f32 %v1950, 0.0
        %v2500 = vmax.f32 %v2119, 0.0
        %v2501 = vmax.f32 %v939, 0.0
        %v2502 = vmax.f32 %v1108, 0.0
        %v2503 = vmax.f32 %v1277, 0.0
        %v2504 = vmax.f32 %v1446, 0.0
        %v2505 = vmax.f32 %v1615, 0.0
        %v2506 = vmax.f32 %v1784, 0.0
        %v2507 = vmax.f32 %v1953, 0.0
        %v2508 = vmax.f32 %v2122, 0.0
        %v2509 = vmax.f32 %v941, 0.0
        %v2510 = vmax.f32 %v1110, 0.0
        %v2511 = vmax.f32 %v1279, 0.0
        %v2512 = vmax.f32 %v1448, 0.0
        %v2513 = vmax.f32 %v1617, 0.0
        %v2514 = vmax.f32 %v1786, 0.0
        %v2515 = vmax.f32 %v1955, 0.0
        %v2516 = vmax.f32 %v2124, 0.0
        %v2517 = vmax.f32 %v944, 0.0
        %v2518 = vmax.f32 %v1113, 0.0
        %v2519 = vmax.f32 %v1282, 0.0
        %v2520 = vmax.f32 %v1451, 0.0
        %v2521 = vmax.f32 %v1620, 0.0
        %v2522 = vmax.f32 %v1789, 0.0
        %v2523 = vmax.f32 %v1958, 0.0
        %v2524 = vmax.f32 %v2127, 0.0
        %v2525 = vmax.f32 %v946, 0.0
        %v2526 = vmax.f32 %v1115, 0.0
        %v2527 = vmax.f32 %v1284, 0.0
        %v2528 = vmax.f32 %v1453, 0.0
        %v2529 = vmax.f32 %v1622, 0.0
        %v2530 = vmax.f32 %v1791, 0.0
        %v2531 = vmax.f32 %v1960, 0.0
        %v2532 = vmax.f32 %v2129, 0.0
        %v2533 = vmax.f32 %v949, 0.0
        %v2534 = vmax.f32 %v1118, 0.0
        %v2535 = vmax.f32 %v1287, 0.0
        %v2536 = vmax.f32 %v1456, 0.0
        %v2537 = vmax.f32 %v1625, 0.0
        %v2538 = vmax.f32 %v1794, 0.0
        %v2539 = vmax.f32 %v1963, 0.0
        %v2540 = vmax.f32 %v2132, 0.0
        %v2541 = vmax.f32 %v951, 0.0
        %v2542 = vmax.f32 %v1120, 0.0
        %v2543 = vmax.f32 %v1289, 0.0
        %v2544 = vmax.f32 %v1458, 0.0
        %v2545 = vmax.f32 %v1627, 0.0
        %v2546 = vmax.f32 %v1796, 0.0
        %v2547 = vmax.f32 %v1965, 0.0
        %v2548 = vmax.f32 %v2134, 0.0
        %v2549 = vmax.f32 %v954, 0.0
        %v2550 = vmax.f32 %v1123, 0.0
        %v2551 = vmax.f32 %v1292, 0.0
        %v2552 = vmax.f32 %v1461, 0.0
        %v2553 = vmax.f32 %v1630, 0.0
        %v2554 = vmax.f32 %v1799, 0.0
        %v2555 = vmax.f32 %v1968, 0.0
        %v2556 = vmax.f32 %v2137, 0.0
        %v2557 = vmax.f32 %v956, 0.0
        %v2558 = vmax.f32 %v1125, 0.0
        %v2559 = vmax.f32 %v1294, 0.0
        %v2560 = vmax.f32 %v1463, 0.0
        %v2561 = vmax.f32 %v1632, 0.0
        %v2562 = vmax.f32 %v1801, 0.0
        %v2563 = vmax.f32 %v1970, 0.0
        %v2564 = vmax.f32 %v2139, 0.0
        %v2565 = vmax.f32 %v959, 0.0
        %v2566 = vmax.f32 %v1128, 0.0
        %v2567 = vmax.f32 %v1297, 0.0
        %v2568 = vmax.f32 %v1466, 0.0
        %v2569 = vmax.f32 %v1635, 0.0
        %v2570 = vmax.f32 %v1804, 0.0
        %v2571 = vmax.f32 %v1973, 0.0
        %v2572 = vmax.f32 %v2142, 0.0
        %v2573 = vmax.f32 %v961, 0.0
        %v2574 = vmax.f32 %v1130, 0.0
        %v2575 = vmax.f32 %v1299, 0.0
        %v2576 = vmax.f32 %v1468, 0.0
        %v2577 = vmax.f32 %v1637, 0.0
        %v2578 = vmax.f32 %v1806, 0.0
        %v2579 = vmax.f32 %v1975, 0.0
        %v2580 = vmax.f32 %v2144, 0.0
        %v2581 = vmax.f32 %v964, 0.0
        %v2582 = vmax.f32 %v1133, 0.0
        %v2583 = vmax.f32 %v1302, 0.0
        %v2584 = vmax.f32 %v1471, 0.0
        %v2585 = vmax.f32 %v1640, 0.0
        %v2586 = vmax.f32 %v1809, 0.0
        %v2587 = vmax.f32 %v1978, 0.0
        %v2588 = vmax.f32 %v2147, 0.0
        %v2589 = vmax.f32 %v966, 0.0
        %v2590 = vmax.f32 %v1135, 0.0
        %v2591 = vmax.f32 %v1304, 0.0
        %v2592 = vmax.f32 %v1473, 0.0
        %v2593 = vmax.f32 %v1642, 0.0
        %v2594 = vmax.f32 %v1811, 0.0
        %v2595 = vmax.f32 %v1980, 0.0
        %v2596 = vmax.f32 %v2149, 0.0
        %v2597 = vmax.f32 %v969, 0.0
        %v2598 = vmax.f32 %v1138, 0.0
        %v2599 = vmax.f32 %v1307, 0.0
        %v2600 = vmax.f32 %v1476, 0.0
        %v2601 = vmax.f32 %v1645, 0.0
        %v2602 = vmax.f32 %v1814, 0.0
        %v2603 = vmax.f32 %v1983, 0.0
        %v2604 = vmax.f32 %v2152, 0.0
        %v2605 = vmax.f32 %v971, 0.0
        %v2606 = vmax.f32 %v1140, 0.0
        %v2607 = vmax.f32 %v1309, 0.0
        %v2608 = vmax.f32 %v1478, 0.0
        %v2609 = vmax.f32 %v1647, 0.0
        %v2610 = vmax.f32 %v1816, 0.0
        %v2611 = vmax.f32 %v1985, 0.0
        %v2612 = vmax.f32 %v2154, 0.0
        %v2613 = vmax.f32 %v974, 0.0
        %v2614 = vmax.f32 %v1143, 0.0
        %v2615 = vmax.f32 %v1312, 0.0
        %v2616 = vmax.f32 %v1481, 0.0
        %v2617 = vmax.f32 %v1650, 0.0
        %v2618 = vmax.f32 %v1819, 0.0
        %v2619 = vmax.f32 %v1988, 0.0
        %v2620 = vmax.f32 %v2157, 0.0
        %v2621 = vmax.f32 %v976, 0.0
        %v2622 = vmax.f32 %v1145, 0.0
        %v2623 = vmax.f32 %v1314, 0.0
        %v2624 = vmax.f32 %v1483, 0.0
        %v2625 = vmax.f32 %v1652, 0.0
        %v2626 = vmax.f32 %v1821, 0.0
        %v2627 = vmax.f32 %v1990, 0.0
        %v2628 = vmax.f32 %v2159, 0.0
        %v2629 = vmax.f32 %v979, 0.0
        %v2630 = vmax.f32 %v1148, 0.0
        %v2631 = vmax.f32 %v1317, 0.0
        %v2632 = vmax.f32 %v1486, 0.0
        %v2633 = vmax.f32 %v1655, 0.0
        %v2634 = vmax.f32 %v1824, 0.0
        %v2635 = vmax.f32 %v1993, 0.0
        %v2636 = vmax.f32 %v2162, 0.0
        %v2637 = vmax.f32 %v981, 0.0
        %v2638 = vmax.f32 %v1150, 0.0
        %v2639 = vmax.f32 %v1319, 0.0
        %v2640 = vmax.f32 %v1488, 0.0
        %v2641 = vmax.f32 %v1657, 0.0
        %v2642 = vmax.f32 %v1826, 0.0
        %v2643 = vmax.f32 %v1995, 0.0
        %v2644 = vmax.f32 %v2164, 0.0
        %v2645 = vmax.f32 %v984, 0.0
        %v2646 = vmax.f32 %v1153, 0.0
        %v2647 = vmax.f32 %v1322, 0.0
        %v2648 = vmax.f32 %v1491, 0.0
        %v2649 = vmax.f32 %v1660, 0.0
        %v2650 = vmax.f32 %v1829, 0.0
        %v2651 = vmax.f32 %v1998, 0.0
        %v2652 = vmax.f32 %v2167, 0.0
        %v2653 = vmax.f32 %v986, 0.0
        %v2654 = vmax.f32 %v1155, 0.0
        %v2655 = vmax.f32 %v1324, 0.0
        %v2656 = vmax.f32 %v1493, 0.0
        %v2657 = vmax.f32 %v1662, 0.0
        %v2658 = vmax.f32 %v1831, 0.0
        %v2659 = vmax.f32 %v2000, 0.0
        %v2660 = vmax.f32 %v2169, 0.0
        %v2661 = vmax.f32 %v989, 0.0
        %v2662 = vmax.f32 %v1158, 0.0
        %v2663 = vmax.f32 %v1327, 0.0
        %v2664 = vmax.f32 %v1496, 0.0
        %v2665 = vmax.f32 %v1665, 0.0
        %v2666 = vmax.f32 %v1834, 0.0
        %v2667 = vmax.f32 %v2003, 0.0
        %v2668 = vmax.f32 %v2172, 0.0
        %v2669 = vmax.f32 %v991, 0.0
        %v2670 = vmax.f32 %v1160, 0.0
        %v2671 = vmax.f32 %v1329, 0.0
        %v2672 = vmax.f32 %v1498, 0.0
        %v2673 = vmax.f32 %v1667, 0.0
        %v2674 = vmax.f32 %v1836, 0.0
        %v2675 = vmax.f32 %v2005, 0.0
        %v2676 = vmax.f32 %v2174, 0.0
        %v2677 = vmax.f32 %v994, 0.0
        %v2678 = vmax.f32 %v1163, 0.0
        %v2679 = vmax.f32 %v1332, 0.0
        %v2680 = vmax.f32 %v1501, 0.0
        %v2681 = vmax.f32 %v1670, 0.0
        %v2682 = vmax.f32 %v1839, 0.0
        %v2683 = vmax.f32 %v2008, 0.0
        %v2684 = vmax.f32 %v2177, 0.0
        %v2685 = vmax.f32 %v996, 0.0
        %v2686 = vmax.f32 %v1165, 0.0
        %v2687 = vmax.f32 %v1334, 0.0
        %v2688 = vmax.f32 %v1503, 0.0
        %v2689 = vmax.f32 %v1672, 0.0
        %v2690 = vmax.f32 %v1841, 0.0
        %v2691 = vmax.f32 %v2010, 0.0
        %v2692 = vmax.f32 %v2179, 0.0
        %v2693 = vadd.f32 %v2181, %v2189
        %v2694 = vadd.f32 %v2693, %v2197
        %v2695 = vadd.f32 %v2694, %v2205
        %v2696 = vadd.f32 %v2695, %v2213
        %v2697 = vadd.f32 %v2696, %v2221
        %v2698 = vadd.f32 %v2697, %v2229
        %v2699 = vadd.f32 %v2698, %v2237
        %v2700 = vadd.f32 %v2699, %v2245
        %v2701 = vadd.f32 %v2700, %v2253
        %v2702 = vadd.f32 %v2701, %v2261
        %v2703 = vadd.f32 %v2702, %v2269
        %v2704 = vadd.f32 %v2703, %v2277
        %v2705 = vadd.f32 %v2704, %v2285
        %v2706 = vadd.f32 %v2705, %v2293
        %v2707 = vadd.f32 %v2706, %v2301
        %v2708 = vadd.f32 %v2707, %v2309
        %v2709 = vadd.f32 %v2708, %v2317
        %v2710 = vadd.f32 %v2709, %v2325
        %v2711 = vadd.f32 %v2710, %v2333
        %v2712 = vadd.f32 %v2711, %v2341
        %v2713 = vadd.f32 %v2712, %v2349
        %v2714 = vadd.f32 %v2713, %v2357
        %v2715 = vadd.f32 %v2714, %v2365
        %v2716 = vadd.f32 %v2715, %v2373
        %v2717 = vadd.f32 %v2716, %v2381
        %v2718 = vadd.f32 %v2717, %v2389
        %v2719 = vadd.f32 %v2718, %v2397
        %v2720 = vadd.f32 %v2719, %v2405
        %v2721 = vadd.f32 %v2720, %v2413
        %v2722 = vadd.f32 %v2721, %v2421
        %v2723 = vadd.f32 %v2722, %v2429
        %v2724 = vrot.slane %v2723, 4
        %v2725 = vadd.f32 %v2723, %v2724
        %v2726 = vrot.slane %v2725, 2
        %v2727 = vadd.f32 %v2725, %v2726
        %v2728 = vrot.slane %v2727, 1
        %v2729 = vadd.f32 %v2727, %v2728
        %v2730 = vadd.f32 %v2182, %v2190
        %v2731 = vadd.f32 %v2730, %v2198
        %v2732 = vadd.f32 %v2731, %v2206
        %v2733 = vadd.f32 %v2732, %v2214
        %v2734 = vadd.f32 %v2733, %v2222
        %v2735 = vadd.f32 %v2734, %v2230
        %v2736 = vadd.f32 %v2735, %v2238
        %v2737 = vadd.f32 %v2736, %v2246
        %v2738 = vadd.f32 %v2737, %v2254
        %v2739 = vadd.f32 %v2738, %v2262
        %v2740 = vadd.f32 %v2739, %v2270
        %v2741 = vadd.f32 %v2740, %v2278
        %v2742 = vadd.f32 %v2741, %v2286
        %v2743 = vadd.f32 %v2742, %v2294
        %v2744 = vadd.f32 %v2743, %v2302
        %v2745 = vadd.f32 %v2744, %v2310
        %v2746 = vadd.f32 %v2745, %v2318
        %v2747 = vadd.f32 %v2746, %v2326
        %v2748 = vadd.f32 %v2747, %v2334
        %v2749 = vadd.f32 %v2748, %v2342
        %v2750 = vadd.f32 %v2749, %v2350
        %v2751 = vadd.f32 %v2750, %v2358
        %v2752 = vadd.f32 %v2751, %v2366
        %v2753 = vadd.f32 %v2752, %v2374
        %v2754 = vadd.f32 %v2753, %v2382
        %v2755 = vadd.f32 %v2754, %v2390
        %v2756 = vadd.f32 %v2755, %v2398
        %v2757 = vadd.f32 %v2756, %v2406
        %v2758 = vadd.f32 %v2757, %v2414
        %v2759 = vadd.f32 %v2758, %v2422
        %v2760 = vadd.f32 %v2759, %v2430
        %v2761 = vrot.slane %v2760, 4
        %v2762 = vadd.f32 %v2760, %v2761
        %v2763 = vrot.slane %v2762, 2
        %v2764 = vadd.f32 %v2762, %v2763
        %v2765 = vrot.slane %v2764, 1
        %v2766 = vadd.f32 %v2764, %v2765
        %v2767 = vadd.f32 %v2183, %v2191
        %v2768 = vadd.f32 %v2767, %v2199
        %v2769 = vadd.f32 %v2768, %v2207
        %v2770 = vadd.f32 %v2769, %v2215
        %v2771 = vadd.f32 %v2770, %v2223
        %v2772 = vadd.f32 %v2771, %v2231
        %v2773 = vadd.f32 %v2772, %v2239
        %v2774 = vadd.f32 %v2773, %v2247
        %v2775 = vadd.f32 %v2774, %v2255
        %v2776 = vadd.f32 %v2775, %v2263
        %v2777 = vadd.f32 %v2776, %v2271
        %v2778 = vadd.f32 %v2777, %v2279
        %v2779 = vadd.f32 %v2778, %v2287
        %v2780 = vadd.f32 %v2779, %v2295
        %v2781 = vadd.f32 %v2780, %v2303
        %v2782 = vadd.f32 %v2781, %v2311
        %v2783 = vadd.f32 %v2782, %v2319
        %v2784 = vadd.f32 %v2783, %v2327
        %v2785 = vadd.f32 %v2784, %v2335
        %v2786 = vadd.f32 %v2785, %v2343
        %v2787 = vadd.f32 %v2786, %v2351
        %v2788 = vadd.f32 %v2787, %v2359
        %v2789 = vadd.f32 %v2788, %v2367
        %v2790 = vadd.f32 %v2789, %v2375
        %v2791 = vadd.f32 %v2790, %v2383
        %v2792 = vadd.f32 %v2791, %v2391
        %v2793 = vadd.f32 %v2792, %v2399
        %v2794 = vadd.f32 %v2793, %v2407
        %v2795 = vadd.f32 %v2794, %v2415
        %v2796 = vadd.f32 %v2795, %v2423
        %v2797 = vadd.f32 %v2796, %v2431
        %v2798 = vrot.slane %v2797, 4
        %v2799 = vadd.f32 %v2797, %v2798
        %v2800 = vrot.slane %v2799, 2
        %v2801 = vadd.f32 %v2799, %v2800
        %v2802 = vrot.slane %v2801, 1
        %v2803 = vadd.f32 %v2801, %v2802
        %v2804 = vadd.f32 %v2184, %v2192
        %v2805 = vadd.f32 %v2804, %v2200
        %v2806 = vadd.f32 %v2805, %v2208
        %v2807 = vadd.f32 %v2806, %v2216
        %v2808 = vadd.f32 %v2807, %v2224
        %v2809 = vadd.f32 %v2808, %v2232
        %v2810 = vadd.f32 %v2809, %v2240
        %v2811 = vadd.f32 %v2810, %v2248
        %v2812 = vadd.f32 %v2811, %v2256
        %v2813 = vadd.f32 %v2812, %v2264
        %v2814 = vadd.f32 %v2813, %v2272
        %v2815 = vadd.f32 %v2814, %v2280
        %v2816 = vadd.f32 %v2815, %v2288
        %v2817 = vadd.f32 %v2816, %v2296
        %v2818 = vadd.f32 %v2817, %v2304
        %v2819 = vadd.f32 %v2818, %v2312
        %v2820 = vadd.f32 %v2819, %v2320
        %v2821 = vadd.f32 %v2820, %v2328
        %v2822 = vadd.f32 %v2821, %v2336
        %v2823 = vadd.f32 %v2822, %v2344
        %v2824 = vadd.f32 %v2823, %v2352
        %v2825 = vadd.f32 %v2824, %v2360
        %v2826 = vadd.f32 %v2825, %v2368
        %v2827 = vadd.f32 %v2826, %v2376
        %v2828 = vadd.f32 %v2827, %v2384
        %v2829 = vadd.f32 %v2828, %v2392
        %v2830 = vadd.f32 %v2829, %v2400
        %v2831 = vadd.f32 %v2830, %v2408
        %v2832 = vadd.f32 %v2831, %v2416
        %v2833 = vadd.f32 %v2832, %v2424
        %v2834 = vadd.f32 %v2833, %v2432
        %v2835 = vrot.slane %v2834, 4
        %v2836 = vadd.f32 %v2834, %v2835
        %v2837 = vrot.slane %v2836, 2
        %v2838 = vadd.f32 %v2836, %v2837
        %v2839 = vrot.slane %v2838, 1
        %v2840 = vadd.f32 %v2838, %v2839
        %v2841 = vadd.f32 %v2185, %v2193
        %v2842 = vadd.f32 %v2841, %v2201
        %v2843 = vadd.f32 %v2842, %v2209
        %v2844 = vadd.f32 %v2843, %v2217
        %v2845 = vadd.f32 %v2844, %v2225
        %v2846 = vadd.f32 %v2845, %v2233
        %v2847 = vadd.f32 %v2846, %v2241
        %v2848 = vadd.f32 %v2847, %v2249
        %v2849 = vadd.f32 %v2848, %v2257
        %v2850 = vadd.f32 %v2849, %v2265
        %v2851 = vadd.f32 %v2850, %v2273
        %v2852 = vadd.f32 %v2851, %v2281
        %v2853 = vadd.f32 %v2852, %v2289
        %v2854 = vadd.f32 %v2853, %v2297
        %v2855 = vadd.f32 %v2854, %v2305
        %v2856 = vadd.f32 %v2855, %v2313
        %v2857 = vadd.f32 %v2856, %v2321
        %v2858 = vadd.f32 %v2857, %v2329
        %v2859 = vadd.f32 %v2858, %v2337
        %v2860 = vadd.f32 %v2859, %v2345
        %v2861 = vadd.f32 %v2860, %v2353
        %v2862 = vadd.f32 %v2861, %v2361
        %v2863 = vadd.f32 %v2862, %v2369
        %v2864 = vadd.f32 %v2863, %v2377
        %v2865 = vadd.f32 %v2864, %v2385
        %v2866 = vadd.f32 %v2865, %v2393
        %v2867 = vadd.f32 %v2866, %v2401
        %v2868 = vadd.f32 %v2867, %v2409
        %v2869 = vadd.f32 %v2868, %v2417
        %v2870 = vadd.f32 %v2869, %v2425
        %v2871 = vadd.f32 %v2870, %v2433
        %v2872 = vrot.slane %v2871, 4
        %v2873 = vadd.f32 %v2871, %v2872
        %v2874 = vrot.slane %v2873, 2
        %v2875 = vadd.f32 %v2873, %v2874
        %v2876 = vrot.slane %v2875, 1
        %v2877 = vadd.f32 %v2875, %v2876
        %v2878 = vadd.f32 %v2186, %v2194
        %v2879 = vadd.f32 %v2878, %v2202
        %v2880 = vadd.f32 %v2879, %v2210
        %v2881 = vadd.f32 %v2880, %v2218
        %v2882 = vadd.f32 %v2881, %v2226
        %v2883 = vadd.f32 %v2882, %v2234
        %v2884 = vadd.f32 %v2883, %v2242
        %v2885 = vadd.f32 %v2884, %v2250
        %v2886 = vadd.f32 %v2885, %v2258
        %v2887 = vadd.f32 %v2886, %v2266
        %v2888 = vadd.f32 %v2887, %v2274
        %v2889 = vadd.f32 %v2888, %v2282
        %v2890 = vadd.f32 %v2889, %v2290
        %v2891 = vadd.f32 %v2890, %v2298
        %v2892 = vadd.f32 %v2891, %v2306
        %v2893 = vadd.f32 %v2892, %v2314
        %v2894 = vadd.f32 %v2893, %v2322
        %v2895 = vadd.f32 %v2894, %v2330
        %v2896 = vadd.f32 %v2895, %v2338
        %v2897 = vadd.f32 %v2896, %v2346
        %v2898 = vadd.f32 %v2897, %v2354
        %v2899 = vadd.f32 %v2898, %v2362
        %v2900 = vadd.f32 %v2899, %v2370
        %v2901 = vadd.f32 %v2900, %v2378
        %v2902 = vadd.f32 %v2901, %v2386
        %v2903 = vadd.f32 %v2902, %v2394
        %v2904 = vadd.f32 %v2903, %v2402
        %v2905 = vadd.f32 %v2904, %v2410
        %v2906 = vadd.f32 %v2905, %v2418
        %v2907 = vadd.f32 %v2906, %v2426
        %v2908 = vadd.f32 %v2907, %v2434
        %v2909 = vrot.slane %v2908, 4
        %v2910 = vadd.f32 %v2908, %v2909
        %v2911 = vrot.slane %v2910, 2
        %v2912 = vadd.f32 %v2910, %v2911
        %v2913 = vrot.slane %v2912, 1
        %v2914 = vadd.f32 %v2912, %v2913
        %v2915 = vadd.f32 %v2187, %v2195
        %v2916 = vadd.f32 %v2915, %v2203
        %v2917 = vadd.f32 %v2916, %v2211
        %v2918 = vadd.f32 %v2917, %v2219
        %v2919 = vadd.f32 %v2918, %v2227
        %v2920 = vadd.f32 %v2919, %v2235
        %v2921 = vadd.f32 %v2920, %v2243
        %v2922 = vadd.f32 %v2921, %v2251
        %v2923 = vadd.f32 %v2922, %v2259
        %v2924 = vadd.f32 %v2923, %v2267
        %v2925 = vadd.f32 %v2924, %v2275
        %v2926 = vadd.f32 %v2925, %v2283
        %v2927 = vadd.f32 %v2926, %v2291
        %v2928 = vadd.f32 %v2927, %v2299
        %v2929 = vadd.f32 %v2928, %v2307
        %v2930 = vadd.f32 %v2929, %v2315
        %v2931 = vadd.f32 %v2930, %v2323
        %v2932 = vadd.f32 %v2931, %v2331
        %v2933 = vadd.f32 %v2932, %v2339
        %v2934 = vadd.f32 %v2933, %v2347
        %v2935 = vadd.f32 %v2934, %v2355
        %v2936 = vadd.f32 %v2935, %v2363
        %v2937 = vadd.f32 %v2936, %v2371
        %v2938 = vadd.f32 %v2937, %v2379
        %v2939 = vadd.f32 %v2938, %v2387
        %v2940 = vadd.f32 %v2939, %v2395
        %v2941 = vadd.f32 %v2940, %v2403
        %v2942 = vadd.f32 %v2941, %v2411
        %v2943 = vadd.f32 %v2942, %v2419
        %v2944 = vadd.f32 %v2943, %v2427
        %v2945 = vadd.f32 %v2944, %v2435
        %v2946 = vrot.slane %v2945, 4
        %v2947 = vadd.f32 %v2945, %v2946
        %v2948 = vrot.slane %v2947, 2
        %v2949 = vadd.f32 %v2947, %v2948
        %v2950 = vrot.slane %v2949, 1
        %v2951 = vadd.f32 %v2949, %v2950
        %v2952 = vadd.f32 %v2188, %v2196
        %v2953 = vadd.f32 %v2952, %v2204
        %v2954 = vadd.f32 %v2953, %v2212
        %v2955 = vadd.f32 %v2954, %v2220
        %v2956 = vadd.f32 %v2955, %v2228
        %v2957 = vadd.f32 %v2956, %v2236
        %v2958 = vadd.f32 %v2957, %v2244
        %v2959 = vadd.f32 %v2958, %v2252
        %v2960 = vadd.f32 %v2959, %v2260
        %v2961 = vadd.f32 %v2960, %v2268
        %v2962 = vadd.f32 %v2961, %v2276
        %v2963 = vadd.f32 %v2962, %v2284
        %v2964 = vadd.f32 %v2963, %v2292
        %v2965 = vadd.f32 %v2964, %v2300
        %v2966 = vadd.f32 %v2965, %v2308
        %v2967 = vadd.f32 %v2966, %v2316
        %v2968 = vadd.f32 %v2967, %v2324
        %v2969 = vadd.f32 %v2968, %v2332
        %v2970 = vadd.f32 %v2969, %v2340
        %v2971 = vadd.f32 %v2970, %v2348
        %v2972 = vadd.f32 %v2971, %v2356
        %v2973 = vadd.f32 %v2972, %v2364
        %v2974 = vadd.f32 %v2973, %v2372
        %v2975 = vadd.f32 %v2974, %v2380
        %v2976 = vadd.f32 %v2975, %v2388
        %v2977 = vadd.f32 %v2976, %v2396
        %v2978 = vadd.f32 %v2977, %v2404
        %v2979 = vadd.f32 %v2978, %v2412
        %v2980 = vadd.f32 %v2979, %v2420
        %v2981 = vadd.f32 %v2980, %v2428
        %v2982 = vadd.f32 %v2981, %v2436
        %v2983 = vrot.slane %v2982, 4
        %v2984 = vadd.f32 %v2982, %v2983
        %v2985 = vrot.slane %v2984, 2
        %v2986 = vadd.f32 %v2984, %v2985
        %v2987 = vrot.slane %v2986, 1
        %v2988 = vadd.f32 %v2986, %v2987
        %v2989 = vadd.f32 %v2437, %v2445
        %v2990 = vadd.f32 %v2989, %v2453
        %v2991 = vadd.f32 %v2990, %v2461
        %v2992 = vadd.f32 %v2991, %v2469
        %v2993 = vadd.f32 %v2992, %v2477
        %v2994 = vadd.f32 %v2993, %v2485
        %v2995 = vadd.f32 %v2994, %v2493
        %v2996 = vadd.f32 %v2995, %v2501
        %v2997 = vadd.f32 %v2996, %v2509
        %v2998 = vadd.f32 %v2997, %v2517
        %v2999 = vadd.f32 %v2998, %v2525
        %v3000 = vadd.f32 %v2999, %v2533
        %v3001 = vadd.f32 %v3000, %v2541
        %v3002 = vadd.f32 %v3001, %v2549
        %v3003 = vadd.f32 %v3002, %v2557
        %v3004 = vadd.f32 %v3003, %v2565
        %v3005 = vadd.f32 %v3004, %v2573
        %v3006 = vadd.f32 %v3005, %v2581
        %v3007 = vadd.f32 %v3006, %v2589
        %v3008 = vadd.f32 %v3007, %v2597
        %v3009 = vadd.f32 %v3008, %v2605
        %v3010 = vadd.f32 %v3009, %v2613
        %v3011 = vadd.f32 %v3010, %v2621
        %v3012 = vadd.f32 %v3011, %v2629
        %v3013 = vadd.f32 %v3012, %v2637
        %v3014 = vadd.f32 %v3013, %v2645
        %v3015 = vadd.f32 %v3014, %v2653
        %v3016 = vadd.f32 %v3015, %v2661
        %v3017 = vadd.f32 %v3016, %v2669
        %v3018 = vadd.f32 %v3017, %v2677
        %v3019 = vadd.f32 %v3018, %v2685
        %v3020 = vrot.slane %v3019, 4
        %v3021 = vadd.f32 %v3019, %v3020
        %v3022 = vrot.slane %v3021, 2
        %v3023 = vadd.f32 %v3021, %v3022
        %v3024 = vrot.slane %v3023, 1
        %v3025 = vadd.f32 %v3023, %v3024
        %v3026 = vadd.f32 %v2438, %v2446
        %v3027 = vadd.f32 %v3026, %v2454
        %v3028 = vadd.f32 %v3027, %v2462
        %v3029 = vadd.f32 %v3028, %v2470
        %v3030 = vadd.f32 %v3029, %v2478
        %v3031 = vadd.f32 %v3030, %v2486
        %v3032 = vadd.f32 %v3031, %v2494
        %v3033 = vadd.f32 %v3032, %v2502
        %v3034 = vadd.f32 %v3033, %v2510
        %v3035 = vadd.f32 %v3034, %v2518
        %v3036 = vadd.f32 %v3035, %v2526
        %v3037 = vadd.f32 %v3036, %v2534
        %v3038 = vadd.f32 %v3037, %v2542
        %v3039 = vadd.f32 %v3038, %v2550
        %v3040 = vadd.f32 %v3039, %v2558
        %v3041 = vadd.f32 %v3040, %v2566
        %v3042 = vadd.f32 %v3041, %v2574
        %v3043 = vadd.f32 %v3042, %v2582
        %v3044 = vadd.f32 %v3043, %v2590
        %v3045 = vadd.f32 %v3044, %v2598
        %v3046 = vadd.f32 %v3045, %v2606
        %v3047 = vadd.f32 %v3046, %v2614
        %v3048 = vadd.f32 %v3047, %v2622
        %v3049 = vadd.f32 %v3048, %v2630
        %v3050 = vadd.f32 %v3049, %v2638
        %v3051 = vadd.f32 %v3050, %v2646
        %v3052 = vadd.f32 %v3051, %v2654
        %v3053 = vadd.f32 %v3052, %v2662
        %v3054 = vadd.f32 %v3053, %v2670
        %v3055 = vadd.f32 %v3054, %v2678
        %v3056 = vadd.f32 %v3055, %v2686
        %v3057 = vrot.slane %v3056, 4
        %v3058 = vadd.f32 %v3056, %v3057
        %v3059 = vrot.slane %v3058, 2
        %v3060 = vadd.f32 %v3058, %v3059
        %v3061 = vrot.slane %v3060, 1
        %v3062 = vadd.f32 %v3060, %v3061
        %v3063 = vadd.f32 %v2439, %v2447
        %v3064 = vadd.f32 %v3063, %v2455
        %v3065 = vadd.f32 %v3064, %v2463
        %v3066 = vadd.f32 %v3065, %v2471
        %v3067 = vadd.f32 %v3066, %v2479
        %v3068 = vadd.f32 %v3067, %v2487
        %v3069 = vadd.f32 %v3068, %v2495
        %v3070 = vadd.f32 %v3069, %v2503
        %v3071 = vadd.f32 %v3070, %v2511
        %v3072 = vadd.f32 %v3071, %v2519
        %v3073 = vadd.f32 %v3072, %v2527
        %v3074 = vadd.f32 %v3073, %v2535
        %v3075 = vadd.f32 %v3074, %v2543
        %v3076 = vadd.f32 %v3075, %v2551
        %v3077 = vadd.f32 %v3076, %v2559
        %v3078 = vadd.f32 %v3077, %v2567
        %v3079 = vadd.f32 %v3078, %v2575
        %v3080 = vadd.f32 %v3079, %v2583
        %v3081 = vadd.f32 %v3080, %v2591
        %v3082 = vadd.f32 %v3081, %v2599
        %v3083 = vadd.f32 %v3082, %v2607
        %v3084 = vadd.f32 %v3083, %v2615
        %v3085 = vadd.f32 %v3084, %v2623
        %v3086 = vadd.f32 %v3085, %v2631
        %v3087 = vadd.f32 %v3086, %v2639
        %v3088 = vadd.f32 %v3087, %v2647
        %v3089 = vadd.f32 %v3088, %v2655
        %v3090 = vadd.f32 %v3089, %v2663
        %v3091 = vadd.f32 %v3090, %v2671
        %v3092 = vadd.f32 %v3091, %v2679
        %v3093 = vadd.f32 %v3092, %v2687
        %v3094 = vrot.slane %v3093, 4
        %v3095 = vadd.f32 %v3093, %v3094
        %v3096 = vrot.slane %v3095, 2
        %v3097 = vadd.f32 %v3095, %v3096
        %v3098 = vrot.slane %v3097, 1
        %v3099 = vadd.f32 %v3097, %v3098
        %v3100 = vadd.f32 %v2440, %v2448
        %v3101 = vadd.f32 %v3100, %v2456
        %v3102 = vadd.f32 %v3101, %v2464
        %v3103 = vadd.f32 %v3102, %v2472
        %v3104 = vadd.f32 %v3103, %v2480
        %v3105 = vadd.f32 %v3104, %v2488
        %v3106 = vadd.f32 %v3105, %v2496
        %v3107 = vadd.f32 %v3106, %v2504
        %v3108 = vadd.f32 %v3107, %v2512
        %v3109 = vadd.f32 %v3108, %v2520
        %v3110 = vadd.f32 %v3109, %v2528
        %v3111 = vadd.f32 %v3110, %v2536
        %v3112 = vadd.f32 %v3111, %v2544
        %v3113 = vadd.f32 %v3112, %v2552
        %v3114 = vadd.f32 %v3113, %v2560
        %v3115 = vadd.f32 %v3114, %v2568
        %v3116 = vadd.f32 %v3115, %v2576
        %v3117 = vadd.f32 %v3116, %v2584
        %v3118 = vadd.f32 %v3117, %v2592
        %v3119 = vadd.f32 %v3118, %v2600
        %v3120 = vadd.f32 %v3119, %v2608
        %v3121 = vadd.f32 %v3120, %v2616
        %v3122 = vadd.f32 %v3121, %v2624
        %v3123 = vadd.f32 %v3122, %v2632
        %v3124 = vadd.f32 %v3123, %v2640
        %v3125 = vadd.f32 %v3124, %v2648
        %v3126 = vadd.f32 %v3125, %v2656
        %v3127 = vadd.f32 %v3126, %v2664
        %v3128 = vadd.f32 %v3127, %v2672
        %v3129 = vadd.f32 %v3128, %v2680
        %v3130 = vadd.f32 %v3129, %v2688
        %v3131 = vrot.slane %v3130, 4
        %v3132 = vadd.f32 %v3130, %v3131
        %v3133 = vrot.slane %v3132, 2
        %v3134 = vadd.f32 %v3132, %v3133
        %v3135 = vrot.slane %v3134, 1
        %v3136 = vadd.f32 %v3134, %v3135
        %v3137 = vadd.f32 %v2441, %v2449
        %v3138 = vadd.f32 %v3137, %v2457
        %v3139 = vadd.f32 %v3138, %v2465
        %v3140 = vadd.f32 %v3139, %v2473
        %v3141 = vadd.f32 %v3140, %v2481
        %v3142 = vadd.f32 %v3141, %v2489
        %v3143 = vadd.f32 %v3142, %v2497
        %v3144 = vadd.f32 %v3143, %v2505
        %v3145 = vadd.f32 %v3144, %v2513
        %v3146 = vadd.f32 %v3145, %v2521
        %v3147 = vadd.f32 %v3146, %v2529
        %v3148 = vadd.f32 %v3147, %v2537
        %v3149 = vadd.f32 %v3148, %v2545
        %v3150 = vadd.f32 %v3149, %v2553
        %v3151 = vadd.f32 %v3150, %v2561
        %v3152 = vadd.f32 %v3151, %v2569
        %v3153 = vadd.f32 %v3152, %v2577
        %v3154 = vadd.f32 %v3153, %v2585
        %v3155 = vadd.f32 %v3154, %v2593
        %v3156 = vadd.f32 %v3155, %v2601
        %v3157 = vadd.f32 %v3156, %v2609
        %v3158 = vadd.f32 %v3157, %v2617
        %v3159 = vadd.f32 %v3158, %v2625
        %v3160 = vadd.f32 %v3159, %v2633
        %v3161 = vadd.f32 %v3160, %v2641
        %v3162 = vadd.f32 %v3161, %v2649
        %v3163 = vadd.f32 %v3162, %v2657
        %v3164 = vadd.f32 %v3163, %v2665
        %v3165 = vadd.f32 %v3164, %v2673
        %v3166 = vadd.f32 %v3165, %v2681
        %v3167 = vadd.f32 %v3166, %v2689
        %v3168 = vrot.slane %v3167, 4
        %v3169 = vadd.f32 %v3167, %v3168
        %v3170 = vrot.slane %v3169, 2
        %v3171 = vadd.f32 %v3169, %v3170
        %v3172 = vrot.slane %v3171, 1
        %v3173 = vadd.f32 %v3171, %v3172
        %v3174 = vadd.f32 %v2442, %v2450
        %v3175 = vadd.f32 %v3174, %v2458
        %v3176 = vadd.f32 %v3175, %v2466
        %v3177 = vadd.f32 %v3176, %v2474
        %v3178 = vadd.f32 %v3177, %v2482
        %v3179 = vadd.f32 %v3178, %v2490
        %v3180 = vadd.f32 %v3179, %v2498
        %v3181 = vadd.f32 %v3180, %v2506
        %v3182 = vadd.f32 %v3181, %v2514
        %v3183 = vadd.f32 %v3182, %v2522
        %v3184 = vadd.f32 %v3183, %v2530
        %v3185 = vadd.f32 %v3184, %v2538
        %v3186 = vadd.f32 %v3185, %v2546
        %v3187 = vadd.f32 %v3186, %v2554
        %v3188 = vadd.f32 %v3187, %v2562
        %v3189 = vadd.f32 %v3188, %v2570
        %v3190 = vadd.f32 %v3189, %v2578
        %v3191 = vadd.f32 %v3190, %v2586
        %v3192 = vadd.f32 %v3191, %v2594
        %v3193 = vadd.f32 %v3192, %v2602
        %v3194 = vadd.f32 %v3193, %v2610
        %v3195 = vadd.f32 %v3194, %v2618
        %v3196 = vadd.f32 %v3195, %v2626
        %v3197 = vadd.f32 %v3196, %v2634
        %v3198 = vadd.f32 %v3197, %v2642
        %v3199 = vadd.f32 %v3198, %v2650
        %v3200 = vadd.f32 %v3199, %v2658
        %v3201 = vadd.f32 %v3200, %v2666
        %v3202 = vadd.f32 %v3201, %v2674
        %v3203 = vadd.f32 %v3202, %v2682
        %v3204 = vadd.f32 %v3203, %v2690
        %v3205 = vrot.slane %v3204, 4
        %v3206 = vadd.f32 %v3204, %v3205
        %v3207 = vrot.slane %v3206, 2
        %v3208 = vadd.f32 %v3206, %v3207
        %v3209 = vrot.slane %v3208, 1
        %v3210 = vadd.f32 %v3208, %v3209
        %v3211 = vadd.f32 %v2443, %v2451
        %v3212 = vadd.f32 %v3211, %v2459
        %v3213 = vadd.f32 %v3212, %v2467
        %v3214 = vadd.f32 %v3213, %v2475
        %v3215 = vadd.f32 %v3214, %v2483
        %v3216 = vadd.f32 %v3215, %v2491
        %v3217 = vadd.f32 %v3216, %v2499
        %v3218 = vadd.f32 %v3217, %v2507
        %v3219 = vadd.f32 %v3218, %v2515
        %v3220 = vadd.f32 %v3219, %v2523
        %v3221 = vadd.f32 %v3220, %v2531
        %v3222 = vadd.f32 %v3221, %v2539
        %v3223 = vadd.f32 %v3222, %v2547
        %v3224 = vadd.f32 %v3223, %v2555
        %v3225 = vadd.f32 %v3224, %v2563
        %v3226 = vadd.f32 %v3225, %v2571
        %v3227 = vadd.f32 %v3226, %v2579
        %v3228 = vadd.f32 %v3227, %v2587
        %v3229 = vadd.f32 %v3228, %v2595
        %v3230 = vadd.f32 %v3229, %v2603
        %v3231 = vadd.f32 %v3230, %v2611
        %v3232 = vadd.f32 %v3231, %v2619
        %v3233 = vadd.f32 %v3232, %v2627
        %v3234 = vadd.f32 %v3233, %v2635
        %v3235 = vadd.f32 %v3234, %v2643
        %v3236 = vadd.f32 %v3235, %v2651
        %v3237 = vadd.f32 %v3236, %v2659
        %v3238 = vadd.f32 %v3237, %v2667
        %v3239 = vadd.f32 %v3238, %v2675
        %v3240 = vadd.f32 %v3239, %v2683
        %v3241 = vadd.f32 %v3240, %v2691
        %v3242 = vrot.slane %v3241, 4
        %v3243 = vadd.f32 %v3241, %v3242
        %v3244 = vrot.slane %v3243, 2
        %v3245 = vadd.f32 %v3243, %v3244
        %v3246 = vrot.slane %v3245, 1
        %v3247 = vadd.f32 %v3245, %v3246
        %v3248 = vadd.f32 %v2444, %v2452
        %v3249 = vadd.f32 %v3248, %v2460
        %v3250 = vadd.f32 %v3249, %v2468
        %v3251 = vadd.f32 %v3250, %v2476
        %v3252 = vadd.f32 %v3251, %v2484
        %v3253 = vadd.f32 %v3252, %v2492
        %v3254 = vadd.f32 %v3253, %v2500
        %v3255 = vadd.f32 %v3254, %v2508
        %v3256 = vadd.f32 %v3255, %v2516
        %v3257 = vadd.f32 %v3256, %v2524
        %v3258 = vadd.f32 %v3257, %v2532
        %v3259 = vadd.f32 %v3258, %v2540
        %v3260 = vadd.f32 %v3259, %v2548
        %v3261 = vadd.f32 %v3260, %v2556
        %v3262 = vadd.f32 %v3261, %v2564
        %v3263 = vadd.f32 %v3262, %v2572
        %v3264 = vadd.f32 %v3263, %v2580
        %v3265 = vadd.f32 %v3264, %v2588
        %v3266 = vadd.f32 %v3265, %v2596
        %v3267 = vadd.f32 %v3266, %v2604
        %v3268 = vadd.f32 %v3267, %v2612
        %v3269 = vadd.f32 %v3268, %v2620
        %v3270 = vadd.f32 %v3269, %v2628
        %v3271 = vadd.f32 %v3270, %v2636
        %v3272 = vadd.f32 %v3271, %v2644
        %v3273 = vadd.f32 %v3272, %v2652
        %v3274 = vadd.f32 %v3273, %v2660
        %v3275 = vadd.f32 %v3274, %v2668
        %v3276 = vadd.f32 %v3275, %v2676
        %v3277 = vadd.f32 %v3276, %v2684
        %v3278 = vadd.f32 %v3277, %v2692
        %v3279 = vrot.slane %v3278, 4
        %v3280 = vadd.f32 %v3278, %v3279
        %v3281 = vrot.slane %v3280, 2
        %v3282 = vadd.f32 %v3280, %v3281
        %v3283 = vrot.slane %v3282, 1
        %v3284 = vadd.f32 %v3282, %v3283
        %v3285 = vmul.f32 %v2729, 0.00390625
        %v3286 = vmul.f32 %v2766, 0.00390625
        %v3287 = vmul.f32 %v2803, 0.00390625
        %v3288 = vmul.f32 %v2840, 0.00390625
        %v3289 = vmul.f32 %v2877, 0.00390625
        %v3290 = vmul.f32 %v2914, 0.00390625
        %v3291 = vmul.f32 %v2951, 0.00390625
        %v3292 = vmul.f32 %v2988, 0.00390625
        %v3293 = vmul.f32 %v3025, 0.00390625
        %v3294 = vmul.f32 %v3062, 0.00390625
        %v3295 = vmul.f32 %v3099, 0.00390625
        %v3296 = vmul.f32 %v3136, 0.00390625
        %v3297 = vmul.f32 %v3173, 0.00390625
        %v3298 = vmul.f32 %v3210, 0.00390625
        %v3299 = vmul.f32 %v3247, 0.00390625
        %v3300 = vmul.f32 %v3284, 0.00390625
        %v3301 = vld [vmem:[#allocation2] sm:$0xff]
        %v3302 = vpack.c.bf16 %v3285, %v3285
        %v3303 = vpack.c.bf16 %v3286, %v3286
        %v3304 = vpack.c.bf16 %v3287, %v3287
        %v3305 = vpack.c.bf16 %v3288, %v3288
        %v3306 = vpack.c.bf16 %v3289, %v3289
        %v3307 = vpack.c.bf16 %v3290, %v3290
        %v3308 = vpack.c.bf16 %v3291, %v3291
        %v3309 = vpack.c.bf16 %v3292, %v3292
        %v3310 = vpack.c.bf16 %v3293, %v3293
        %v3311 = vpack.c.bf16 %v3294, %v3294
        %v3312 = vpack.c.bf16 %v3295, %v3295
        %v3313 = vpack.c.bf16 %v3296, %v3296
        %v3314 = vpack.c.bf16 %v3297, %v3297
        %v3315 = vpack.c.bf16 %v3298, %v3298
        %v3316 = vpack.c.bf16 %v3299, %v3299
        %v3317 = vpack.c.bf16 %v3300, %v3300
        %v3318 = vld [vmem:[%s292] sm:$0xff]
        %v3319 = vld [vmem:[%s292 + $0x8] sm:$0xff]
        %v3320 = vld [vmem:[%s292 + $0x10] sm:$0xff]
        %v3321 = vld [vmem:[%s292 + $0x18] sm:$0xff]
        %v3322 = vld [vmem:[%s292 + $0x20] sm:$0xff]
        %v3323 = vld [vmem:[%s292 + $0x28] sm:$0xff]
        %v3324 = vld [vmem:[%s292 + $0x30] sm:$0xff]
        %v3325 = vld [vmem:[%s292 + $0x38] sm:$0xff]
        %v3326 = vld [vmem:[%s292 + $0x40] sm:$0xff]
        %v3327 = vld [vmem:[%s292 + $0x48] sm:$0xff]
        %v3328 = vld [vmem:[%s292 + $0x50] sm:$0xff]
        %v3329 = vld [vmem:[%s292 + $0x58] sm:$0xff]
        %v3330 = vld [vmem:[%s292 + $0x60] sm:$0xff]
        %v3331 = vld [vmem:[%s292 + $0x68] sm:$0xff]
        %v3332 = vld [vmem:[%s292 + $0x70] sm:$0xff]
        %v3333 = vld [vmem:[%s292 + $0x78] sm:$0xff]
        %v3334 = vld [vmem:[%s292 + $0x80] sm:$0xff]
        %v3335 = vld [vmem:[%s292 + $0x88] sm:$0xff]
        %v3336 = vld [vmem:[%s292 + $0x90] sm:$0xff]
        %v3337 = vld [vmem:[%s292 + $0x98] sm:$0xff]
        %v3338 = vld [vmem:[%s292 + $0xa0] sm:$0xff]
        %v3339 = vld [vmem:[%s292 + $0xa8] sm:$0xff]
        %v3340 = vld [vmem:[%s292 + $0xb0] sm:$0xff]
        %v3341 = vld [vmem:[%s292 + $0xb8] sm:$0xff]
        %v3342 = vld [vmem:[%s292 + $0xc0] sm:$0xff]
        %v3343 = vld [vmem:[%s292 + $0xc8] sm:$0xff]
        %v3344 = vld [vmem:[%s292 + $0xd0] sm:$0xff]
        %v3345 = vld [vmem:[%s292 + $0xd8] sm:$0xff]
        %v3346 = vld [vmem:[%s292 + $0xe0] sm:$0xff]
        %v3347 = vld [vmem:[%s292 + $0xe8] sm:$0xff]
        %v3348 = vld [vmem:[%s292 + $0xf0] sm:$0xff]
        %v3349 = vld [vmem:[%s292 + $0xf8] sm:$0xff]
        %v3350 = vld [vmem:[%s292 + $0x100] sm:$0xff]
        %v3351 = vld [vmem:[%s292 + $0x108] sm:$0xff]
        %v3352 = vld [vmem:[%s292 + $0x110] sm:$0xff]
        %v3353 = vld [vmem:[%s292 + $0x118] sm:$0xff]
        %v3354 = vld [vmem:[%s292 + $0x120] sm:$0xff]
        %v3355 = vld [vmem:[%s292 + $0x128] sm:$0xff]
        %v3356 = vld [vmem:[%s292 + $0x130] sm:$0xff]
        %v3357 = vld [vmem:[%s292 + $0x138] sm:$0xff]
        %v3358 = vld [vmem:[%s292 + $0x140] sm:$0xff]
        %v3359 = vld [vmem:[%s292 + $0x148] sm:$0xff]
        %v3360 = vld [vmem:[%s292 + $0x150] sm:$0xff]
        %v3361 = vld [vmem:[%s292 + $0x158] sm:$0xff]
        %v3362 = vld [vmem:[%s292 + $0x160] sm:$0xff]
        %v3363 = vld [vmem:[%s292 + $0x168] sm:$0xff]
        %v3364 = vld [vmem:[%s292 + $0x170] sm:$0xff]
        %v3365 = vld [vmem:[%s292 + $0x178] sm:$0xff]
        %v3366 = vld [vmem:[%s292 + $0x180] sm:$0xff]
        %v3367 = vld [vmem:[%s292 + $0x188] sm:$0xff]
        %v3368 = vld [vmem:[%s292 + $0x190] sm:$0xff]
        %v3369 = vld [vmem:[%s292 + $0x198] sm:$0xff]
        %v3370 = vld [vmem:[%s292 + $0x1a0] sm:$0xff]
        %v3371 = vld [vmem:[%s292 + $0x1a8] sm:$0xff]
        %v3372 = vld [vmem:[%s292 + $0x1b0] sm:$0xff]
        %v3373 = vld [vmem:[%s292 + $0x1b8] sm:$0xff]
        %v3374 = vld [vmem:[%s292 + $0x1c0] sm:$0xff]
        %v3375 = vld [vmem:[%s292 + $0x1c8] sm:$0xff]
        %v3376 = vld [vmem:[%s292 + $0x1d0] sm:$0xff]
        %v3377 = vld [vmem:[%s292 + $0x1d8] sm:$0xff]
        %v3378 = vld [vmem:[%s292 + $0x1e0] sm:$0xff]
        %v3379 = vld [vmem:[%s292 + $0x1e8] sm:$0xff]
        %v3380 = vld [vmem:[%s292 + $0x1f0] sm:$0xff]
        %v3381 = vld [vmem:[%s292 + $0x1f8] sm:$0xff]
        %v3382 = vld [vmem:[%s292 + $0x200] sm:$0xff]
        %v3383 = vld [vmem:[%s292 + $0x208] sm:$0xff]
        %v3384 = vld [vmem:[%s292 + $0x210] sm:$0xff]
        %v3385 = vld [vmem:[%s292 + $0x218] sm:$0xff]
        %v3386 = vld [vmem:[%s292 + $0x220] sm:$0xff]
        %v3387 = vld [vmem:[%s292 + $0x228] sm:$0xff]
        %v3388 = vld [vmem:[%s292 + $0x230] sm:$0xff]
        %v3389 = vld [vmem:[%s292 + $0x238] sm:$0xff]
        %v3390 = vld [vmem:[%s292 + $0x240] sm:$0xff]
        %v3391 = vld [vmem:[%s292 + $0x248] sm:$0xff]
        %v3392 = vld [vmem:[%s292 + $0x250] sm:$0xff]
        %v3393 = vld [vmem:[%s292 + $0x258] sm:$0xff]
        %v3394 = vld [vmem:[%s292 + $0x260] sm:$0xff]
        %v3395 = vld [vmem:[%s292 + $0x268] sm:$0xff]
        %v3396 = vld [vmem:[%s292 + $0x270] sm:$0xff]
        %v3397 = vld [vmem:[%s292 + $0x278] sm:$0xff]
        %v3398 = vld [vmem:[%s292 + $0x280] sm:$0xff]
        %v3399 = vld [vmem:[%s292 + $0x288] sm:$0xff]
        %v3400 = vld [vmem:[%s292 + $0x290] sm:$0xff]
        %v3401 = vld [vmem:[%s292 + $0x298] sm:$0xff]
        %v3402 = vld [vmem:[%s292 + $0x2a0] sm:$0xff]
        %v3403 = vld [vmem:[%s292 + $0x2a8] sm:$0xff]
        %v3404 = vld [vmem:[%s292 + $0x2b0] sm:$0xff]
        %v3405 = vld [vmem:[%s292 + $0x2b8] sm:$0xff]
        %v3406 = vld [vmem:[%s292 + $0x2c0] sm:$0xff]
        %v3407 = vld [vmem:[%s292 + $0x2c8] sm:$0xff]
        %v3408 = vld [vmem:[%s292 + $0x2d0] sm:$0xff]
        %v3409 = vld [vmem:[%s292 + $0x2d8] sm:$0xff]
        %v3410 = vld [vmem:[%s292 + $0x2e0] sm:$0xff]
        %v3411 = vld [vmem:[%s292 + $0x2e8] sm:$0xff]
        %v3412 = vld [vmem:[%s292 + $0x2f0] sm:$0xff]
        %v3413 = vld [vmem:[%s292 + $0x2f8] sm:$0xff]
        %v3414 = vld [vmem:[%s292 + $0x300] sm:$0xff]
        %v3415 = vld [vmem:[%s292 + $0x308] sm:$0xff]
        %v3416 = vld [vmem:[%s292 + $0x310] sm:$0xff]
        %v3417 = vld [vmem:[%s292 + $0x318] sm:$0xff]
        %v3418 = vld [vmem:[%s292 + $0x320] sm:$0xff]
        %v3419 = vld [vmem:[%s292 + $0x328] sm:$0xff]
        %v3420 = vld [vmem:[%s292 + $0x330] sm:$0xff]
        %v3421 = vld [vmem:[%s292 + $0x338] sm:$0xff]
        %v3422 = vld [vmem:[%s292 + $0x340] sm:$0xff]
        %v3423 = vld [vmem:[%s292 + $0x348] sm:$0xff]
        %v3424 = vld [vmem:[%s292 + $0x350] sm:$0xff]
        %v3425 = vld [vmem:[%s292 + $0x358] sm:$0xff]
        %v3426 = vld [vmem:[%s292 + $0x360] sm:$0xff]
        %v3427 = vld [vmem:[%s292 + $0x368] sm:$0xff]
        %v3428 = vld [vmem:[%s292 + $0x370] sm:$0xff]
        %v3429 = vld [vmem:[%s292 + $0x378] sm:$0xff]
        %v3430 = vld [vmem:[%s292 + $0x380] sm:$0xff]
        %v3431 = vld [vmem:[%s292 + $0x388] sm:$0xff]
        %v3432 = vld [vmem:[%s292 + $0x390] sm:$0xff]
        %v3433 = vld [vmem:[%s292 + $0x398] sm:$0xff]
        %v3434 = vld [vmem:[%s292 + $0x3a0] sm:$0xff]
        %v3435 = vld [vmem:[%s292 + $0x3a8] sm:$0xff]
        %v3436 = vld [vmem:[%s292 + $0x3b0] sm:$0xff]
        %v3437 = vld [vmem:[%s292 + $0x3b8] sm:$0xff]
        %v3438 = vld [vmem:[%s292 + $0x3c0] sm:$0xff]
        %v3439 = vld [vmem:[%s292 + $0x3c8] sm:$0xff]
        %v3440 = vld [vmem:[%s292 + $0x3d0] sm:$0xff]
        %v3441 = vld [vmem:[%s292 + $0x3d8] sm:$0xff]
        %v3442 = vld [vmem:[%s292 + $0x3e0] sm:$0xff]
        %v3443 = vld [vmem:[%s292 + $0x3e8] sm:$0xff]
        %v3444 = vld [vmem:[%s292 + $0x3f0] sm:$0xff]
        %v3445 = vld [vmem:[%s292 + $0x3f8] sm:$0xff]
        %v3446 = vld [vmem:[%s292 + $0x400] sm:$0xff]
        %v3447 = vld [vmem:[%s292 + $0x408] sm:$0xff]
        %v3448 = vld [vmem:[%s292 + $0x410] sm:$0xff]
        %v3449 = vld [vmem:[%s292 + $0x418] sm:$0xff]
        %v3450 = vld [vmem:[%s292 + $0x420] sm:$0xff]
        %v3451 = vld [vmem:[%s292 + $0x428] sm:$0xff]
        %v3452 = vld [vmem:[%s292 + $0x430] sm:$0xff]
        %v3453 = vld [vmem:[%s292 + $0x438] sm:$0xff]
        %v3454 = vld [vmem:[%s292 + $0x440] sm:$0xff]
        %v3455 = vld [vmem:[%s292 + $0x448] sm:$0xff]
        %v3456 = vld [vmem:[%s292 + $0x450] sm:$0xff]
        %v3457 = vld [vmem:[%s292 + $0x458] sm:$0xff]
        %v3458 = vld [vmem:[%s292 + $0x460] sm:$0xff]
        %v3459 = vld [vmem:[%s292 + $0x468] sm:$0xff]
        %v3460 = vld [vmem:[%s292 + $0x470] sm:$0xff]
        %v3461 = vld [vmem:[%s292 + $0x478] sm:$0xff]
        %v3462 = vld [vmem:[%s292 + $0x480] sm:$0xff]
        %v3463 = vld [vmem:[%s292 + $0x488] sm:$0xff]
        %v3464 = vld [vmem:[%s292 + $0x490] sm:$0xff]
        %v3465 = vld [vmem:[%s292 + $0x498] sm:$0xff]
        %v3466 = vld [vmem:[%s292 + $0x4a0] sm:$0xff]
        %v3467 = vld [vmem:[%s292 + $0x4a8] sm:$0xff]
        %v3468 = vld [vmem:[%s292 + $0x4b0] sm:$0xff]
        %v3469 = vld [vmem:[%s292 + $0x4b8] sm:$0xff]
        %v3470 = vld [vmem:[%s292 + $0x4c0] sm:$0xff]
        %v3471 = vld [vmem:[%s292 + $0x4c8] sm:$0xff]
        %v3472 = vld [vmem:[%s292 + $0x4d0] sm:$0xff]
        %v3473 = vld [vmem:[%s292 + $0x4d8] sm:$0xff]
        %v3474 = vld [vmem:[%s292 + $0x4e0] sm:$0xff]
        %v3475 = vld [vmem:[%s292 + $0x4e8] sm:$0xff]
        %v3476 = vld [vmem:[%s292 + $0x4f0] sm:$0xff]
        %v3477 = vld [vmem:[%s292 + $0x4f8] sm:$0xff]
        %v3478 = vld [vmem:[%s292 + $0x500] sm:$0xff]
        %v3479 = vld [vmem:[%s292 + $0x508] sm:$0xff]
        %v3480 = vld [vmem:[%s292 + $0x510] sm:$0xff]
        %v3481 = vld [vmem:[%s292 + $0x518] sm:$0xff]
        %v3482 = vld [vmem:[%s292 + $0x520] sm:$0xff]
        %v3483 = vld [vmem:[%s292 + $0x528] sm:$0xff]
        %v3484 = vld [vmem:[%s292 + $0x530] sm:$0xff]
        %v3485 = vld [vmem:[%s292 + $0x538] sm:$0xff]
        %v3486 = vld [vmem:[%s292 + $0x540] sm:$0xff]
        %v3487 = vld [vmem:[%s292 + $0x548] sm:$0xff]
        %v3488 = vld [vmem:[%s292 + $0x550] sm:$0xff]
        %v3489 = vld [vmem:[%s292 + $0x558] sm:$0xff]
        %v3490 = vld [vmem:[%s292 + $0x560] sm:$0xff]
        %v3491 = vld [vmem:[%s292 + $0x568] sm:$0xff]
        %v3492 = vld [vmem:[%s292 + $0x570] sm:$0xff]
        %v3493 = vld [vmem:[%s292 + $0x578] sm:$0xff]
        %v3494 = vld [vmem:[%s292 + $0x580] sm:$0xff]
        %v3495 = vld [vmem:[%s292 + $0x588] sm:$0xff]
        %v3496 = vld [vmem:[%s292 + $0x590] sm:$0xff]
        %v3497 = vld [vmem:[%s292 + $0x598] sm:$0xff]
        %v3498 = vld [vmem:[%s292 + $0x5a0] sm:$0xff]
        %v3499 = vld [vmem:[%s292 + $0x5a8] sm:$0xff]
        %v3500 = vld [vmem:[%s292 + $0x5b0] sm:$0xff]
        %v3501 = vld [vmem:[%s292 + $0x5b8] sm:$0xff]
        %v3502 = vld [vmem:[%s292 + $0x5c0] sm:$0xff]
        %v3503 = vld [vmem:[%s292 + $0x5c8] sm:$0xff]
        %v3504 = vld [vmem:[%s292 + $0x5d0] sm:$0xff]
        %v3505 = vld [vmem:[%s292 + $0x5d8] sm:$0xff]
        %v3506 = vld [vmem:[%s292 + $0x5e0] sm:$0xff]
        %v3507 = vld [vmem:[%s292 + $0x5e8] sm:$0xff]
        %v3508 = vld [vmem:[%s292 + $0x5f0] sm:$0xff]
        %v3509 = vld [vmem:[%s292 + $0x5f8] sm:$0xff]
        %v3510 = vld [vmem:[%s292 + $0x600] sm:$0xff]
        %v3511 = vld [vmem:[%s292 + $0x608] sm:$0xff]
        %v3512 = vld [vmem:[%s292 + $0x610] sm:$0xff]
        %v3513 = vld [vmem:[%s292 + $0x618] sm:$0xff]
        %v3514 = vld [vmem:[%s292 + $0x620] sm:$0xff]
        %v3515 = vld [vmem:[%s292 + $0x628] sm:$0xff]
        %v3516 = vld [vmem:[%s292 + $0x630] sm:$0xff]
        %v3517 = vld [vmem:[%s292 + $0x638] sm:$0xff]
        %v3518 = vld [vmem:[%s292 + $0x640] sm:$0xff]
        %v3519 = vld [vmem:[%s292 + $0x648] sm:$0xff]
        %v3520 = vld [vmem:[%s292 + $0x650] sm:$0xff]
        %v3521 = vld [vmem:[%s292 + $0x658] sm:$0xff]
        %v3522 = vld [vmem:[%s292 + $0x660] sm:$0xff]
        %v3523 = vld [vmem:[%s292 + $0x668] sm:$0xff]
        %v3524 = vld [vmem:[%s292 + $0x670] sm:$0xff]
        %v3525 = vld [vmem:[%s292 + $0x678] sm:$0xff]
        %v3526 = vld [vmem:[%s292 + $0x680] sm:$0xff]
        %v3527 = vld [vmem:[%s292 + $0x688] sm:$0xff]
        %v3528 = vld [vmem:[%s292 + $0x690] sm:$0xff]
        %v3529 = vld [vmem:[%s292 + $0x698] sm:$0xff]
        %v3530 = vld [vmem:[%s292 + $0x6a0] sm:$0xff]
        %v3531 = vld [vmem:[%s292 + $0x6a8] sm:$0xff]
        %v3532 = vld [vmem:[%s292 + $0x6b0] sm:$0xff]
        %v3533 = vld [vmem:[%s292 + $0x6b8] sm:$0xff]
        %v3534 = vld [vmem:[%s292 + $0x6c0] sm:$0xff]
        %v3535 = vld [vmem:[%s292 + $0x6c8] sm:$0xff]
        %v3536 = vld [vmem:[%s292 + $0x6d0] sm:$0xff]
        %v3537 = vld [vmem:[%s292 + $0x6d8] sm:$0xff]
        %v3538 = vld [vmem:[%s292 + $0x6e0] sm:$0xff]
        %v3539 = vld [vmem:[%s292 + $0x6e8] sm:$0xff]
        %v3540 = vld [vmem:[%s292 + $0x6f0] sm:$0xff]
        %v3541 = vld [vmem:[%s292 + $0x6f8] sm:$0xff]
        %v3542 = vld [vmem:[%s292 + $0x700] sm:$0xff]
        %v3543 = vld [vmem:[%s292 + $0x708] sm:$0xff]
        %v3544 = vld [vmem:[%s292 + $0x710] sm:$0xff]
        %v3545 = vld [vmem:[%s292 + $0x718] sm:$0xff]
        %v3546 = vld [vmem:[%s292 + $0x720] sm:$0xff]
        %v3547 = vld [vmem:[%s292 + $0x728] sm:$0xff]
        %v3548 = vld [vmem:[%s292 + $0x730] sm:$0xff]
        %v3549 = vld [vmem:[%s292 + $0x738] sm:$0xff]
        %v3550 = vld [vmem:[%s292 + $0x740] sm:$0xff]
        %v3551 = vld [vmem:[%s292 + $0x748] sm:$0xff]
        %v3552 = vld [vmem:[%s292 + $0x750] sm:$0xff]
        %v3553 = vld [vmem:[%s292 + $0x758] sm:$0xff]
        %v3554 = vld [vmem:[%s292 + $0x760] sm:$0xff]
        %v3555 = vld [vmem:[%s292 + $0x768] sm:$0xff]
        %v3556 = vld [vmem:[%s292 + $0x770] sm:$0xff]
        %v3557 = vld [vmem:[%s292 + $0x778] sm:$0xff]
        %v3558 = vld [vmem:[%s292 + $0x780] sm:$0xff]
        %v3559 = vld [vmem:[%s292 + $0x788] sm:$0xff]
        %v3560 = vld [vmem:[%s292 + $0x790] sm:$0xff]
        %v3561 = vld [vmem:[%s292 + $0x798] sm:$0xff]
        %v3562 = vld [vmem:[%s292 + $0x7a0] sm:$0xff]
        %v3563 = vld [vmem:[%s292 + $0x7a8] sm:$0xff]
        %v3564 = vld [vmem:[%s292 + $0x7b0] sm:$0xff]
        %v3565 = vld [vmem:[%s292 + $0x7b8] sm:$0xff]
        %v3566 = vld [vmem:[%s292 + $0x7c0] sm:$0xff]
        %v3567 = vld [vmem:[%s292 + $0x7c8] sm:$0xff]
        %v3568 = vld [vmem:[%s292 + $0x7d0] sm:$0xff]
        %v3569 = vld [vmem:[%s292 + $0x7d8] sm:$0xff]
        %v3570 = vld [vmem:[%s292 + $0x7e0] sm:$0xff]
        %v3571 = vld [vmem:[%s292 + $0x7e8] sm:$0xff]
        %v3572 = vld [vmem:[%s292 + $0x7f0] sm:$0xff]
        %v3573 = vld [vmem:[%s292 + $0x7f8] sm:$0xff]
        %v3590 = vunpack.c.l.b16 %v3302
        %v3591 = vunpack.c.l.b16 %v3303
        %v3592 = vunpack.c.l.b16 %v3304
        %v3593 = vunpack.c.l.b16 %v3305
        %v3594 = vunpack.c.l.b16 %v3306
        %v3595 = vunpack.c.l.b16 %v3307
        %v3596 = vunpack.c.l.b16 %v3308
        %v3597 = vunpack.c.l.b16 %v3309
        %v3598 = vunpack.c.l.b16 %v3310
        %v3599 = vunpack.c.l.b16 %v3311
        %v3600 = vunpack.c.l.b16 %v3312
        %v3601 = vunpack.c.l.b16 %v3313
        %v3602 = vunpack.c.l.b16 %v3314
        %v3603 = vunpack.c.l.b16 %v3315
        %v3604 = vunpack.c.l.b16 %v3316
        %v3605 = vunpack.c.l.b16 %v3317
        %vm3606 = vcmask 1041409
        %v3607 = vsel %vm3606, %v3598, %v3590
        %v3608 = vsel %vm3606, %v3599, %v3591
        %v3609 = vsel %vm3606, %v3600, %v3592
        %v3610 = vsel %vm3606, %v3601, %v3593
        %v3611 = vsel %vm3606, %v3602, %v3594
        %v3612 = vsel %vm3606, %v3603, %v3595
        %v3613 = vsel %vm3606, %v3604, %v3596
        %v3614 = vsel %vm3606, %v3605, %v3597
        %v3615 = vpack.c.b16 %v3607, %v3607
        %v3616 = vpack.c.b16 %v3608, %v3608
        %v3617 = vpack.c.b16 %v3609, %v3609
        %v3618 = vpack.c.b16 %v3610, %v3610
        %v3619 = vpack.c.b16 %v3611, %v3611
        %v3620 = vpack.c.b16 %v3612, %v3612
        %v3621 = vpack.c.b16 %v3613, %v3613
        %v3622 = vpack.c.b16 %v3614, %v3614
        %v3887 = vunpack.c.l.b16 %v3318
        %v3888 = vunpack.c.h.b16 %v3318
        %v3889 = vunpack.c.l.b16 %v3319
        %v3890 = vunpack.c.h.b16 %v3319
        %v3891 = vunpack.c.l.b16 %v3320
        %v3892 = vunpack.c.h.b16 %v3320
        %v3893 = vunpack.c.l.b16 %v3321
        %v3894 = vunpack.c.h.b16 %v3321
        %v3895 = vunpack.c.l.b16 %v3322
        %v3896 = vunpack.c.h.b16 %v3322
        %v3897 = vunpack.c.l.b16 %v3323
        %v3898 = vunpack.c.h.b16 %v3323
        %v3899 = vunpack.c.l.b16 %v3324
        %v3900 = vunpack.c.h.b16 %v3324
        %v3901 = vunpack.c.l.b16 %v3325
        %v3902 = vunpack.c.h.b16 %v3325
        %v3903 = vunpack.c.l.b16 %v3326
        %v3904 = vunpack.c.h.b16 %v3326
        %v3905 = vunpack.c.l.b16 %v3327
        %v3906 = vunpack.c.h.b16 %v3327
        %v3907 = vunpack.c.l.b16 %v3328
        %v3908 = vunpack.c.h.b16 %v3328
        %v3909 = vunpack.c.l.b16 %v3329
        %v3910 = vunpack.c.h.b16 %v3329
        %v3911 = vunpack.c.l.b16 %v3330
        %v3912 = vunpack.c.h.b16 %v3330
        %v3913 = vunpack.c.l.b16 %v3331
        %v3914 = vunpack.c.h.b16 %v3331
        %v3915 = vunpack.c.l.b16 %v3332
        %v3916 = vunpack.c.h.b16 %v3332
        %v3917 = vunpack.c.l.b16 %v3333
        %v3918 = vunpack.c.h.b16 %v3333
        %v3919 = vunpack.c.l.b16 %v3334
        %v3920 = vunpack.c.h.b16 %v3334
        %v3921 = vunpack.c.l.b16 %v3335
        %v3922 = vunpack.c.h.b16 %v3335
        %v3923 = vunpack.c.l.b16 %v3336
        %v3924 = vunpack.c.h.b16 %v3336
        %v3925 = vunpack.c.l.b16 %v3337
        %v3926 = vunpack.c.h.b16 %v3337
        %v3927 = vunpack.c.l.b16 %v3338
        %v3928 = vunpack.c.h.b16 %v3338
        %v3929 = vunpack.c.l.b16 %v3339
        %v3930 = vunpack.c.h.b16 %v3339
        %v3931 = vunpack.c.l.b16 %v3340
        %v3932 = vunpack.c.h.b16 %v3340
        %v3933 = vunpack.c.l.b16 %v3341
        %v3934 = vunpack.c.h.b16 %v3341
        %v3935 = vunpack.c.l.b16 %v3342
        %v3936 = vunpack.c.h.b16 %v3342
        %v3937 = vunpack.c.l.b16 %v3343
        %v3938 = vunpack.c.h.b16 %v3343
        %v3939 = vunpack.c.l.b16 %v3344
        %v3940 = vunpack.c.h.b16 %v3344
        %v3941 = vunpack.c.l.b16 %v3345
        %v3942 = vunpack.c.h.b16 %v3345
        %v3943 = vunpack.c.l.b16 %v3346
        %v3944 = vunpack.c.h.b16 %v3346
        %v3945 = vunpack.c.l.b16 %v3347
        %v3946 = vunpack.c.h.b16 %v3347
        %v3947 = vunpack.c.l.b16 %v3348
        %v3948 = vunpack.c.h.b16 %v3348
        %v3949 = vunpack.c.l.b16 %v3349
        %v3950 = vunpack.c.h.b16 %v3349
        %v3951 = vunpack.c.l.b16 %v3350
        %v3952 = vunpack.c.h.b16 %v3350
        %v3953 = vunpack.c.l.b16 %v3351
        %v3954 = vunpack.c.h.b16 %v3351
        %v3955 = vunpack.c.l.b16 %v3352
        %v3956 = vunpack.c.h.b16 %v3352
        %v3957 = vunpack.c.l.b16 %v3353
        %v3958 = vunpack.c.h.b16 %v3353
        %v3959 = vunpack.c.l.b16 %v3354
        %v3960 = vunpack.c.h.b16 %v3354
        %v3961 = vunpack.c.l.b16 %v3355
        %v3962 = vunpack.c.h.b16 %v3355
        %v3963 = vunpack.c.l.b16 %v3356
        %v3964 = vunpack.c.h.b16 %v3356
        %v3965 = vunpack.c.l.b16 %v3357
        %v3966 = vunpack.c.h.b16 %v3357
        %v3967 = vunpack.c.l.b16 %v3358
        %v3968 = vunpack.c.h.b16 %v3358
        %v3969 = vunpack.c.l.b16 %v3359
        %v3970 = vunpack.c.h.b16 %v3359
        %v3971 = vunpack.c.l.b16 %v3360
        %v3972 = vunpack.c.h.b16 %v3360
        %v3973 = vunpack.c.l.b16 %v3361
        %v3974 = vunpack.c.h.b16 %v3361
        %v3975 = vunpack.c.l.b16 %v3362
        %v3976 = vunpack.c.h.b16 %v3362
        %v3977 = vunpack.c.l.b16 %v3363
        %v3978 = vunpack.c.h.b16 %v3363
        %v3979 = vunpack.c.l.b16 %v3364
        %v3980 = vunpack.c.h.b16 %v3364
        %v3981 = vunpack.c.l.b16 %v3365
        %v3982 = vunpack.c.h.b16 %v3365
        %v3983 = vunpack.c.l.b16 %v3366
        %v3984 = vunpack.c.h.b16 %v3366
        %v3985 = vunpack.c.l.b16 %v3367
        %v3986 = vunpack.c.h.b16 %v3367
        %v3987 = vunpack.c.l.b16 %v3368
        %v3988 = vunpack.c.h.b16 %v3368
        %v3989 = vunpack.c.l.b16 %v3369
        %v3990 = vunpack.c.h.b16 %v3369
        %v3991 = vunpack.c.l.b16 %v3370
        %v3992 = vunpack.c.h.b16 %v3370
        %v3993 = vunpack.c.l.b16 %v3371
        %v3994 = vunpack.c.h.b16 %v3371
        %v3995 = vunpack.c.l.b16 %v3372
        %v3996 = vunpack.c.h.b16 %v3372
        %v3997 = vunpack.c.l.b16 %v3373
        %v3998 = vunpack.c.h.b16 %v3373
        %v3999 = vunpack.c.l.b16 %v3374
        %v4000 = vunpack.c.h.b16 %v3374
        %v4001 = vunpack.c.l.b16 %v3375
        %v4002 = vunpack.c.h.b16 %v3375
        %v4003 = vunpack.c.l.b16 %v3376
        %v4004 = vunpack.c.h.b16 %v3376
        %v4005 = vunpack.c.l.b16 %v3377
        %v4006 = vunpack.c.h.b16 %v3377
        %v4007 = vunpack.c.l.b16 %v3378
        %v4008 = vunpack.c.h.b16 %v3378
        %v4009 = vunpack.c.l.b16 %v3379
        %v4010 = vunpack.c.h.b16 %v3379
        %v4011 = vunpack.c.l.b16 %v3380
        %v4012 = vunpack.c.h.b16 %v3380
        %v4013 = vunpack.c.l.b16 %v3381
        %v4014 = vunpack.c.h.b16 %v3381
        %v4015 = vunpack.c.l.b16 %v3382
        %v4016 = vunpack.c.h.b16 %v3382
        %v4017 = vunpack.c.l.b16 %v3383
        %v4018 = vunpack.c.h.b16 %v3383
        %v4019 = vunpack.c.l.b16 %v3384
        %v4020 = vunpack.c.h.b16 %v3384
        %v4021 = vunpack.c.l.b16 %v3385
        %v4022 = vunpack.c.h.b16 %v3385
        %v4023 = vunpack.c.l.b16 %v3386
        %v4024 = vunpack.c.h.b16 %v3386
        %v4025 = vunpack.c.l.b16 %v3387
        %v4026 = vunpack.c.h.b16 %v3387
        %v4027 = vunpack.c.l.b16 %v3388
        %v4028 = vunpack.c.h.b16 %v3388
        %v4029 = vunpack.c.l.b16 %v3389
        %v4030 = vunpack.c.h.b16 %v3389
        %v4031 = vunpack.c.l.b16 %v3390
        %v4032 = vunpack.c.h.b16 %v3390
        %v4033 = vunpack.c.l.b16 %v3391
        %v4034 = vunpack.c.h.b16 %v3391
        %v4035 = vunpack.c.l.b16 %v3392
        %v4036 = vunpack.c.h.b16 %v3392
        %v4037 = vunpack.c.l.b16 %v3393
        %v4038 = vunpack.c.h.b16 %v3393
        %v4039 = vunpack.c.l.b16 %v3394
        %v4040 = vunpack.c.h.b16 %v3394
        %v4041 = vunpack.c.l.b16 %v3395
        %v4042 = vunpack.c.h.b16 %v3395
        %v4043 = vunpack.c.l.b16 %v3396
        %v4044 = vunpack.c.h.b16 %v3396
        %v4045 = vunpack.c.l.b16 %v3397
        %v4046 = vunpack.c.h.b16 %v3397
        %v4047 = vunpack.c.l.b16 %v3398
        %v4048 = vunpack.c.h.b16 %v3398
        %v4049 = vunpack.c.l.b16 %v3399
        %v4050 = vunpack.c.h.b16 %v3399
        %v4051 = vunpack.c.l.b16 %v3400
        %v4052 = vunpack.c.h.b16 %v3400
        %v4053 = vunpack.c.l.b16 %v3401
        %v4054 = vunpack.c.h.b16 %v3401
        %v4055 = vunpack.c.l.b16 %v3402
        %v4056 = vunpack.c.h.b16 %v3402
        %v4057 = vunpack.c.l.b16 %v3403
        %v4058 = vunpack.c.h.b16 %v3403
        %v4059 = vunpack.c.l.b16 %v3404
        %v4060 = vunpack.c.h.b16 %v3404
        %v4061 = vunpack.c.l.b16 %v3405
        %v4062 = vunpack.c.h.b16 %v3405
        %v4063 = vunpack.c.l.b16 %v3406
        %v4064 = vunpack.c.h.b16 %v3406
        %v4065 = vunpack.c.l.b16 %v3407
        %v4066 = vunpack.c.h.b16 %v3407
        %v4067 = vunpack.c.l.b16 %v3408
        %v4068 = vunpack.c.h.b16 %v3408
        %v4069 = vunpack.c.l.b16 %v3409
        %v4070 = vunpack.c.h.b16 %v3409
        %v4071 = vunpack.c.l.b16 %v3410
        %v4072 = vunpack.c.h.b16 %v3410
        %v4073 = vunpack.c.l.b16 %v3411
        %v4074 = vunpack.c.h.b16 %v3411
        %v4075 = vunpack.c.l.b16 %v3412
        %v4076 = vunpack.c.h.b16 %v3412
        %v4077 = vunpack.c.l.b16 %v3413
        %v4078 = vunpack.c.h.b16 %v3413
        %v4079 = vunpack.c.l.b16 %v3414
        %v4080 = vunpack.c.h.b16 %v3414
        %v4081 = vunpack.c.l.b16 %v3415
        %v4082 = vunpack.c.h.b16 %v3415
        %v4083 = vunpack.c.l.b16 %v3416
        %v4084 = vunpack.c.h.b16 %v3416
        %v4085 = vunpack.c.l.b16 %v3417
        %v4086 = vunpack.c.h.b16 %v3417
        %v4087 = vunpack.c.l.b16 %v3418
        %v4088 = vunpack.c.h.b16 %v3418
        %v4089 = vunpack.c.l.b16 %v3419
        %v4090 = vunpack.c.h.b16 %v3419
        %v4091 = vunpack.c.l.b16 %v3420
        %v4092 = vunpack.c.h.b16 %v3420
        %v4093 = vunpack.c.l.b16 %v3421
        %v4094 = vunpack.c.h.b16 %v3421
        %v4095 = vunpack.c.l.b16 %v3422
        %v4096 = vunpack.c.h.b16 %v3422
        %v4097 = vunpack.c.l.b16 %v3423
        %v4098 = vunpack.c.h.b16 %v3423
        %v4099 = vunpack.c.l.b16 %v3424
        %v4100 = vunpack.c.h.b16 %v3424
        %v4101 = vunpack.c.l.b16 %v3425
        %v4102 = vunpack.c.h.b16 %v3425
        %v4103 = vunpack.c.l.b16 %v3426
        %v4104 = vunpack.c.h.b16 %v3426
        %v4105 = vunpack.c.l.b16 %v3427
        %v4106 = vunpack.c.h.b16 %v3427
        %v4107 = vunpack.c.l.b16 %v3428
        %v4108 = vunpack.c.h.b16 %v3428
        %v4109 = vunpack.c.l.b16 %v3429
        %v4110 = vunpack.c.h.b16 %v3429
        %v4111 = vunpack.c.l.b16 %v3430
        %v4112 = vunpack.c.h.b16 %v3430
        %v4113 = vunpack.c.l.b16 %v3431
        %v4114 = vunpack.c.h.b16 %v3431
        %v4115 = vunpack.c.l.b16 %v3432
        %v4116 = vunpack.c.h.b16 %v3432
        %v4117 = vunpack.c.l.b16 %v3433
        %v4118 = vunpack.c.h.b16 %v3433
        %v4119 = vunpack.c.l.b16 %v3434
        %v4120 = vunpack.c.h.b16 %v3434
        %v4121 = vunpack.c.l.b16 %v3435
        %v4122 = vunpack.c.h.b16 %v3435
        %v4123 = vunpack.c.l.b16 %v3436
        %v4124 = vunpack.c.h.b16 %v3436
        %v4125 = vunpack.c.l.b16 %v3437
        %v4126 = vunpack.c.h.b16 %v3437
        %v4127 = vunpack.c.l.b16 %v3438
        %v4128 = vunpack.c.h.b16 %v3438
        %v4129 = vunpack.c.l.b16 %v3439
        %v4130 = vunpack.c.h.b16 %v3439
        %v4131 = vunpack.c.l.b16 %v3440
        %v4132 = vunpack.c.h.b16 %v3440
        %v4133 = vunpack.c.l.b16 %v3441
        %v4134 = vunpack.c.h.b16 %v3441
        %v4135 = vunpack.c.l.b16 %v3442
        %v4136 = vunpack.c.h.b16 %v3442
        %v4137 = vunpack.c.l.b16 %v3443
        %v4138 = vunpack.c.h.b16 %v3443
        %v4139 = vunpack.c.l.b16 %v3444
        %v4140 = vunpack.c.h.b16 %v3444
        %v4141 = vunpack.c.l.b16 %v3445
        %v4142 = vunpack.c.h.b16 %v3445
        %v4143 = vunpack.c.l.b16 %v3446
        %v4144 = vunpack.c.h.b16 %v3446
        %v4145 = vunpack.c.l.b16 %v3447
        %v4146 = vunpack.c.h.b16 %v3447
        %v4147 = vunpack.c.l.b16 %v3448
        %v4148 = vunpack.c.h.b16 %v3448
        %v4149 = vunpack.c.l.b16 %v3449
        %v4150 = vunpack.c.h.b16 %v3449
        %v4151 = vunpack.c.l.b16 %v3450
        %v4152 = vunpack.c.h.b16 %v3450
        %v4153 = vunpack.c.l.b16 %v3451
        %v4154 = vunpack.c.h.b16 %v3451
        %v4155 = vunpack.c.l.b16 %v3452
        %v4156 = vunpack.c.h.b16 %v3452
        %v4157 = vunpack.c.l.b16 %v3453
        %v4158 = vunpack.c.h.b16 %v3453
        %v4159 = vunpack.c.l.b16 %v3454
        %v4160 = vunpack.c.h.b16 %v3454
        %v4161 = vunpack.c.l.b16 %v3455
        %v4162 = vunpack.c.h.b16 %v3455
        %v4163 = vunpack.c.l.b16 %v3456
        %v4164 = vunpack.c.h.b16 %v3456
        %v4165 = vunpack.c.l.b16 %v3457
        %v4166 = vunpack.c.h.b16 %v3457
        %v4167 = vunpack.c.l.b16 %v3458
        %v4168 = vunpack.c.h.b16 %v3458
        %v4169 = vunpack.c.l.b16 %v3459
        %v4170 = vunpack.c.h.b16 %v3459
        %v4171 = vunpack.c.l.b16 %v3460
        %v4172 = vunpack.c.h.b16 %v3460
        %v4173 = vunpack.c.l.b16 %v3461
        %v4174 = vunpack.c.h.b16 %v3461
        %v4175 = vunpack.c.l.b16 %v3462
        %v4176 = vunpack.c.h.b16 %v3462
        %v4177 = vunpack.c.l.b16 %v3463
        %v4178 = vunpack.c.h.b16 %v3463
        %v4179 = vunpack.c.l.b16 %v3464
        %v4180 = vunpack.c.h.b16 %v3464
        %v4181 = vunpack.c.l.b16 %v3465
        %v4182 = vunpack.c.h.b16 %v3465
        %v4183 = vunpack.c.l.b16 %v3466
        %v4184 = vunpack.c.h.b16 %v3466
        %v4185 = vunpack.c.l.b16 %v3467
        %v4186 = vunpack.c.h.b16 %v3467
        %v4187 = vunpack.c.l.b16 %v3468
        %v4188 = vunpack.c.h.b16 %v3468
        %v4189 = vunpack.c.l.b16 %v3469
        %v4190 = vunpack.c.h.b16 %v3469
        %v4191 = vunpack.c.l.b16 %v3470
        %v4192 = vunpack.c.h.b16 %v3470
        %v4193 = vunpack.c.l.b16 %v3471
        %v4194 = vunpack.c.h.b16 %v3471
        %v4195 = vunpack.c.l.b16 %v3472
        %v4196 = vunpack.c.h.b16 %v3472
        %v4197 = vunpack.c.l.b16 %v3473
        %v4198 = vunpack.c.h.b16 %v3473
        %v4199 = vunpack.c.l.b16 %v3474
        %v4200 = vunpack.c.h.b16 %v3474
        %v4201 = vunpack.c.l.b16 %v3475
        %v4202 = vunpack.c.h.b16 %v3475
        %v4203 = vunpack.c.l.b16 %v3476
        %v4204 = vunpack.c.h.b16 %v3476
        %v4205 = vunpack.c.l.b16 %v3477
        %v4206 = vunpack.c.h.b16 %v3477
        %v4207 = vunpack.c.l.b16 %v3478
        %v4208 = vunpack.c.h.b16 %v3478
        %v4209 = vunpack.c.l.b16 %v3479
        %v4210 = vunpack.c.h.b16 %v3479
        %v4211 = vunpack.c.l.b16 %v3480
        %v4212 = vunpack.c.h.b16 %v3480
        %v4213 = vunpack.c.l.b16 %v3481
        %v4214 = vunpack.c.h.b16 %v3481
        %v4215 = vunpack.c.l.b16 %v3482
        %v4216 = vunpack.c.h.b16 %v3482
        %v4217 = vunpack.c.l.b16 %v3483
        %v4218 = vunpack.c.h.b16 %v3483
        %v4219 = vunpack.c.l.b16 %v3484
        %v4220 = vunpack.c.h.b16 %v3484
        %v4221 = vunpack.c.l.b16 %v3485
        %v4222 = vunpack.c.h.b16 %v3485
        %v4223 = vunpack.c.l.b16 %v3486
        %v4224 = vunpack.c.h.b16 %v3486
        %v4225 = vunpack.c.l.b16 %v3487
        %v4226 = vunpack.c.h.b16 %v3487
        %v4227 = vunpack.c.l.b16 %v3488
        %v4228 = vunpack.c.h.b16 %v3488
        %v4229 = vunpack.c.l.b16 %v3489
        %v4230 = vunpack.c.h.b16 %v3489
        %v4231 = vunpack.c.l.b16 %v3490
        %v4232 = vunpack.c.h.b16 %v3490
        %v4233 = vunpack.c.l.b16 %v3491
        %v4234 = vunpack.c.h.b16 %v3491
        %v4235 = vunpack.c.l.b16 %v3492
        %v4236 = vunpack.c.h.b16 %v3492
        %v4237 = vunpack.c.l.b16 %v3493
        %v4238 = vunpack.c.h.b16 %v3493
        %v4239 = vunpack.c.l.b16 %v3494
        %v4240 = vunpack.c.h.b16 %v3494
        %v4241 = vunpack.c.l.b16 %v3495
        %v4242 = vunpack.c.h.b16 %v3495
        %v4243 = vunpack.c.l.b16 %v3496
        %v4244 = vunpack.c.h.b16 %v3496
        %v4245 = vunpack.c.l.b16 %v3497
        %v4246 = vunpack.c.h.b16 %v3497
        %v4247 = vunpack.c.l.b16 %v3498
        %v4248 = vunpack.c.h.b16 %v3498
        %v4249 = vunpack.c.l.b16 %v3499
        %v4250 = vunpack.c.h.b16 %v3499
        %v4251 = vunpack.c.l.b16 %v3500
        %v4252 = vunpack.c.h.b16 %v3500
        %v4253 = vunpack.c.l.b16 %v3501
        %v4254 = vunpack.c.h.b16 %v3501
        %v4255 = vunpack.c.l.b16 %v3502
        %v4256 = vunpack.c.h.b16 %v3502
        %v4257 = vunpack.c.l.b16 %v3503
        %v4258 = vunpack.c.h.b16 %v3503
        %v4259 = vunpack.c.l.b16 %v3504
        %v4260 = vunpack.c.h.b16 %v3504
        %v4261 = vunpack.c.l.b16 %v3505
        %v4262 = vunpack.c.h.b16 %v3505
        %v4263 = vunpack.c.l.b16 %v3506
        %v4264 = vunpack.c.h.b16 %v3506
        %v4265 = vunpack.c.l.b16 %v3507
        %v4266 = vunpack.c.h.b16 %v3507
        %v4267 = vunpack.c.l.b16 %v3508
        %v4268 = vunpack.c.h.b16 %v3508
        %v4269 = vunpack.c.l.b16 %v3509
        %v4270 = vunpack.c.h.b16 %v3509
        %v4271 = vunpack.c.l.b16 %v3510
        %v4272 = vunpack.c.h.b16 %v3510
        %v4273 = vunpack.c.l.b16 %v3511
        %v4274 = vunpack.c.h.b16 %v3511
        %v4275 = vunpack.c.l.b16 %v3512
        %v4276 = vunpack.c.h.b16 %v3512
        %v4277 = vunpack.c.l.b16 %v3513
        %v4278 = vunpack.c.h.b16 %v3513
        %v4279 = vunpack.c.l.b16 %v3514
        %v4280 = vunpack.c.h.b16 %v3514
        %v4281 = vunpack.c.l.b16 %v3515
        %v4282 = vunpack.c.h.b16 %v3515
        %v4283 = vunpack.c.l.b16 %v3516
        %v4284 = vunpack.c.h.b16 %v3516
        %v4285 = vunpack.c.l.b16 %v3517
        %v4286 = vunpack.c.h.b16 %v3517
        %v4287 = vunpack.c.l.b16 %v3518
        %v4288 = vunpack.c.h.b16 %v3518
        %v4289 = vunpack.c.l.b16 %v3519
        %v4290 = vunpack.c.h.b16 %v3519
        %v4291 = vunpack.c.l.b16 %v3520
        %v4292 = vunpack.c.h.b16 %v3520
        %v4293 = vunpack.c.l.b16 %v3521
        %v4294 = vunpack.c.h.b16 %v3521
        %v4295 = vunpack.c.l.b16 %v3522
        %v4296 = vunpack.c.h.b16 %v3522
        %v4297 = vunpack.c.l.b16 %v3523
        %v4298 = vunpack.c.h.b16 %v3523
        %v4299 = vunpack.c.l.b16 %v3524
        %v4300 = vunpack.c.h.b16 %v3524
        %v4301 = vunpack.c.l.b16 %v3525
        %v4302 = vunpack.c.h.b16 %v3525
        %v4303 = vunpack.c.l.b16 %v3526
        %v4304 = vunpack.c.h.b16 %v3526
        %v4305 = vunpack.c.l.b16 %v3527
        %v4306 = vunpack.c.h.b16 %v3527
        %v4307 = vunpack.c.l.b16 %v3528
        %v4308 = vunpack.c.h.b16 %v3528
        %v4309 = vunpack.c.l.b16 %v3529
        %v4310 = vunpack.c.h.b16 %v3529
        %v4311 = vunpack.c.l.b16 %v3530
        %v4312 = vunpack.c.h.b16 %v3530
        %v4313 = vunpack.c.l.b16 %v3531
        %v4314 = vunpack.c.h.b16 %v3531
        %v4315 = vunpack.c.l.b16 %v3532
        %v4316 = vunpack.c.h.b16 %v3532
        %v4317 = vunpack.c.l.b16 %v3533
        %v4318 = vunpack.c.h.b16 %v3533
        %v4319 = vunpack.c.l.b16 %v3534
        %v4320 = vunpack.c.h.b16 %v3534
        %v4321 = vunpack.c.l.b16 %v3535
        %v4322 = vunpack.c.h.b16 %v3535
        %v4323 = vunpack.c.l.b16 %v3536
        %v4324 = vunpack.c.h.b16 %v3536
        %v4325 = vunpack.c.l.b16 %v3537
        %v4326 = vunpack.c.h.b16 %v3537
        %v4327 = vunpack.c.l.b16 %v3538
        %v4328 = vunpack.c.h.b16 %v3538
        %v4329 = vunpack.c.l.b16 %v3539
        %v4330 = vunpack.c.h.b16 %v3539
        %v4331 = vunpack.c.l.b16 %v3540
        %v4332 = vunpack.c.h.b16 %v3540
        %v4333 = vunpack.c.l.b16 %v3541
        %v4334 = vunpack.c.h.b16 %v3541
        %v4335 = vunpack.c.l.b16 %v3542
        %v4336 = vunpack.c.h.b16 %v3542
        %v4337 = vunpack.c.l.b16 %v3543
        %v4338 = vunpack.c.h.b16 %v3543
        %v4339 = vunpack.c.l.b16 %v3544
        %v4340 = vunpack.c.h.b16 %v3544
        %v4341 = vunpack.c.l.b16 %v3545
        %v4342 = vunpack.c.h.b16 %v3545
        %v4343 = vunpack.c.l.b16 %v3546
        %v4344 = vunpack.c.h.b16 %v3546
        %v4345 = vunpack.c.l.b16 %v3547
        %v4346 = vunpack.c.h.b16 %v3547
        %v4347 = vunpack.c.l.b16 %v3548
        %v4348 = vunpack.c.h.b16 %v3548
        %v4349 = vunpack.c.l.b16 %v3549
        %v4350 = vunpack.c.h.b16 %v3549
        %v4351 = vunpack.c.l.b16 %v3550
        %v4352 = vunpack.c.h.b16 %v3550
        %v4353 = vunpack.c.l.b16 %v3551
        %v4354 = vunpack.c.h.b16 %v3551
        %v4355 = vunpack.c.l.b16 %v3552
        %v4356 = vunpack.c.h.b16 %v3552
        %v4357 = vunpack.c.l.b16 %v3553
        %v4358 = vunpack.c.h.b16 %v3553
        %v4359 = vunpack.c.l.b16 %v3554
        %v4360 = vunpack.c.h.b16 %v3554
        %v4361 = vunpack.c.l.b16 %v3555
        %v4362 = vunpack.c.h.b16 %v3555
        %v4363 = vunpack.c.l.b16 %v3556
        %v4364 = vunpack.c.h.b16 %v3556
        %v4365 = vunpack.c.l.b16 %v3557
        %v4366 = vunpack.c.h.b16 %v3557
        %v4367 = vunpack.c.l.b16 %v3558
        %v4368 = vunpack.c.h.b16 %v3558
        %v4369 = vunpack.c.l.b16 %v3559
        %v4370 = vunpack.c.h.b16 %v3559
        %v4371 = vunpack.c.l.b16 %v3560
        %v4372 = vunpack.c.h.b16 %v3560
        %v4373 = vunpack.c.l.b16 %v3561
        %v4374 = vunpack.c.h.b16 %v3561
        %v4375 = vunpack.c.l.b16 %v3562
        %v4376 = vunpack.c.h.b16 %v3562
        %v4377 = vunpack.c.l.b16 %v3563
        %v4378 = vunpack.c.h.b16 %v3563
        %v4379 = vunpack.c.l.b16 %v3564
        %v4380 = vunpack.c.h.b16 %v3564
        %v4381 = vunpack.c.l.b16 %v3565
        %v4382 = vunpack.c.h.b16 %v3565
        %v4383 = vunpack.c.l.b16 %v3566
        %v4384 = vunpack.c.h.b16 %v3566
        %v4385 = vunpack.c.l.b16 %v3567
        %v4386 = vunpack.c.h.b16 %v3567
        %v4387 = vunpack.c.l.b16 %v3568
        %v4388 = vunpack.c.h.b16 %v3568
        %v4389 = vunpack.c.l.b16 %v3569
        %v4390 = vunpack.c.h.b16 %v3569
        %v4391 = vunpack.c.l.b16 %v3570
        %v4392 = vunpack.c.h.b16 %v3570
        %v4393 = vunpack.c.l.b16 %v3571
        %v4394 = vunpack.c.h.b16 %v3571
        %v4395 = vunpack.c.l.b16 %v3572
        %v4396 = vunpack.c.h.b16 %v3572
        %v4397 = vunpack.c.l.b16 %v3573
        %v4398 = vunpack.c.h.b16 %v3573
        %v4399 = vpack.c.b16 %v3891, %v3887
        %v4400 = vpack.c.b16 %v3892, %v3888
        %v4401 = vpack.c.b16 %v3893, %v3889
        %v4402 = vpack.c.b16 %v3894, %v3890
        %v4403 = vpack.c.b16 %v3899, %v3895
        %v4404 = vpack.c.b16 %v3900, %v3896
        %v4405 = vpack.c.b16 %v3901, %v3897
        %v4406 = vpack.c.b16 %v3902, %v3898
        %v4407 = vpack.c.b16 %v3907, %v3903
        %v4408 = vpack.c.b16 %v3908, %v3904
        %v4409 = vpack.c.b16 %v3909, %v3905
        %v4410 = vpack.c.b16 %v3910, %v3906
        %v4411 = vpack.c.b16 %v3915, %v3911
        %v4412 = vpack.c.b16 %v3916, %v3912
        %v4413 = vpack.c.b16 %v3917, %v3913
        %v4414 = vpack.c.b16 %v3918, %v3914
        %v4415 = vpack.c.b16 %v3923, %v3919
        %v4416 = vpack.c.b16 %v3924, %v3920
        %v4417 = vpack.c.b16 %v3925, %v3921
        %v4418 = vpack.c.b16 %v3926, %v3922
        %v4419 = vpack.c.b16 %v3931, %v3927
        %v4420 = vpack.c.b16 %v3932, %v3928
        %v4421 = vpack.c.b16 %v3933, %v3929
        %v4422 = vpack.c.b16 %v3934, %v3930
        %v4423 = vpack.c.b16 %v3939, %v3935
        %v4424 = vpack.c.b16 %v3940, %v3936
        %v4425 = vpack.c.b16 %v3941, %v3937
        %v4426 = vpack.c.b16 %v3942, %v3938
        %v4427 = vpack.c.b16 %v3947, %v3943
        %v4428 = vpack.c.b16 %v3948, %v3944
        %v4429 = vpack.c.b16 %v3949, %v3945
        %v4430 = vpack.c.b16 %v3950, %v3946
        %v4431 = vpack.c.b16 %v3955, %v3951
        %v4432 = vpack.c.b16 %v3956, %v3952
        %v4433 = vpack.c.b16 %v3957, %v3953
        %v4434 = vpack.c.b16 %v3958, %v3954
        %v4435 = vpack.c.b16 %v3963, %v3959
        %v4436 = vpack.c.b16 %v3964, %v3960
        %v4437 = vpack.c.b16 %v3965, %v3961
        %v4438 = vpack.c.b16 %v3966, %v3962
        %v4439 = vpack.c.b16 %v3971, %v3967
        %v4440 = vpack.c.b16 %v3972, %v3968
        %v4441 = vpack.c.b16 %v3973, %v3969
        %v4442 = vpack.c.b16 %v3974, %v3970
        %v4443 = vpack.c.b16 %v3979, %v3975
        %v4444 = vpack.c.b16 %v3980, %v3976
        %v4445 = vpack.c.b16 %v3981, %v3977
        %v4446 = vpack.c.b16 %v3982, %v3978
        %v4447 = vpack.c.b16 %v3987, %v3983
        %v4448 = vpack.c.b16 %v3988, %v3984
        %v4449 = vpack.c.b16 %v3989, %v3985
        %v4450 = vpack.c.b16 %v3990, %v3986
        %v4451 = vpack.c.b16 %v3995, %v3991
        %v4452 = vpack.c.b16 %v3996, %v3992
        %v4453 = vpack.c.b16 %v3997, %v3993
        %v4454 = vpack.c.b16 %v3998, %v3994
        %v4455 = vpack.c.b16 %v4003, %v3999
        %v4456 = vpack.c.b16 %v4004, %v4000
        %v4457 = vpack.c.b16 %v4005, %v4001
        %v4458 = vpack.c.b16 %v4006, %v4002
        %v4459 = vpack.c.b16 %v4011, %v4007
        %v4460 = vpack.c.b16 %v4012, %v4008
        %v4461 = vpack.c.b16 %v4013, %v4009
        %v4462 = vpack.c.b16 %v4014, %v4010
        %v4463 = vpack.c.b16 %v4019, %v4015
        %v4464 = vpack.c.b16 %v4020, %v4016
        %v4465 = vpack.c.b16 %v4021, %v4017
        %v4466 = vpack.c.b16 %v4022, %v4018
        %v4467 = vpack.c.b16 %v4027, %v4023
        %v4468 = vpack.c.b16 %v4028, %v4024
        %v4469 = vpack.c.b16 %v4029, %v4025
        %v4470 = vpack.c.b16 %v4030, %v4026
        %v4471 = vpack.c.b16 %v4035, %v4031
        %v4472 = vpack.c.b16 %v4036, %v4032
        %v4473 = vpack.c.b16 %v4037, %v4033
        %v4474 = vpack.c.b16 %v4038, %v4034
        %v4475 = vpack.c.b16 %v4043, %v4039
        %v4476 = vpack.c.b16 %v4044, %v4040
        %v4477 = vpack.c.b16 %v4045, %v4041
        %v4478 = vpack.c.b16 %v4046, %v4042
        %v4479 = vpack.c.b16 %v4051, %v4047
        %v4480 = vpack.c.b16 %v4052, %v4048
        %v4481 = vpack.c.b16 %v4053, %v4049
        %v4482 = vpack.c.b16 %v4054, %v4050
        %v4483 = vpack.c.b16 %v4059, %v4055
        %v4484 = vpack.c.b16 %v4060, %v4056
        %v4485 = vpack.c.b16 %v4061, %v4057
        %v4486 = vpack.c.b16 %v4062, %v4058
        %v4487 = vpack.c.b16 %v4067, %v4063
        %v4488 = vpack.c.b16 %v4068, %v4064
        %v4489 = vpack.c.b16 %v4069, %v4065
        %v4490 = vpack.c.b16 %v4070, %v4066
        %v4491 = vpack.c.b16 %v4075, %v4071
        %v4492 = vpack.c.b16 %v4076, %v4072
        %v4493 = vpack.c.b16 %v4077, %v4073
        %v4494 = vpack.c.b16 %v4078, %v4074
        %v4495 = vpack.c.b16 %v4083, %v4079
        %v4496 = vpack.c.b16 %v4084, %v4080
        %v4497 = vpack.c.b16 %v4085, %v4081
        %v4498 = vpack.c.b16 %v4086, %v4082
        %v4499 = vpack.c.b16 %v4091, %v4087
        %v4500 = vpack.c.b16 %v4092, %v4088
        %v4501 = vpack.c.b16 %v4093, %v4089
        %v4502 = vpack.c.b16 %v4094, %v4090
        %v4503 = vpack.c.b16 %v4099, %v4095
        %v4504 = vpack.c.b16 %v4100, %v4096
        %v4505 = vpack.c.b16 %v4101, %v4097
        %v4506 = vpack.c.b16 %v4102, %v4098
        %v4507 = vpack.c.b16 %v4107, %v4103
        %v4508 = vpack.c.b16 %v4108, %v4104
        %v4509 = vpack.c.b16 %v4109, %v4105
        %v4510 = vpack.c.b16 %v4110, %v4106
        %v4511 = vpack.c.b16 %v4115, %v4111
        %v4512 = vpack.c.b16 %v4116, %v4112
        %v4513 = vpack.c.b16 %v4117, %v4113
        %v4514 = vpack.c.b16 %v4118, %v4114
        %v4515 = vpack.c.b16 %v4123, %v4119
        %v4516 = vpack.c.b16 %v4124, %v4120
        %v4517 = vpack.c.b16 %v4125, %v4121
        %v4518 = vpack.c.b16 %v4126, %v4122
        %v4519 = vpack.c.b16 %v4131, %v4127
        %v4520 = vpack.c.b16 %v4132, %v4128
        %v4521 = vpack.c.b16 %v4133, %v4129
        %v4522 = vpack.c.b16 %v4134, %v4130
        %v4523 = vpack.c.b16 %v4139, %v4135
        %v4524 = vpack.c.b16 %v4140, %v4136
        %v4525 = vpack.c.b16 %v4141, %v4137
        %v4526 = vpack.c.b16 %v4142, %v4138
        %v4527 = vpack.c.b16 %v4147, %v4143
        %v4528 = vpack.c.b16 %v4148, %v4144
        %v4529 = vpack.c.b16 %v4149, %v4145
        %v4530 = vpack.c.b16 %v4150, %v4146
        %v4531 = vpack.c.b16 %v4155, %v4151
        %v4532 = vpack.c.b16 %v4156, %v4152
        %v4533 = vpack.c.b16 %v4157, %v4153
        %v4534 = vpack.c.b16 %v4158, %v4154
        %v4535 = vpack.c.b16 %v4163, %v4159
        %v4536 = vpack.c.b16 %v4164, %v4160
        %v4537 = vpack.c.b16 %v4165, %v4161
        %v4538 = vpack.c.b16 %v4166, %v4162
        %v4539 = vpack.c.b16 %v4171, %v4167
        %v4540 = vpack.c.b16 %v4172, %v4168
        %v4541 = vpack.c.b16 %v4173, %v4169
        %v4542 = vpack.c.b16 %v4174, %v4170
        %v4543 = vpack.c.b16 %v4179, %v4175
        %v4544 = vpack.c.b16 %v4180, %v4176
        %v4545 = vpack.c.b16 %v4181, %v4177
        %v4546 = vpack.c.b16 %v4182, %v4178
        %v4547 = vpack.c.b16 %v4187, %v4183
        %v4548 = vpack.c.b16 %v4188, %v4184
        %v4549 = vpack.c.b16 %v4189, %v4185
        %v4550 = vpack.c.b16 %v4190, %v4186
        %v4551 = vpack.c.b16 %v4195, %v4191
        %v4552 = vpack.c.b16 %v4196, %v4192
        %v4553 = vpack.c.b16 %v4197, %v4193
        %v4554 = vpack.c.b16 %v4198, %v4194
        %v4555 = vpack.c.b16 %v4203, %v4199
        %v4556 = vpack.c.b16 %v4204, %v4200
        %v4557 = vpack.c.b16 %v4205, %v4201
        %v4558 = vpack.c.b16 %v4206, %v4202
        %v4559 = vpack.c.b16 %v4211, %v4207
        %v4560 = vpack.c.b16 %v4212, %v4208
        %v4561 = vpack.c.b16 %v4213, %v4209
        %v4562 = vpack.c.b16 %v4214, %v4210
        %v4563 = vpack.c.b16 %v4219, %v4215
        %v4564 = vpack.c.b16 %v4220, %v4216
        %v4565 = vpack.c.b16 %v4221, %v4217
        %v4566 = vpack.c.b16 %v4222, %v4218
        %v4567 = vpack.c.b16 %v4227, %v4223
        %v4568 = vpack.c.b16 %v4228, %v4224
        %v4569 = vpack.c.b16 %v4229, %v4225
        %v4570 = vpack.c.b16 %v4230, %v4226
        %v4571 = vpack.c.b16 %v4235, %v4231
        %v4572 = vpack.c.b16 %v4236, %v4232
        %v4573 = vpack.c.b16 %v4237, %v4233
        %v4574 = vpack.c.b16 %v4238, %v4234
        %v4575 = vpack.c.b16 %v4243, %v4239
        %v4576 = vpack.c.b16 %v4244, %v4240
        %v4577 = vpack.c.b16 %v4245, %v4241
        %v4578 = vpack.c.b16 %v4246, %v4242
        %v4579 = vpack.c.b16 %v4251, %v4247
        %v4580 = vpack.c.b16 %v4252, %v4248
        %v4581 = vpack.c.b16 %v4253, %v4249
        %v4582 = vpack.c.b16 %v4254, %v4250
        %v4583 = vpack.c.b16 %v4259, %v4255
        %v4584 = vpack.c.b16 %v4260, %v4256
        %v4585 = vpack.c.b16 %v4261, %v4257
        %v4586 = vpack.c.b16 %v4262, %v4258
        %v4587 = vpack.c.b16 %v4267, %v4263
        %v4588 = vpack.c.b16 %v4268, %v4264
        %v4589 = vpack.c.b16 %v4269, %v4265
        %v4590 = vpack.c.b16 %v4270, %v4266
        %v4591 = vpack.c.b16 %v4275, %v4271
        %v4592 = vpack.c.b16 %v4276, %v4272
        %v4593 = vpack.c.b16 %v4277, %v4273
        %v4594 = vpack.c.b16 %v4278, %v4274
        %v4595 = vpack.c.b16 %v4283, %v4279
        %v4596 = vpack.c.b16 %v4284, %v4280
        %v4597 = vpack.c.b16 %v4285, %v4281
        %v4598 = vpack.c.b16 %v4286, %v4282
        %v4599 = vpack.c.b16 %v4291, %v4287
        %v4600 = vpack.c.b16 %v4292, %v4288
        %v4601 = vpack.c.b16 %v4293, %v4289
        %v4602 = vpack.c.b16 %v4294, %v4290
        %v4603 = vpack.c.b16 %v4299, %v4295
        %v4604 = vpack.c.b16 %v4300, %v4296
        %v4605 = vpack.c.b16 %v4301, %v4297
        %v4606 = vpack.c.b16 %v4302, %v4298
        %v4607 = vpack.c.b16 %v4307, %v4303
        %v4608 = vpack.c.b16 %v4308, %v4304
        %v4609 = vpack.c.b16 %v4309, %v4305
        %v4610 = vpack.c.b16 %v4310, %v4306
        %v4611 = vpack.c.b16 %v4315, %v4311
        %v4612 = vpack.c.b16 %v4316, %v4312
        %v4613 = vpack.c.b16 %v4317, %v4313
        %v4614 = vpack.c.b16 %v4318, %v4314
        %v4615 = vpack.c.b16 %v4323, %v4319
        %v4616 = vpack.c.b16 %v4324, %v4320
        %v4617 = vpack.c.b16 %v4325, %v4321
        %v4618 = vpack.c.b16 %v4326, %v4322
        %v4619 = vpack.c.b16 %v4331, %v4327
        %v4620 = vpack.c.b16 %v4332, %v4328
        %v4621 = vpack.c.b16 %v4333, %v4329
        %v4622 = vpack.c.b16 %v4334, %v4330
        %v4623 = vpack.c.b16 %v4339, %v4335
        %v4624 = vpack.c.b16 %v4340, %v4336
        %v4625 = vpack.c.b16 %v4341, %v4337
        %v4626 = vpack.c.b16 %v4342, %v4338
        %v4627 = vpack.c.b16 %v4347, %v4343
        %v4628 = vpack.c.b16 %v4348, %v4344
        %v4629 = vpack.c.b16 %v4349, %v4345
        %v4630 = vpack.c.b16 %v4350, %v4346
        %v4631 = vpack.c.b16 %v4355, %v4351
        %v4632 = vpack.c.b16 %v4356, %v4352
        %v4633 = vpack.c.b16 %v4357, %v4353
        %v4634 = vpack.c.b16 %v4358, %v4354
        %v4635 = vpack.c.b16 %v4363, %v4359
        %v4636 = vpack.c.b16 %v4364, %v4360
        %v4637 = vpack.c.b16 %v4365, %v4361
        %v4638 = vpack.c.b16 %v4366, %v4362
        %v4639 = vpack.c.b16 %v4371, %v4367
        %v4640 = vpack.c.b16 %v4372, %v4368
        %v4641 = vpack.c.b16 %v4373, %v4369
        %v4642 = vpack.c.b16 %v4374, %v4370
        %v4643 = vpack.c.b16 %v4379, %v4375
        %v4644 = vpack.c.b16 %v4380, %v4376
        %v4645 = vpack.c.b16 %v4381, %v4377
        %v4646 = vpack.c.b16 %v4382, %v4378
        %v4647 = vpack.c.b16 %v4387, %v4383
        %v4648 = vpack.c.b16 %v4388, %v4384
        %v4649 = vpack.c.b16 %v4389, %v4385
        %v4650 = vpack.c.b16 %v4390, %v4386
        %v4651 = vpack.c.b16 %v4395, %v4391
        %v4652 = vpack.c.b16 %v4396, %v4392
        %v4653 = vpack.c.b16 %v4397, %v4393
        %v4654 = vpack.c.b16 %v4398, %v4394
        %4911 = vmatpush.bf16.msra.mxu0 %v4427
        %4912 = vmatpush.bf16.msra.mxu0 %v4423
        %4913 = vmatpush.bf16.msra.mxu0 %v4419
        %4914 = vmatpush.bf16.msra.mxu0 %v4415
        %4915 = vmatpush.bf16.msra.mxu0 %v4411
        %4916 = vmatpush.bf16.msra.mxu0 %v4407
        %4917 = vmatpush.bf16.msra.mxu0 %v4403
        %4918 = vmatpush.bf16.msra.mxu0 %v4399
        %4919 = vmatmul.bf16.gmra.mxu0 %v3615
        %v4920 = vpop.f32.mrf.mxu0
        %v4921 = vadd.f32 0.0, %v4920
        %v4922 = vpop.f32.mrf.mxu0
        %4923 = vdwg.mxu0
        %4924 = vmatpush.bf16.msra.mxu0 %v4459
        %4925 = vmatpush.bf16.msra.mxu0 %v4455
        %4926 = vmatpush.bf16.msra.mxu0 %v4451
        %4927 = vmatpush.bf16.msra.mxu0 %v4447
        %4928 = vmatpush.bf16.msra.mxu0 %v4443
        %4929 = vmatpush.bf16.msra.mxu0 %v4439
        %4930 = vmatpush.bf16.msra.mxu0 %v4435
        %4931 = vmatpush.bf16.msra.mxu0 %v4431
        %4932 = vmatmul.bf16.gmra.mxu0 %v3616
        %v4933 = vpop.f32.mrf.mxu0
        %v4934 = vadd.f32 %v4921, %v4933
        %v4935 = vpop.f32.mrf.mxu0
        %4936 = vdwg.mxu0
        %4937 = vmatpush.bf16.msra.mxu0 %v4491
        %4938 = vmatpush.bf16.msra.mxu0 %v4487
        %4939 = vmatpush.bf16.msra.mxu0 %v4483
        %4940 = vmatpush.bf16.msra.mxu0 %v4479
        %4941 = vmatpush.bf16.msra.mxu0 %v4475
        %4942 = vmatpush.bf16.msra.mxu0 %v4471
        %4943 = vmatpush.bf16.msra.mxu0 %v4467
        %4944 = vmatpush.bf16.msra.mxu0 %v4463
        %4945 = vmatmul.bf16.gmra.mxu0 %v3617
        %v4946 = vpop.f32.mrf.mxu0
        %v4947 = vadd.f32 %v4934, %v4946
        %v4948 = vpop.f32.mrf.mxu0
        %4949 = vdwg.mxu0
        %4950 = vmatpush.bf16.msra.mxu0 %v4523
        %4951 = vmatpush.bf16.msra.mxu0 %v4519
        %4952 = vmatpush.bf16.msra.mxu0 %v4515
        %4953 = vmatpush.bf16.msra.mxu0 %v4511
        %4954 = vmatpush.bf16.msra.mxu0 %v4507
        %4955 = vmatpush.bf16.msra.mxu0 %v4503
        %4956 = vmatpush.bf16.msra.mxu0 %v4499
        %4957 = vmatpush.bf16.msra.mxu0 %v4495
        %4958 = vmatmul.bf16.gmra.mxu0 %v3618
        %v4959 = vpop.f32.mrf.mxu0
        %v4960 = vadd.f32 %v4947, %v4959
        %v4961 = vpop.f32.mrf.mxu0
        %4962 = vdwg.mxu0
        %4963 = vmatpush.bf16.msra.mxu0 %v4555
        %4964 = vmatpush.bf16.msra.mxu0 %v4551
        %4965 = vmatpush.bf16.msra.mxu0 %v4547
        %4966 = vmatpush.bf16.msra.mxu0 %v4543
        %4967 = vmatpush.bf16.msra.mxu0 %v4539
        %4968 = vmatpush.bf16.msra.mxu0 %v4535
        %4969 = vmatpush.bf16.msra.mxu0 %v4531
        %4970 = vmatpush.bf16.msra.mxu0 %v4527
        %4971 = vmatmul.bf16.gmra.mxu0 %v3619
        %v4972 = vpop.f32.mrf.mxu0
        %v4973 = vadd.f32 %v4960, %v4972
        %v4974 = vpop.f32.mrf.mxu0
        %4975 = vdwg.mxu0
        %4976 = vmatpush.bf16.msra.mxu0 %v4587
        %4977 = vmatpush.bf16.msra.mxu0 %v4583
        %4978 = vmatpush.bf16.msra.mxu0 %v4579
        %4979 = vmatpush.bf16.msra.mxu0 %v4575
        %4980 = vmatpush.bf16.msra.mxu0 %v4571
        %4981 = vmatpush.bf16.msra.mxu0 %v4567
        %4982 = vmatpush.bf16.msra.mxu0 %v4563
        %4983 = vmatpush.bf16.msra.mxu0 %v4559
        %4984 = vmatmul.bf16.gmra.mxu0 %v3620
        %v4985 = vpop.f32.mrf.mxu0
        %v4986 = vadd.f32 %v4973, %v4985
        %v4987 = vpop.f32.mrf.mxu0
        %4988 = vdwg.mxu0
        %4989 = vmatpush.bf16.msra.mxu0 %v4619
        %4990 = vmatpush.bf16.msra.mxu0 %v4615
        %4991 = vmatpush.bf16.msra.mxu0 %v4611
        %4992 = vmatpush.bf16.msra.mxu0 %v4607
        %4993 = vmatpush.bf16.msra.mxu0 %v4603
        %4994 = vmatpush.bf16.msra.mxu0 %v4599
        %4995 = vmatpush.bf16.msra.mxu0 %v4595
        %4996 = vmatpush.bf16.msra.mxu0 %v4591
        %4997 = vmatmul.bf16.gmra.mxu0 %v3621
        %v4998 = vpop.f32.mrf.mxu0
        %v4999 = vadd.f32 %v4986, %v4998
        %v5000 = vpop.f32.mrf.mxu0
        %5001 = vdwg.mxu0
        %5002 = vmatpush.bf16.msra.mxu0 %v4651
        %5003 = vmatpush.bf16.msra.mxu0 %v4647
        %5004 = vmatpush.bf16.msra.mxu0 %v4643
        %5005 = vmatpush.bf16.msra.mxu0 %v4639
        %5006 = vmatpush.bf16.msra.mxu0 %v4635
        %5007 = vmatpush.bf16.msra.mxu0 %v4631
        %5008 = vmatpush.bf16.msra.mxu0 %v4627
        %5009 = vmatpush.bf16.msra.mxu0 %v4623
        %5010 = vmatmul.bf16.gmra.mxu0 %v3622
        %v5011 = vpop.f32.mrf.mxu0
        %v5012 = vadd.f32 %v4999, %v5011
        %v5013 = vpop.f32.mrf.mxu0
        %5014 = vdwg.mxu0
        %5015 = vmatpush.bf16.msra.mxu0 %v4428
        %5016 = vmatpush.bf16.msra.mxu0 %v4424
        %5017 = vmatpush.bf16.msra.mxu0 %v4420
        %5018 = vmatpush.bf16.msra.mxu0 %v4416
        %5019 = vmatpush.bf16.msra.mxu0 %v4412
        %5020 = vmatpush.bf16.msra.mxu0 %v4408
        %5021 = vmatpush.bf16.msra.mxu0 %v4404
        %5022 = vmatpush.bf16.msra.mxu0 %v4400
        %5023 = vmatmul.bf16.gmra.mxu0 %v3615
        %v5024 = vpop.f32.mrf.mxu0
        %v5025 = vadd.f32 0.0, %v5024
        %v5026 = vpop.f32.mrf.mxu0
        %5027 = vdwg.mxu0
        %5028 = vmatpush.bf16.msra.mxu0 %v4460
        %5029 = vmatpush.bf16.msra.mxu0 %v4456
        %5030 = vmatpush.bf16.msra.mxu0 %v4452
        %5031 = vmatpush.bf16.msra.mxu0 %v4448
        %5032 = vmatpush.bf16.msra.mxu0 %v4444
        %5033 = vmatpush.bf16.msra.mxu0 %v4440
        %5034 = vmatpush.bf16.msra.mxu0 %v4436
        %5035 = vmatpush.bf16.msra.mxu0 %v4432
        %5036 = vmatmul.bf16.gmra.mxu0 %v3616
        %v5037 = vpop.f32.mrf.mxu0
        %v5038 = vadd.f32 %v5025, %v5037
        %v5039 = vpop.f32.mrf.mxu0
        %5040 = vdwg.mxu0
        %5041 = vmatpush.bf16.msra.mxu0 %v4492
        %5042 = vmatpush.bf16.msra.mxu0 %v4488
        %5043 = vmatpush.bf16.msra.mxu0 %v4484
        %5044 = vmatpush.bf16.msra.mxu0 %v4480
        %5045 = vmatpush.bf16.msra.mxu0 %v4476
        %5046 = vmatpush.bf16.msra.mxu0 %v4472
        %5047 = vmatpush.bf16.msra.mxu0 %v4468
        %5048 = vmatpush.bf16.msra.mxu0 %v4464
        %5049 = vmatmul.bf16.gmra.mxu0 %v3617
        %v5050 = vpop.f32.mrf.mxu0
        %v5051 = vadd.f32 %v5038, %v5050
        %v5052 = vpop.f32.mrf.mxu0
        %5053 = vdwg.mxu0
        %5054 = vmatpush.bf16.msra.mxu0 %v4524
        %5055 = vmatpush.bf16.msra.mxu0 %v4520
        %5056 = vmatpush.bf16.msra.mxu0 %v4516
        %5057 = vmatpush.bf16.msra.mxu0 %v4512
        %5058 = vmatpush.bf16.msra.mxu0 %v4508
        %5059 = vmatpush.bf16.msra.mxu0 %v4504
        %5060 = vmatpush.bf16.msra.mxu0 %v4500
        %5061 = vmatpush.bf16.msra.mxu0 %v4496
        %5062 = vmatmul.bf16.gmra.mxu0 %v3618
        %v5063 = vpop.f32.mrf.mxu0
        %v5064 = vadd.f32 %v5051, %v5063
        %v5065 = vpop.f32.mrf.mxu0
        %5066 = vdwg.mxu0
        %5067 = vmatpush.bf16.msra.mxu0 %v4556
        %5068 = vmatpush.bf16.msra.mxu0 %v4552
        %5069 = vmatpush.bf16.msra.mxu0 %v4548
        %5070 = vmatpush.bf16.msra.mxu0 %v4544
        %5071 = vmatpush.bf16.msra.mxu0 %v4540
        %5072 = vmatpush.bf16.msra.mxu0 %v4536
        %5073 = vmatpush.bf16.msra.mxu0 %v4532
        %5074 = vmatpush.bf16.msra.mxu0 %v4528
        %5075 = vmatmul.bf16.gmra.mxu0 %v3619
        %v5076 = vpop.f32.mrf.mxu0
        %v5077 = vadd.f32 %v5064, %v5076
        %v5078 = vpop.f32.mrf.mxu0
        %5079 = vdwg.mxu0
        %5080 = vmatpush.bf16.msra.mxu0 %v4588
        %5081 = vmatpush.bf16.msra.mxu0 %v4584
        %5082 = vmatpush.bf16.msra.mxu0 %v4580
        %5083 = vmatpush.bf16.msra.mxu0 %v4576
        %5084 = vmatpush.bf16.msra.mxu0 %v4572
        %5085 = vmatpush.bf16.msra.mxu0 %v4568
        %5086 = vmatpush.bf16.msra.mxu0 %v4564
        %5087 = vmatpush.bf16.msra.mxu0 %v4560
        %5088 = vmatmul.bf16.gmra.mxu0 %v3620
        %v5089 = vpop.f32.mrf.mxu0
        %v5090 = vadd.f32 %v5077, %v5089
        %v5091 = vpop.f32.mrf.mxu0
        %5092 = vdwg.mxu0
        %5093 = vmatpush.bf16.msra.mxu0 %v4620
        %5094 = vmatpush.bf16.msra.mxu0 %v4616
        %5095 = vmatpush.bf16.msra.mxu0 %v4612
        %5096 = vmatpush.bf16.msra.mxu0 %v4608
        %5097 = vmatpush.bf16.msra.mxu0 %v4604
        %5098 = vmatpush.bf16.msra.mxu0 %v4600
        %5099 = vmatpush.bf16.msra.mxu0 %v4596
        %5100 = vmatpush.bf16.msra.mxu0 %v4592
        %5101 = vmatmul.bf16.gmra.mxu0 %v3621
        %v5102 = vpop.f32.mrf.mxu0
        %v5103 = vadd.f32 %v5090, %v5102
        %v5104 = vpop.f32.mrf.mxu0
        %5105 = vdwg.mxu0
        %5106 = vmatpush.bf16.msra.mxu0 %v4652
        %5107 = vmatpush.bf16.msra.mxu0 %v4648
        %5108 = vmatpush.bf16.msra.mxu0 %v4644
        %5109 = vmatpush.bf16.msra.mxu0 %v4640
        %5110 = vmatpush.bf16.msra.mxu0 %v4636
        %5111 = vmatpush.bf16.msra.mxu0 %v4632
        %5112 = vmatpush.bf16.msra.mxu0 %v4628
        %5113 = vmatpush.bf16.msra.mxu0 %v4624
        %5114 = vmatmul.bf16.gmra.mxu0 %v3622
        %v5115 = vpop.f32.mrf.mxu0
        %v5116 = vadd.f32 %v5103, %v5115
        %v5117 = vpop.f32.mrf.mxu0
        %5118 = vdwg.mxu0
        %5119 = vmatpush.bf16.msra.mxu0 %v4429
        %5120 = vmatpush.bf16.msra.mxu0 %v4425
        %5121 = vmatpush.bf16.msra.mxu0 %v4421
        %5122 = vmatpush.bf16.msra.mxu0 %v4417
        %5123 = vmatpush.bf16.msra.mxu0 %v4413
        %5124 = vmatpush.bf16.msra.mxu0 %v4409
        %5125 = vmatpush.bf16.msra.mxu0 %v4405
        %5126 = vmatpush.bf16.msra.mxu0 %v4401
        %5127 = vmatmul.bf16.gmra.mxu0 %v3615
        %v5128 = vpop.f32.mrf.mxu0
        %v5129 = vadd.f32 0.0, %v5128
        %v5130 = vpop.f32.mrf.mxu0
        %5131 = vdwg.mxu0
        %5132 = vmatpush.bf16.msra.mxu0 %v4461
        %5133 = vmatpush.bf16.msra.mxu0 %v4457
        %5134 = vmatpush.bf16.msra.mxu0 %v4453
        %5135 = vmatpush.bf16.msra.mxu0 %v4449
        %5136 = vmatpush.bf16.msra.mxu0 %v4445
        %5137 = vmatpush.bf16.msra.mxu0 %v4441
        %5138 = vmatpush.bf16.msra.mxu0 %v4437
        %5139 = vmatpush.bf16.msra.mxu0 %v4433
        %5140 = vmatmul.bf16.gmra.mxu0 %v3616
        %v5141 = vpop.f32.mrf.mxu0
        %v5142 = vadd.f32 %v5129, %v5141
        %v5143 = vpop.f32.mrf.mxu0
        %5144 = vdwg.mxu0
        %5145 = vmatpush.bf16.msra.mxu0 %v4493
        %5146 = vmatpush.bf16.msra.mxu0 %v4489
        %5147 = vmatpush.bf16.msra.mxu0 %v4485
        %5148 = vmatpush.bf16.msra.mxu0 %v4481
        %5149 = vmatpush.bf16.msra.mxu0 %v4477
        %5150 = vmatpush.bf16.msra.mxu0 %v4473
        %5151 = vmatpush.bf16.msra.mxu0 %v4469
        %5152 = vmatpush.bf16.msra.mxu0 %v4465
        %5153 = vmatmul.bf16.gmra.mxu0 %v3617
        %v5154 = vpop.f32.mrf.mxu0
        %v5155 = vadd.f32 %v5142, %v5154
        %v5156 = vpop.f32.mrf.mxu0
        %5157 = vdwg.mxu0
        %5158 = vmatpush.bf16.msra.mxu0 %v4525
        %5159 = vmatpush.bf16.msra.mxu0 %v4521
        %5160 = vmatpush.bf16.msra.mxu0 %v4517
        %5161 = vmatpush.bf16.msra.mxu0 %v4513
        %5162 = vmatpush.bf16.msra.mxu0 %v4509
        %5163 = vmatpush.bf16.msra.mxu0 %v4505
        %5164 = vmatpush.bf16.msra.mxu0 %v4501
        %5165 = vmatpush.bf16.msra.mxu0 %v4497
        %5166 = vmatmul.bf16.gmra.mxu0 %v3618
        %v5167 = vpop.f32.mrf.mxu0
        %v5168 = vadd.f32 %v5155, %v5167
        %v5169 = vpop.f32.mrf.mxu0
        %5170 = vdwg.mxu0
        %5171 = vmatpush.bf16.msra.mxu0 %v4557
        %5172 = vmatpush.bf16.msra.mxu0 %v4553
        %5173 = vmatpush.bf16.msra.mxu0 %v4549
        %5174 = vmatpush.bf16.msra.mxu0 %v4545
        %5175 = vmatpush.bf16.msra.mxu0 %v4541
        %5176 = vmatpush.bf16.msra.mxu0 %v4537
        %5177 = vmatpush.bf16.msra.mxu0 %v4533
        %5178 = vmatpush.bf16.msra.mxu0 %v4529
        %5179 = vmatmul.bf16.gmra.mxu0 %v3619
        %v5180 = vpop.f32.mrf.mxu0
        %v5181 = vadd.f32 %v5168, %v5180
        %v5182 = vpop.f32.mrf.mxu0
        %5183 = vdwg.mxu0
        %5184 = vmatpush.bf16.msra.mxu0 %v4589
        %5185 = vmatpush.bf16.msra.mxu0 %v4585
        %5186 = vmatpush.bf16.msra.mxu0 %v4581
        %5187 = vmatpush.bf16.msra.mxu0 %v4577
        %5188 = vmatpush.bf16.msra.mxu0 %v4573
        %5189 = vmatpush.bf16.msra.mxu0 %v4569
        %5190 = vmatpush.bf16.msra.mxu0 %v4565
        %5191 = vmatpush.bf16.msra.mxu0 %v4561
        %5192 = vmatmul.bf16.gmra.mxu0 %v3620
        %v5193 = vpop.f32.mrf.mxu0
        %v5194 = vadd.f32 %v5181, %v5193
        %v5195 = vpop.f32.mrf.mxu0
        %5196 = vdwg.mxu0
        %5197 = vmatpush.bf16.msra.mxu0 %v4621
        %5198 = vmatpush.bf16.msra.mxu0 %v4617
        %5199 = vmatpush.bf16.msra.mxu0 %v4613
        %5200 = vmatpush.bf16.msra.mxu0 %v4609
        %5201 = vmatpush.bf16.msra.mxu0 %v4605
        %5202 = vmatpush.bf16.msra.mxu0 %v4601
        %5203 = vmatpush.bf16.msra.mxu0 %v4597
        %5204 = vmatpush.bf16.msra.mxu0 %v4593
        %5205 = vmatmul.bf16.gmra.mxu0 %v3621
        %v5206 = vpop.f32.mrf.mxu0
        %v5207 = vadd.f32 %v5194, %v5206
        %v5208 = vpop.f32.mrf.mxu0
        %5209 = vdwg.mxu0
        %5210 = vmatpush.bf16.msra.mxu0 %v4653
        %5211 = vmatpush.bf16.msra.mxu0 %v4649
        %5212 = vmatpush.bf16.msra.mxu0 %v4645
        %5213 = vmatpush.bf16.msra.mxu0 %v4641
        %5214 = vmatpush.bf16.msra.mxu0 %v4637
        %5215 = vmatpush.bf16.msra.mxu0 %v4633
        %5216 = vmatpush.bf16.msra.mxu0 %v4629
        %5217 = vmatpush.bf16.msra.mxu0 %v4625
        %5218 = vmatmul.bf16.gmra.mxu0 %v3622
        %v5219 = vpop.f32.mrf.mxu0
        %v5220 = vadd.f32 %v5207, %v5219
        %v5221 = vpop.f32.mrf.mxu0
        %5222 = vdwg.mxu0
        %5223 = vmatpush.bf16.msra.mxu0 %v4430
        %5224 = vmatpush.bf16.msra.mxu0 %v4426
        %5225 = vmatpush.bf16.msra.mxu0 %v4422
        %5226 = vmatpush.bf16.msra.mxu0 %v4418
        %5227 = vmatpush.bf16.msra.mxu0 %v4414
        %5228 = vmatpush.bf16.msra.mxu0 %v4410
        %5229 = vmatpush.bf16.msra.mxu0 %v4406
        %5230 = vmatpush.bf16.msra.mxu0 %v4402
        %5231 = vmatmul.bf16.gmra.mxu0 %v3615
        %v5232 = vpop.f32.mrf.mxu0
        %v5233 = vadd.f32 0.0, %v5232
        %v5234 = vpop.f32.mrf.mxu0
        %5235 = vdwg.mxu0
        %5236 = vmatpush.bf16.msra.mxu0 %v4462
        %5237 = vmatpush.bf16.msra.mxu0 %v4458
        %5238 = vmatpush.bf16.msra.mxu0 %v4454
        %5239 = vmatpush.bf16.msra.mxu0 %v4450
        %5240 = vmatpush.bf16.msra.mxu0 %v4446
        %5241 = vmatpush.bf16.msra.mxu0 %v4442
        %5242 = vmatpush.bf16.msra.mxu0 %v4438
        %5243 = vmatpush.bf16.msra.mxu0 %v4434
        %5244 = vmatmul.bf16.gmra.mxu0 %v3616
        %v5245 = vpop.f32.mrf.mxu0
        %v5246 = vadd.f32 %v5233, %v5245
        %v5247 = vpop.f32.mrf.mxu0
        %5248 = vdwg.mxu0
        %5249 = vmatpush.bf16.msra.mxu0 %v4494
        %5250 = vmatpush.bf16.msra.mxu0 %v4490
        %5251 = vmatpush.bf16.msra.mxu0 %v4486
        %5252 = vmatpush.bf16.msra.mxu0 %v4482
        %5253 = vmatpush.bf16.msra.mxu0 %v4478
        %5254 = vmatpush.bf16.msra.mxu0 %v4474
        %5255 = vmatpush.bf16.msra.mxu0 %v4470
        %5256 = vmatpush.bf16.msra.mxu0 %v4466
        %5257 = vmatmul.bf16.gmra.mxu0 %v3617
        %v5258 = vpop.f32.mrf.mxu0
        %v5259 = vadd.f32 %v5246, %v5258
        %v5260 = vpop.f32.mrf.mxu0
        %5261 = vdwg.mxu0
        %5262 = vmatpush.bf16.msra.mxu0 %v4526
        %5263 = vmatpush.bf16.msra.mxu0 %v4522
        %5264 = vmatpush.bf16.msra.mxu0 %v4518
        %5265 = vmatpush.bf16.msra.mxu0 %v4514
        %5266 = vmatpush.bf16.msra.mxu0 %v4510
        %5267 = vmatpush.bf16.msra.mxu0 %v4506
        %5268 = vmatpush.bf16.msra.mxu0 %v4502
        %5269 = vmatpush.bf16.msra.mxu0 %v4498
        %5270 = vmatmul.bf16.gmra.mxu0 %v3618
        %v5271 = vpop.f32.mrf.mxu0
        %v5272 = vadd.f32 %v5259, %v5271
        %v5273 = vpop.f32.mrf.mxu0
        %5274 = vdwg.mxu0
        %5275 = vmatpush.bf16.msra.mxu0 %v4558
        %5276 = vmatpush.bf16.msra.mxu0 %v4554
        %5277 = vmatpush.bf16.msra.mxu0 %v4550
        %5278 = vmatpush.bf16.msra.mxu0 %v4546
        %5279 = vmatpush.bf16.msra.mxu0 %v4542
        %5280 = vmatpush.bf16.msra.mxu0 %v4538
        %5281 = vmatpush.bf16.msra.mxu0 %v4534
        %5282 = vmatpush.bf16.msra.mxu0 %v4530
        %5283 = vmatmul.bf16.gmra.mxu0 %v3619
        %v5284 = vpop.f32.mrf.mxu0
        %v5285 = vadd.f32 %v5272, %v5284
        %v5286 = vpop.f32.mrf.mxu0
        %5287 = vdwg.mxu0
        %5288 = vmatpush.bf16.msra.mxu0 %v4590
        %5289 = vmatpush.bf16.msra.mxu0 %v4586
        %5290 = vmatpush.bf16.msra.mxu0 %v4582
        %5291 = vmatpush.bf16.msra.mxu0 %v4578
        %5292 = vmatpush.bf16.msra.mxu0 %v4574
        %5293 = vmatpush.bf16.msra.mxu0 %v4570
        %5294 = vmatpush.bf16.msra.mxu0 %v4566
        %5295 = vmatpush.bf16.msra.mxu0 %v4562
        %5296 = vmatmul.bf16.gmra.mxu0 %v3620
        %v5297 = vpop.f32.mrf.mxu0
        %v5298 = vadd.f32 %v5285, %v5297
        %v5299 = vpop.f32.mrf.mxu0
        %5300 = vdwg.mxu0
        %5301 = vmatpush.bf16.msra.mxu0 %v4622
        %5302 = vmatpush.bf16.msra.mxu0 %v4618
        %5303 = vmatpush.bf16.msra.mxu0 %v4614
        %5304 = vmatpush.bf16.msra.mxu0 %v4610
        %5305 = vmatpush.bf16.msra.mxu0 %v4606
        %5306 = vmatpush.bf16.msra.mxu0 %v4602
        %5307 = vmatpush.bf16.msra.mxu0 %v4598
        %5308 = vmatpush.bf16.msra.mxu0 %v4594
        %5309 = vmatmul.bf16.gmra.mxu0 %v3621
        %v5310 = vpop.f32.mrf.mxu0
        %v5311 = vadd.f32 %v5298, %v5310
        %v5312 = vpop.f32.mrf.mxu0
        %5313 = vdwg.mxu0
        %5314 = vmatpush.bf16.msra.mxu0 %v4654
        %5315 = vmatpush.bf16.msra.mxu0 %v4650
        %5316 = vmatpush.bf16.msra.mxu0 %v4646
        %5317 = vmatpush.bf16.msra.mxu0 %v4642
        %5318 = vmatpush.bf16.msra.mxu0 %v4638
        %5319 = vmatpush.bf16.msra.mxu0 %v4634
        %5320 = vmatpush.bf16.msra.mxu0 %v4630
        %5321 = vmatpush.bf16.msra.mxu0 %v4626
        %5322 = vmatmul.bf16.gmra.mxu0 %v3622
        %v5323 = vpop.f32.mrf.mxu0
        %v5324 = vadd.f32 %v5311, %v5323
        %v5325 = vpop.f32.mrf.mxu0
        %5326 = vdwg.mxu0
        %v5331 = vrot.slane %v5116, 6
        %v5332 = vrot.slane %v5220, 4
        %v5333 = vrot.slane %v5324, 2
        %vm5334 = vcmask 1041408
        %v5335 = vsel %vm5334, %v5012, %v5331
        %vm5336 = vcmask 1045508
        %v5337 = vsel %vm5336, %v5332, %v5333
        %vm5338 = vcmask 1043456
        %v5339 = vsel %vm5338, %v5335, %v5337
        %v5341 = vadd.f32 %v3301, %v5339
        %5342 = vst [vmem:[#allocation2] sm:$0xff] %v5341
        %p5343 = scmp.eq.s32.totalorder %s27, 1
        // Predicated region
        $region77: #{forward.1} parent=39 // pred_check
          %p5344 = pneg %p5343
        $region78: #{forward.1} parent=39 // pred_check_branch
          %5346 = sbr.rel (%p5344) target = $region80
        $region79: #{forward.1} parent=39 // pred_region
          %s5347 = smul.u32 4, 64
          %s5348 = smul.u32 %s5347, 2
          %s5349 = sshll.u32 %s5348, 4
          %5350 = dma.done [#allocation7], %s5349
          %s5351 = scalar_lea.sflag [#allocation7], 1
          %s5352 = smul.u32 1, 2
          %s5353 = sshll.u32 %s5352, 4
          %5354 = dma.done %s5351, %s5353
          %s5355 = scalar_lea.sflag [#allocation7], 2
          %s5356 = smul.u32 4, 32
          %s5357 = smul.u32 %s5356, 1
          %s5358 = sshll.u32 %s5357, 4
          %5359 = dma.done %s5355, %s5358
          %s5360 = scalar_lea.sflag [#allocation7], 3
          %s5361 = smul.u32 1, 1
          %s5362 = sshll.u32 %s5361, 4
          %5363 = dma.done %s5360, %s5362
          %v5364 = vld [vmem:[#allocation2] sm:$0xff]
          %v5365 = vld [vmem:[#allocation13] sm:$0xf]
          %v5367 = vperm.slane %v5365, 0
          %v5368 = vperm.slane %v5365, 1
          %v5369 = vperm.slane %v5365, 2
          %v5370 = vperm.slane %v5365, 3
          %v5371 = vrot.slane %v5368, 6
          %v5372 = vrot.slane %v5369, 4
          %v5373 = vrot.slane %v5370, 2
          %v5374 = vsel %vm5334, %v5367, %v5371
          %v5375 = vsel %vm5336, %v5372, %v5373
          %v5376 = vsel %vm5338, %v5374, %v5375
          %v5378 = vadd.f32 %v5364, %v5376
          %v5379 = vmax.f32 %v5378, 0.0
          %5381 = vst [vmem:[#allocation1] ss:$4 sm:$0xff] %v5379
          %v5382 = vld.sshfl [vmem:[#allocation1] sm:$0xff pattern:$0x73625140]
          %v5383 = vld.sshfl [vmem:[#allocation1 + $0x8] sm:$0xff pattern:$0x73625140]
          %v5384 = vld.sshfl [vmem:[#allocation1 + $0x10] sm:$0xff pattern:$0x73625140]
          %v5385 = vld.sshfl [vmem:[#allocation1 + $0x18] sm:$0xff pattern:$0x73625140]
          %v5390 = vpack.c.bf16 %v5382, %v5382
          %v5391 = vpack.c.bf16 %v5383, %v5383
          %v5392 = vpack.c.bf16 %v5384, %v5384
          %v5393 = vpack.c.bf16 %v5385, %v5385
          %v5394 = vld [vmem:[#allocation3] sm:$0xff]
          %v5395 = vld [vmem:[#allocation3 + $0x8] sm:$0xff]
          %v5396 = vld [vmem:[#allocation3 + $0x10] sm:$0xff]
          %v5397 = vld [vmem:[#allocation3 + $0x18] sm:$0xff]
          %v5398 = vld [vmem:[#allocation3 + $0x20] sm:$0xff]
          %v5399 = vld [vmem:[#allocation3 + $0x28] sm:$0xff]
          %v5400 = vld [vmem:[#allocation3 + $0x30] sm:$0xff]
          %v5401 = vld [vmem:[#allocation3 + $0x38] sm:$0xff]
          %v5402 = vld [vmem:[#allocation3 + $0x40] sm:$0xff]
          %v5403 = vld [vmem:[#allocation3 + $0x48] sm:$0xff]
          %v5404 = vld [vmem:[#allocation3 + $0x50] sm:$0xff]
          %v5405 = vld [vmem:[#allocation3 + $0x58] sm:$0xff]
          %v5406 = vld [vmem:[#allocation3 + $0x60] sm:$0xff]
          %v5407 = vld [vmem:[#allocation3 + $0x68] sm:$0xff]
          %v5408 = vld [vmem:[#allocation3 + $0x70] sm:$0xff]
          %v5409 = vld [vmem:[#allocation3 + $0x78] sm:$0xff]
          %v5410 = vld [vmem:[#allocation3 + $0x80] sm:$0xff]
          %v5411 = vld [vmem:[#allocation3 + $0x88] sm:$0xff]
          %v5412 = vld [vmem:[#allocation3 + $0x90] sm:$0xff]
          %v5413 = vld [vmem:[#allocation3 + $0x98] sm:$0xff]
          %v5414 = vld [vmem:[#allocation3 + $0xa0] sm:$0xff]
          %v5415 = vld [vmem:[#allocation3 + $0xa8] sm:$0xff]
          %v5416 = vld [vmem:[#allocation3 + $0xb0] sm:$0xff]
          %v5417 = vld [vmem:[#allocation3 + $0xb8] sm:$0xff]
          %v5418 = vld [vmem:[#allocation3 + $0xc0] sm:$0xff]
          %v5419 = vld [vmem:[#allocation3 + $0xc8] sm:$0xff]
          %v5420 = vld [vmem:[#allocation3 + $0xd0] sm:$0xff]
          %v5421 = vld [vmem:[#allocation3 + $0xd8] sm:$0xff]
          %v5422 = vld [vmem:[#allocation3 + $0xe0] sm:$0xff]
          %v5423 = vld [vmem:[#allocation3 + $0xe8] sm:$0xff]
          %v5424 = vld [vmem:[#allocation3 + $0xf0] sm:$0xff]
          %v5425 = vld [vmem:[#allocation3 + $0xf8] sm:$0xff]
          %v5426 = vld [vmem:[#allocation3 + $0x100] sm:$0xff]
          %v5427 = vld [vmem:[#allocation3 + $0x108] sm:$0xff]
          %v5428 = vld [vmem:[#allocation3 + $0x110] sm:$0xff]
          %v5429 = vld [vmem:[#allocation3 + $0x118] sm:$0xff]
          %v5430 = vld [vmem:[#allocation3 + $0x120] sm:$0xff]
          %v5431 = vld [vmem:[#allocation3 + $0x128] sm:$0xff]
          %v5432 = vld [vmem:[#allocation3 + $0x130] sm:$0xff]
          %v5433 = vld [vmem:[#allocation3 + $0x138] sm:$0xff]
          %v5434 = vld [vmem:[#allocation3 + $0x140] sm:$0xff]
          %v5435 = vld [vmem:[#allocation3 + $0x148] sm:$0xff]
          %v5436 = vld [vmem:[#allocation3 + $0x150] sm:$0xff]
          %v5437 = vld [vmem:[#allocation3 + $0x158] sm:$0xff]
          %v5438 = vld [vmem:[#allocation3 + $0x160] sm:$0xff]
          %v5439 = vld [vmem:[#allocation3 + $0x168] sm:$0xff]
          %v5440 = vld [vmem:[#allocation3 + $0x170] sm:$0xff]
          %v5441 = vld [vmem:[#allocation3 + $0x178] sm:$0xff]
          %v5442 = vld [vmem:[#allocation3 + $0x180] sm:$0xff]
          %v5443 = vld [vmem:[#allocation3 + $0x188] sm:$0xff]
          %v5444 = vld [vmem:[#allocation3 + $0x190] sm:$0xff]
          %v5445 = vld [vmem:[#allocation3 + $0x198] sm:$0xff]
          %v5446 = vld [vmem:[#allocation3 + $0x1a0] sm:$0xff]
          %v5447 = vld [vmem:[#allocation3 + $0x1a8] sm:$0xff]
          %v5448 = vld [vmem:[#allocation3 + $0x1b0] sm:$0xff]
          %v5449 = vld [vmem:[#allocation3 + $0x1b8] sm:$0xff]
          %v5450 = vld [vmem:[#allocation3 + $0x1c0] sm:$0xff]
          %v5451 = vld [vmem:[#allocation3 + $0x1c8] sm:$0xff]
          %v5452 = vld [vmem:[#allocation3 + $0x1d0] sm:$0xff]
          %v5453 = vld [vmem:[#allocation3 + $0x1d8] sm:$0xff]
          %v5454 = vld [vmem:[#allocation3 + $0x1e0] sm:$0xff]
          %v5455 = vld [vmem:[#allocation3 + $0x1e8] sm:$0xff]
          %v5456 = vld [vmem:[#allocation3 + $0x1f0] sm:$0xff]
          %v5457 = vld [vmem:[#allocation3 + $0x1f8] sm:$0xff]
          %v5458 = vld [vmem:[#allocation4] sm:$0x3]
          %v5460 = vperm.slane %v5458, 0
          %v5461 = vperm.slane %v5458, 1
          %v5528 = vunpack.c.l.b16 %v5394
          %v5529 = vunpack.c.h.b16 %v5394
          %v5530 = vunpack.c.l.b16 %v5395
          %v5531 = vunpack.c.h.b16 %v5395
          %v5532 = vunpack.c.l.b16 %v5396
          %v5533 = vunpack.c.h.b16 %v5396
          %v5534 = vunpack.c.l.b16 %v5397
          %v5535 = vunpack.c.h.b16 %v5397
          %v5536 = vunpack.c.l.b16 %v5398
          %v5537 = vunpack.c.h.b16 %v5398
          %v5538 = vunpack.c.l.b16 %v5399
          %v5539 = vunpack.c.h.b16 %v5399
          %v5540 = vunpack.c.l.b16 %v5400
          %v5541 = vunpack.c.h.b16 %v5400
          %v5542 = vunpack.c.l.b16 %v5401
          %v5543 = vunpack.c.h.b16 %v5401
          %v5544 = vunpack.c.l.b16 %v5402
          %v5545 = vunpack.c.h.b16 %v5402
          %v5546 = vunpack.c.l.b16 %v5403
          %v5547 = vunpack.c.h.b16 %v5403
          %v5548 = vunpack.c.l.b16 %v5404
          %v5549 = vunpack.c.h.b16 %v5404
          %v5550 = vunpack.c.l.b16 %v5405
          %v5551 = vunpack.c.h.b16 %v5405
          %v5552 = vunpack.c.l.b16 %v5406
          %v5553 = vunpack.c.h.b16 %v5406
          %v5554 = vunpack.c.l.b16 %v5407
          %v5555 = vunpack.c.h.b16 %v5407
          %v5556 = vunpack.c.l.b16 %v5408
          %v5557 = vunpack.c.h.b16 %v5408
          %v5558 = vunpack.c.l.b16 %v5409
          %v5559 = vunpack.c.h.b16 %v5409
          %v5560 = vunpack.c.l.b16 %v5410
          %v5561 = vunpack.c.h.b16 %v5410
          %v5562 = vunpack.c.l.b16 %v5411
          %v5563 = vunpack.c.h.b16 %v5411
          %v5564 = vunpack.c.l.b16 %v5412
          %v5565 = vunpack.c.h.b16 %v5412
          %v5566 = vunpack.c.l.b16 %v5413
          %v5567 = vunpack.c.h.b16 %v5413
          %v5568 = vunpack.c.l.b16 %v5414
          %v5569 = vunpack.c.h.b16 %v5414
          %v5570 = vunpack.c.l.b16 %v5415
          %v5571 = vunpack.c.h.b16 %v5415
          %v5572 = vunpack.c.l.b16 %v5416
          %v5573 = vunpack.c.h.b16 %v5416
          %v5574 = vunpack.c.l.b16 %v5417
          %v5575 = vunpack.c.h.b16 %v5417
          %v5576 = vunpack.c.l.b16 %v5418
          %v5577 = vunpack.c.h.b16 %v5418
          %v5578 = vunpack.c.l.b16 %v5419
          %v5579 = vunpack.c.h.b16 %v5419
          %v5580 = vunpack.c.l.b16 %v5420
          %v5581 = vunpack.c.h.b16 %v5420
          %v5582 = vunpack.c.l.b16 %v5421
          %v5583 = vunpack.c.h.b16 %v5421
          %v5584 = vunpack.c.l.b16 %v5422
          %v5585 = vunpack.c.h.b16 %v5422
          %v5586 = vunpack.c.l.b16 %v5423
          %v5587 = vunpack.c.h.b16 %v5423
          %v5588 = vunpack.c.l.b16 %v5424
          %v5589 = vunpack.c.h.b16 %v5424
          %v5590 = vunpack.c.l.b16 %v5425
          %v5591 = vunpack.c.h.b16 %v5425
          %v5592 = vunpack.c.l.b16 %v5426
          %v5593 = vunpack.c.h.b16 %v5426
          %v5594 = vunpack.c.l.b16 %v5427
          %v5595 = vunpack.c.h.b16 %v5427
          %v5596 = vunpack.c.l.b16 %v5428
          %v5597 = vunpack.c.h.b16 %v5428
          %v5598 = vunpack.c.l.b16 %v5429
          %v5599 = vunpack.c.h.b16 %v5429
          %v5600 = vunpack.c.l.b16 %v5430
          %v5601 = vunpack.c.h.b16 %v5430
          %v5602 = vunpack.c.l.b16 %v5431
          %v5603 = vunpack.c.h.b16 %v5431
          %v5604 = vunpack.c.l.b16 %v5432
          %v5605 = vunpack.c.h.b16 %v5432
          %v5606 = vunpack.c.l.b16 %v5433
          %v5607 = vunpack.c.h.b16 %v5433
          %v5608 = vunpack.c.l.b16 %v5434
          %v5609 = vunpack.c.h.b16 %v5434
          %v5610 = vunpack.c.l.b16 %v5435
          %v5611 = vunpack.c.h.b16 %v5435
          %v5612 = vunpack.c.l.b16 %v5436
          %v5613 = vunpack.c.h.b16 %v5436
          %v5614 = vunpack.c.l.b16 %v5437
          %v5615 = vunpack.c.h.b16 %v5437
          %v5616 = vunpack.c.l.b16 %v5438
          %v5617 = vunpack.c.h.b16 %v5438
          %v5618 = vunpack.c.l.b16 %v5439
          %v5619 = vunpack.c.h.b16 %v5439
          %v5620 = vunpack.c.l.b16 %v5440
          %v5621 = vunpack.c.h.b16 %v5440
          %v5622 = vunpack.c.l.b16 %v5441
          %v5623 = vunpack.c.h.b16 %v5441
          %v5624 = vunpack.c.l.b16 %v5442
          %v5625 = vunpack.c.h.b16 %v5442
          %v5626 = vunpack.c.l.b16 %v5443
          %v5627 = vunpack.c.h.b16 %v5443
          %v5628 = vunpack.c.l.b16 %v5444
          %v5629 = vunpack.c.h.b16 %v5444
          %v5630 = vunpack.c.l.b16 %v5445
          %v5631 = vunpack.c.h.b16 %v5445
          %v5632 = vunpack.c.l.b16 %v5446
          %v5633 = vunpack.c.h.b16 %v5446
          %v5634 = vunpack.c.l.b16 %v5447
          %v5635 = vunpack.c.h.b16 %v5447
          %v5636 = vunpack.c.l.b16 %v5448
          %v5637 = vunpack.c.h.b16 %v5448
          %v5638 = vunpack.c.l.b16 %v5449
          %v5639 = vunpack.c.h.b16 %v5449
          %v5640 = vunpack.c.l.b16 %v5450
          %v5641 = vunpack.c.h.b16 %v5450
          %v5642 = vunpack.c.l.b16 %v5451
          %v5643 = vunpack.c.h.b16 %v5451
          %v5644 = vunpack.c.l.b16 %v5452
          %v5645 = vunpack.c.h.b16 %v5452
          %v5646 = vunpack.c.l.b16 %v5453
          %v5647 = vunpack.c.h.b16 %v5453
          %v5648 = vunpack.c.l.b16 %v5454
          %v5649 = vunpack.c.h.b16 %v5454
          %v5650 = vunpack.c.l.b16 %v5455
          %v5651 = vunpack.c.h.b16 %v5455
          %v5652 = vunpack.c.l.b16 %v5456
          %v5653 = vunpack.c.h.b16 %v5456
          %v5654 = vunpack.c.l.b16 %v5457
          %v5655 = vunpack.c.h.b16 %v5457
          %v5656 = vpack.c.b16 %v5530, %v5528
          %v5657 = vpack.c.b16 %v5531, %v5529
          %v5658 = vpack.c.b16 %v5534, %v5532
          %v5659 = vpack.c.b16 %v5535, %v5533
          %v5660 = vpack.c.b16 %v5538, %v5536
          %v5661 = vpack.c.b16 %v5539, %v5537
          %v5662 = vpack.c.b16 %v5542, %v5540
          %v5663 = vpack.c.b16 %v5543, %v5541
          %v5664 = vpack.c.b16 %v5546, %v5544
          %v5665 = vpack.c.b16 %v5547, %v5545
          %v5666 = vpack.c.b16 %v5550, %v5548
          %v5667 = vpack.c.b16 %v5551, %v5549
          %v5668 = vpack.c.b16 %v5554, %v5552
          %v5669 = vpack.c.b16 %v5555, %v5553
          %v5670 = vpack.c.b16 %v5558, %v5556
          %v5671 = vpack.c.b16 %v5559, %v5557
          %v5672 = vpack.c.b16 %v5562, %v5560
          %v5673 = vpack.c.b16 %v5563, %v5561
          %v5674 = vpack.c.b16 %v5566, %v5564
          %v5675 = vpack.c.b16 %v5567, %v5565
          %v5676 = vpack.c.b16 %v5570, %v5568
          %v5677 = vpack.c.b16 %v5571, %v5569
          %v5678 = vpack.c.b16 %v5574, %v5572
          %v5679 = vpack.c.b16 %v5575, %v5573
          %v5680 = vpack.c.b16 %v5578, %v5576
          %v5681 = vpack.c.b16 %v5579, %v5577
          %v5682 = vpack.c.b16 %v5582, %v5580
          %v5683 = vpack.c.b16 %v5583, %v5581
          %v5684 = vpack.c.b16 %v5586, %v5584
          %v5685 = vpack.c.b16 %v5587, %v5585
          %v5686 = vpack.c.b16 %v5590, %v5588
          %v5687 = vpack.c.b16 %v5591, %v5589
          %v5688 = vpack.c.b16 %v5594, %v5592
          %v5689 = vpack.c.b16 %v5595, %v5593
          %v5690 = vpack.c.b16 %v5598, %v5596
          %v5691 = vpack.c.b16 %v5599, %v5597
          %v5692 = vpack.c.b16 %v5602, %v5600
          %v5693 = vpack.c.b16 %v5603, %v5601
          %v5694 = vpack.c.b16 %v5606, %v5604
          %v5695 = vpack.c.b16 %v5607, %v5605
          %v5696 = vpack.c.b16 %v5610, %v5608
          %v5697 = vpack.c.b16 %v5611, %v5609
          %v5698 = vpack.c.b16 %v5614, %v5612
          %v5699 = vpack.c.b16 %v5615, %v5613
          %v5700 = vpack.c.b16 %v5618, %v5616
          %v5701 = vpack.c.b16 %v5619, %v5617
          %v5702 = vpack.c.b16 %v5622, %v5620
          %v5703 = vpack.c.b16 %v5623, %v5621
          %v5704 = vpack.c.b16 %v5626, %v5624
          %v5705 = vpack.c.b16 %v5627, %v5625
          %v5706 = vpack.c.b16 %v5630, %v5628
          %v5707 = vpack.c.b16 %v5631, %v5629
          %v5708 = vpack.c.b16 %v5634, %v5632
          %v5709 = vpack.c.b16 %v5635, %v5633
          %v5710 = vpack.c.b16 %v5638, %v5636
          %v5711 = vpack.c.b16 %v5639, %v5637
          %v5712 = vpack.c.b16 %v5642, %v5640
          %v5713 = vpack.c.b16 %v5643, %v5641
          %v5714 = vpack.c.b16 %v5646, %v5644
          %v5715 = vpack.c.b16 %v5647, %v5645
          %v5716 = vpack.c.b16 %v5650, %v5648
          %v5717 = vpack.c.b16 %v5651, %v5649
          %v5718 = vpack.c.b16 %v5654, %v5652
          %v5719 = vpack.c.b16 %v5655, %v5653
          %5784 = vmatpush.bf16.msra.mxu0 %v5670
          %5785 = vmatpush.bf16.msra.mxu0 %v5668
          %5786 = vmatpush.bf16.msra.mxu0 %v5666
          %5787 = vmatpush.bf16.msra.mxu0 %v5664
          %5788 = vmatpush.bf16.msra.mxu0 %v5662
          %5789 = vmatpush.bf16.msra.mxu0 %v5660
          %5790 = vmatpush.bf16.msra.mxu0 %v5658
          %5791 = vmatpush.bf16.msra.mxu0 %v5656
          %5792 = vmatmul.bf16.gmra.mxu0 %v5390
          %v5793 = vpop.f32.mrf.mxu0
          %v5794 = vadd.f32 %v5460, %v5793
          %v5795 = vpop.f32.mrf.mxu0
          %5796 = vdwg.mxu0
          %5797 = vmatpush.bf16.msra.mxu0 %v5686
          %5798 = vmatpush.bf16.msra.mxu0 %v5684
          %5799 = vmatpush.bf16.msra.mxu0 %v5682
          %5800 = vmatpush.bf16.msra.mxu0 %v5680
          %5801 = vmatpush.bf16.msra.mxu0 %v5678
          %5802 = vmatpush.bf16.msra.mxu0 %v5676
          %5803 = vmatpush.bf16.msra.mxu0 %v5674
          %5804 = vmatpush.bf16.msra.mxu0 %v5672
          %5805 = vmatmul.bf16.gmra.mxu0 %v5391
          %v5806 = vpop.f32.mrf.mxu0
          %v5807 = vadd.f32 %v5794, %v5806
          %v5808 = vpop.f32.mrf.mxu0
          %5809 = vdwg.mxu0
          %5810 = vmatpush.bf16.msra.mxu0 %v5702
          %5811 = vmatpush.bf16.msra.mxu0 %v5700
          %5812 = vmatpush.bf16.msra.mxu0 %v5698
          %5813 = vmatpush.bf16.msra.mxu0 %v5696
          %5814 = vmatpush.bf16.msra.mxu0 %v5694
          %5815 = vmatpush.bf16.msra.mxu0 %v5692
          %5816 = vmatpush.bf16.msra.mxu0 %v5690
          %5817 = vmatpush.bf16.msra.mxu0 %v5688
          %5818 = vmatmul.bf16.gmra.mxu0 %v5392
          %v5819 = vpop.f32.mrf.mxu0
          %v5820 = vadd.f32 %v5807, %v5819
          %v5821 = vpop.f32.mrf.mxu0
          %5822 = vdwg.mxu0
          %5823 = vmatpush.bf16.msra.mxu0 %v5718
          %5824 = vmatpush.bf16.msra.mxu0 %v5716
          %5825 = vmatpush.bf16.msra.mxu0 %v5714
          %5826 = vmatpush.bf16.msra.mxu0 %v5712
          %5827 = vmatpush.bf16.msra.mxu0 %v5710
          %5828 = vmatpush.bf16.msra.mxu0 %v5708
          %5829 = vmatpush.bf16.msra.mxu0 %v5706
          %5830 = vmatpush.bf16.msra.mxu0 %v5704
          %5831 = vmatmul.bf16.gmra.mxu0 %v5393
          %v5832 = vpop.f32.mrf.mxu0
          %v5833 = vadd.f32 %v5820, %v5832
          %v5834 = vpop.f32.mrf.mxu0
          %5835 = vdwg.mxu0
          %5836 = vmatpush.bf16.msra.mxu0 %v5671
          %5837 = vmatpush.bf16.msra.mxu0 %v5669
          %5838 = vmatpush.bf16.msra.mxu0 %v5667
          %5839 = vmatpush.bf16.msra.mxu0 %v5665
          %5840 = vmatpush.bf16.msra.mxu0 %v5663
          %5841 = vmatpush.bf16.msra.mxu0 %v5661
          %5842 = vmatpush.bf16.msra.mxu0 %v5659
          %5843 = vmatpush.bf16.msra.mxu0 %v5657
          %5844 = vmatmul.bf16.gmra.mxu0 %v5390
          %v5845 = vpop.f32.mrf.mxu0
          %v5846 = vadd.f32 %v5461, %v5845
          %v5847 = vpop.f32.mrf.mxu0
          %5848 = vdwg.mxu0
          %5849 = vmatpush.bf16.msra.mxu0 %v5687
          %5850 = vmatpush.bf16.msra.mxu0 %v5685
          %5851 = vmatpush.bf16.msra.mxu0 %v5683
          %5852 = vmatpush.bf16.msra.mxu0 %v5681
          %5853 = vmatpush.bf16.msra.mxu0 %v5679
          %5854 = vmatpush.bf16.msra.mxu0 %v5677
          %5855 = vmatpush.bf16.msra.mxu0 %v5675
          %5856 = vmatpush.bf16.msra.mxu0 %v5673
          %5857 = vmatmul.bf16.gmra.mxu0 %v5391
          %v5858 = vpop.f32.mrf.mxu0
          %v5859 = vadd.f32 %v5846, %v5858
          %v5860 = vpop.f32.mrf.mxu0
          %5861 = vdwg.mxu0
          %5862 = vmatpush.bf16.msra.mxu0 %v5703
          %5863 = vmatpush.bf16.msra.mxu0 %v5701
          %5864 = vmatpush.bf16.msra.mxu0 %v5699
          %5865 = vmatpush.bf16.msra.mxu0 %v5697
          %5866 = vmatpush.bf16.msra.mxu0 %v5695
          %5867 = vmatpush.bf16.msra.mxu0 %v5693
          %5868 = vmatpush.bf16.msra.mxu0 %v5691
          %5869 = vmatpush.bf16.msra.mxu0 %v5689
          %5870 = vmatmul.bf16.gmra.mxu0 %v5392
          %v5871 = vpop.f32.mrf.mxu0
          %v5872 = vadd.f32 %v5859, %v5871
          %v5873 = vpop.f32.mrf.mxu0
          %5874 = vdwg.mxu0
          %5875 = vmatpush.bf16.msra.mxu0 %v5719
          %5876 = vmatpush.bf16.msra.mxu0 %v5717
          %5877 = vmatpush.bf16.msra.mxu0 %v5715
          %5878 = vmatpush.bf16.msra.mxu0 %v5713
          %5879 = vmatpush.bf16.msra.mxu0 %v5711
          %5880 = vmatpush.bf16.msra.mxu0 %v5709
          %5881 = vmatpush.bf16.msra.mxu0 %v5707
          %5882 = vmatpush.bf16.msra.mxu0 %v5705
          %5883 = vmatmul.bf16.gmra.mxu0 %v5393
          %v5884 = vpop.f32.mrf.mxu0
          %v5885 = vadd.f32 %v5872, %v5884
          %v5886 = vpop.f32.mrf.mxu0
          %5887 = vdwg.mxu0
          %v5888 = vmax.f32 %v5833, 0.0
          %v5889 = vmax.f32 %v5885, 0.0
          %v5890 = vpack.c.bf16 %v5888, %v5888
          %v5891 = vpack.c.bf16 %v5889, %v5889
          %v5892 = vld [vmem:[#allocation5] sm:$0xf]
          %v5893 = vld [vmem:[#allocation5 + $0x4] sm:$0xf]
          %v5894 = vld [vmem:[#allocation5 + $0x8] sm:$0xf]
          %v5895 = vld [vmem:[#allocation5 + $0xc] sm:$0xf]
          %v5896 = vld [vmem:[#allocation5 + $0x10] sm:$0xf]
          %v5897 = vld [vmem:[#allocation5 + $0x14] sm:$0xf]
          %v5898 = vld [vmem:[#allocation5 + $0x18] sm:$0xf]
          %v5899 = vld [vmem:[#allocation5 + $0x1c] sm:$0xf]
          %v5900 = vld [vmem:[#allocation5 + $0x20] sm:$0xf]
          %v5901 = vld [vmem:[#allocation5 + $0x24] sm:$0xf]
          %v5902 = vld [vmem:[#allocation5 + $0x28] sm:$0xf]
          %v5903 = vld [vmem:[#allocation5 + $0x2c] sm:$0xf]
          %v5904 = vld [vmem:[#allocation5 + $0x30] sm:$0xf]
          %v5905 = vld [vmem:[#allocation5 + $0x34] sm:$0xf]
          %v5906 = vld [vmem:[#allocation5 + $0x38] sm:$0xf]
          %v5907 = vld [vmem:[#allocation5 + $0x3c] sm:$0xf]
          %v5908 = vld [vmem:[#allocation5 + $0x40] sm:$0xf]
          %v5909 = vld [vmem:[#allocation5 + $0x44] sm:$0xf]
          %v5910 = vld [vmem:[#allocation5 + $0x48] sm:$0xf]
          %v5911 = vld [vmem:[#allocation5 + $0x4c] sm:$0xf]
          %v5912 = vld [vmem:[#allocation5 + $0x50] sm:$0xf]
          %v5913 = vld [vmem:[#allocation5 + $0x54] sm:$0xf]
          %v5914 = vld [vmem:[#allocation5 + $0x58] sm:$0xf]
          %v5915 = vld [vmem:[#allocation5 + $0x5c] sm:$0xf]
          %v5916 = vld [vmem:[#allocation5 + $0x60] sm:$0xf]
          %v5917 = vld [vmem:[#allocation5 + $0x64] sm:$0xf]
          %v5918 = vld [vmem:[#allocation5 + $0x68] sm:$0xf]
          %v5919 = vld [vmem:[#allocation5 + $0x6c] sm:$0xf]
          %v5920 = vld [vmem:[#allocation5 + $0x70] sm:$0xf]
          %v5921 = vld [vmem:[#allocation5 + $0x74] sm:$0xf]
          %v5922 = vld [vmem:[#allocation5 + $0x78] sm:$0xf]
          %v5923 = vld [vmem:[#allocation5 + $0x7c] sm:$0xf]
          %v5924 = vld [vmem:[#allocation6] sm:$0x1]
          %v5926 = vperm.slane %v5924, 0
          %v5960 = vunpack.c.l.b16 %v5892
          %v5961 = vunpack.c.l.b16 %v5893
          %v5962 = vunpack.c.l.b16 %v5894
          %v5963 = vunpack.c.l.b16 %v5895
          %v5964 = vunpack.c.l.b16 %v5896
          %v5965 = vunpack.c.l.b16 %v5897
          %v5966 = vunpack.c.l.b16 %v5898
          %v5967 = vunpack.c.l.b16 %v5899
          %v5968 = vunpack.c.l.b16 %v5900
          %v5969 = vunpack.c.l.b16 %v5901
          %v5970 = vunpack.c.l.b16 %v5902
          %v5971 = vunpack.c.l.b16 %v5903
          %v5972 = vunpack.c.l.b16 %v5904
          %v5973 = vunpack.c.l.b16 %v5905
          %v5974 = vunpack.c.l.b16 %v5906
          %v5975 = vunpack.c.l.b16 %v5907
          %v5976 = vunpack.c.l.b16 %v5908
          %v5977 = vunpack.c.l.b16 %v5909
          %v5978 = vunpack.c.l.b16 %v5910
          %v5979 = vunpack.c.l.b16 %v5911
          %v5980 = vunpack.c.l.b16 %v5912
          %v5981 = vunpack.c.l.b16 %v5913
          %v5982 = vunpack.c.l.b16 %v5914
          %v5983 = vunpack.c.l.b16 %v5915
          %v5984 = vunpack.c.l.b16 %v5916
          %v5985 = vunpack.c.l.b16 %v5917
          %v5986 = vunpack.c.l.b16 %v5918
          %v5987 = vunpack.c.l.b16 %v5919
          %v5988 = vunpack.c.l.b16 %v5920
          %v5989 = vunpack.c.l.b16 %v5921
          %v5990 = vunpack.c.l.b16 %v5922
          %v5991 = vunpack.c.l.b16 %v5923
          %v5992 = vpack.c.b16 %v5961, %v5960
          %v5993 = vpack.c.b16 %v5963, %v5962
          %v5994 = vpack.c.b16 %v5965, %v5964
          %v5995 = vpack.c.b16 %v5967, %v5966
          %v5996 = vpack.c.b16 %v5969, %v5968
          %v5997 = vpack.c.b16 %v5971, %v5970
          %v5998 = vpack.c.b16 %v5973, %v5972
          %v5999 = vpack.c.b16 %v5975, %v5974
          %v6000 = vpack.c.b16 %v5977, %v5976
          %v6001 = vpack.c.b16 %v5979, %v5978
          %v6002 = vpack.c.b16 %v5981, %v5980
          %v6003 = vpack.c.b16 %v5983, %v5982
          %v6004 = vpack.c.b16 %v5985, %v5984
          %v6005 = vpack.c.b16 %v5987, %v5986
          %v6006 = vpack.c.b16 %v5989, %v5988
          %v6007 = vpack.c.b16 %v5991, %v5990
          %6024 = vmatpush.bf16.msra.mxu0 %v5999
          %6025 = vmatpush.bf16.msra.mxu0 %v5998
          %6026 = vmatpush.bf16.msra.mxu0 %v5997
          %6027 = vmatpush.bf16.msra.mxu0 %v5996
          %6028 = vmatpush.bf16.msra.mxu0 %v5995
          %6029 = vmatpush.bf16.msra.mxu0 %v5994
          %6030 = vmatpush.bf16.msra.mxu0 %v5993
          %6031 = vmatpush.bf16.msra.mxu0 %v5992
          %6032 = vmatmul.bf16.gmra.mxu0 %v5890
          %v6033 = vpop.f32.mrf.mxu0
          %v6034 = vadd.f32 %v5926, %v6033
          %v6035 = vpop.f32.mrf.mxu0
          %6036 = vdwg.mxu0
          %6037 = vmatpush.bf16.msra.mxu0 %v6007
          %6038 = vmatpush.bf16.msra.mxu0 %v6006
          %6039 = vmatpush.bf16.msra.mxu0 %v6005
          %6040 = vmatpush.bf16.msra.mxu0 %v6004
          %6041 = vmatpush.bf16.msra.mxu0 %v6003
          %6042 = vmatpush.bf16.msra.mxu0 %v6002
          %6043 = vmatpush.bf16.msra.mxu0 %v6001
          %6044 = vmatpush.bf16.msra.mxu0 %v6000
          %6045 = vmatmul.bf16.gmra.mxu0 %v5891
          %v6046 = vpop.f32.mrf.mxu0
          %v6047 = vadd.f32 %v6034, %v6046
          %v6048 = vpop.f32.mrf.mxu0
          %6049 = vdwg.mxu0
          %6050 = vst [vmem:[%s9] sm:$0x3] %v6047
        $region80: #{forward.1} parent=39 // pred_fallthru
          _
        // Predicated region
        $region81: #{forward.1} parent=39 // pred_check
          %p6051 = pneg %p160
        $region82: #{forward.1} parent=39 // pred_check_branch
          %6053 = sbr.rel (%p6051) target = $region84
        $region83: #{forward.1} parent=39 // pred_region
          _
        $region84: #{forward.1} parent=39 // pred_fallthru
          _
        // Predicated region
        $region85: #{forward.1} parent=39 // pred_check
          %p6054 = pneg %p160
        $region86: #{forward.1} parent=39 // pred_check_branch
          %6056 = sbr.rel (%p6054) target = $region88
        $region87: #{forward.1} parent=39 // pred_region
          _
        $region88: #{forward.1} parent=39 // pred_fallthru
          _
      $region40: #{forward.1} parent=5 // pred_fallthru
        _
      %p6057 = scmp.le.s32.totalorder 2, %s22
      // Predicated region
      $region89: #{forward.1} parent=5 // pred_check
        %p6058 = pneg %p6057
      $region90: #{forward.1} parent=5 // pred_check_branch
        %6060 = sbr.rel (%p6058) target = $region92
      $region91: #{forward.1} parent=5 // pred_region
        %s6061 = ssub.s32 %s22, 2
      $region92: #{forward.1} parent=5 // pred_fallthru
        _
    $region6: #{forward.1} parent=1 // loop_footer
      %s26 = sadd.s32 1, %s22
    $region7: #{forward.1} parent=1 // loop_footer_branch
      %21 = sbr.rel target = $region3
    $region8: #{forward.1} parent=1 // loop_exit
      _
    %6062 = vsyncpa [#allocation9], 1
    %s6063 = scalar_lea.sflag [#allocation9], 1
    %6064 = vsyncpa %s6063, 1
    %6065 = vsyncpa [#allocation11], 1
    %s6066 = scalar_lea.sflag [#allocation11], 1
    %6067 = vsyncpa %s6066, 1
    %6068 = vsyncpa [#allocation14], 1
  %6069 = vsyncmov [#allocation7]
  %s6070 = vpop.sfrf %6069
  %p6071 = scmp.eq.s32.totalorder %s6070, 0
  %p6072 = pneg %p6071
  %6074 = shalt.err (%p6072)
  %s6075 = scalar_lea.sflag [#allocation7], 1
  %6076 = vsyncmov %s6075
  %s6077 = vpop.sfrf %6076
  %p6078 = scmp.eq.s32.totalorder %s6077, 0
  %p6079 = pneg %p6078
  %6081 = shalt.err (%p6079)
  %s6082 = scalar_lea.sflag [#allocation7], 2
  %6083 = vsyncmov %s6082
  %s6084 = vpop.sfrf %6083
  %p6085 = scmp.eq.s32.totalorder %s6084, 0
  %p6086 = pneg %p6085
  %6088 = shalt.err (%p6086)
  %s6089 = scalar_lea.sflag [#allocation7], 3
  %6090 = vsyncmov %s6089
  %s6091 = vpop.sfrf %6090
  %p6092 = scmp.eq.s32.totalorder %s6091, 0
  %p6093 = pneg %p6092
  %6095 = shalt.err (%p6093)

</llo_original>
